<compile_context>
chip_gen: v5e
topology: v5e:2x2
jax: 0.10.0
libtpu: 0.0.40
codegen_flags: <defaults>
</compile_context>

<pallas_src>
import jax
import jax.numpy as jnp
from jax import lax
from jax.experimental import pallas as pl
from jax.experimental.pallas import tpu as pltpu


# --------------------------------------------------------------------------
# Kernel
# --------------------------------------------------------------------------
def _make_lstm_kernel(T, BT, E, H, L, S_total, unroll):
    fourH = 4 * H
    need_mask = (S_total % T) != 0          # static: only trace masking if needed

    def kernel(emb_ref, w_ih0_ref, w_hh0_ref, b0_ref,
               w_ihr_ref, w_hhr_ref, b_rest_ref, w_fc_ref, b_fc_ref,
               out_ref, h_ref, c_ref, xg_ref):
        s = pl.program_id(1)                # sequence-chunk index ("arbitrary")

        # Reset recurrent state at the start of every batch tile.
        @pl.when(s == 0)
        def _():
            h_ref[...] = jnp.zeros_like(h_ref)
            c_ref[...] = jnp.zeros_like(c_ref)

        # ---- Hoisted layer-0 input projection for the whole chunk ----------
        # One (T*BT, E) x (E, 4H) bf16 MXU matmul off the serial path.
        # Stored in bf16 (halves the slab for v7x); layer-0 bias is added in
        # f32 at consumption time.
        x_flat = emb_ref[...].reshape(T * BT, E)
        xg = jnp.dot(x_flat, w_ih0_ref[...],
                     preferred_element_type=jnp.float32)
        xg_ref[...] = xg.astype(jnp.bfloat16).reshape(T, BT, fourH)

        def gate_math(gates, c_prev):
            # Packed gate order [i, f, o | g]: one sigmoid slab + one tanh.
            sig = jax.nn.sigmoid(gates[:, :3 * H])
            g = jnp.tanh(gates[:, 3 * H:])
            c_new = sig[:, H:2 * H] * c_prev + sig[:, :H] * g
            # h is only ever consumed as a bf16 MXU operand -> cast once here.
            h_new = (sig[:, 2 * H:3 * H] * jnp.tanh(c_new)).astype(jnp.bfloat16)
            return h_new, c_new

        def step(t, carry):
            hs, cs = carry
            # Layer 0: only the recurrent matmul remains on the critical path.
            gates0 = (xg_ref[t].astype(jnp.float32) + b0_ref[...]
                      + jnp.dot(hs[0], w_hh0_ref[...],
                                preferred_element_type=jnp.float32))
            h_new, c_new = gate_math(gates0, cs[0])
            new_hs, new_cs = [h_new], [c_new]
            for l in range(1, L):           # static layer unroll
                # Two accumulated MXU pushes instead of a per-step lane concat.
                gates = (jnp.dot(new_hs[l - 1], w_ihr_ref[l - 1],
                                 preferred_element_type=jnp.float32)
                         + jnp.dot(hs[l], w_hhr_ref[l - 1],
                                   preferred_element_type=jnp.float32)
                         + b_rest_ref[l - 1])
                h_new, c_new = gate_math(gates, cs[l])
                new_hs.append(h_new)
                new_cs.append(c_new)
                # TODO(synk): inter-layer dropout is identity in eval mode.
            if need_mask:
                # Padded final chunk: freeze the state on invalid time steps.
                valid = (s * T + t) < S_total
                new_hs = [jnp.where(valid, nh, oh)
                          for nh, oh in zip(new_hs, hs)]
                new_cs = [jnp.where(valid, nc, oc)
                          for nc, oc in zip(new_cs, cs)]
            return tuple(new_hs), tuple(new_cs)

        h0 = tuple(h_ref[l] for l in range(L))
        c0 = tuple(c_ref[l] for l in range(L))
        hs, cs = lax.fori_loop(0, T, step, (h0, c0), unroll=unroll)

        for l in range(L):
            h_ref[l] = hs[l]
            c_ref[l] = cs[l]

        # ---- Epilogue: fc + sigmoid on the last valid timestep --------------
        @pl.when(s == pl.num_programs(1) - 1)
        def _():
            # sigmoid(fc(h_T))[:, -1] -> only the last fc row survives, so use
            # a VPU multiply + lane reduction instead of an N=1 MXU matmul.
            h_top = hs[L - 1].astype(jnp.float32)
            logits = jnp.sum(h_top * w_fc_ref[...], axis=-1, keepdims=True)
            out_ref[...] = jax.nn.sigmoid(logits + b_fc_ref[...])

    return kernel


# --------------------------------------------------------------------------
# Wrapper / glue
# --------------------------------------------------------------------------
def _build_pallas_call(kernel, *, T, BT, E, H, L, B_pad, num_chunks,
                       shapes, single_buffer_weights, vmem_limit, cost):
    fourH = 4 * H
    kw = dict(pipeline_mode=pl.Buffered(1)) if single_buffer_weights else {}
    (w_ih0_s, w_hh0_s, b0_s, w_ihr_s, w_hhr_s,
     b_rest_s, w_fc_s, b_fc_s) = shapes

    return pl.pallas_call(
        kernel,
        out_shape=jax.ShapeDtypeStruct((B_pad, 1), jnp.float32),
        grid_spec=pltpu.PrefetchScalarGridSpec(
            num_scalar_prefetch=0,
            grid=(B_pad // BT, num_chunks),        # (parallel, arbitrary)
            in_specs=[
                pl.BlockSpec((T, BT, E), lambda b, s: (s, b, 0)),   # embeds
                pl.BlockSpec(w_ih0_s, lambda b, s: (0, 0), **kw),
                pl.BlockSpec(w_hh0_s, lambda b, s: (0, 0), **kw),
                pl.BlockSpec(b0_s, lambda b, s: (0, 0), **kw),
                pl.BlockSpec(w_ihr_s, lambda b, s: (0, 0, 0), **kw),
                pl.BlockSpec(w_hhr_s, lambda b, s: (0, 0, 0), **kw),
                pl.BlockSpec(b_rest_s, lambda b, s: (0, 0, 0), **kw),
                pl.BlockSpec(w_fc_s, lambda b, s: (0, 0), **kw),
                pl.BlockSpec(b_fc_s, lambda b, s: (0, 0), **kw),
            ],
            out_specs=pl.BlockSpec((BT, 1), lambda b, s: (b, 0)),
            scratch_shapes=[
                pltpu.VMEM((L, BT, H), jnp.bfloat16),       # h carry (bf16)
                pltpu.VMEM((L, BT, H), jnp.float32),        # c carry (f32)
                pltpu.VMEM((T, BT, fourH), jnp.bfloat16),   # hoisted x-gates
            ],
        ),
        compiler_params=pltpu.CompilerParams(
            dimension_semantics=("parallel", "arbitrary"),
            vmem_limit_bytes=vmem_limit,
        ),
        cost_estimate=cost,
    )


def sentiment_lstm_forward(tokens, packed, *, seq_chunk=None, unroll=4):
    emb = packed["emb"]          # (V, E)        bf16
    w_ih0 = packed["w_ih0"]      # (E, 4H)       bf16
    w_hh0 = packed["w_hh0"]      # (H, 4H)       bf16
    b0 = packed["b0"]            # (1, 4H)       f32
    w_ihr = packed["w_ihr"]      # (max(L-1,1), H, 4H) bf16
    w_hhr = packed["w_hhr"]      # (max(L-1,1), H, 4H) bf16
    b_rest = packed["b_rest"]    # (max(L-1,1), 1, 4H) f32
    w_fc = packed["w_fc"]        # (1, H)        f32 (last fc row)
    b_fc = packed["b_fc"]        # (1, 1)        f32 (last fc bias)
    L = packed["n_layers"]

    B, S = tokens.shape
    E = w_ih0.shape[0]
    H = w_hh0.shape[0]
    fourH = 4 * H

    # --- batch tiling: >= 2 tiles whenever possible so the "parallel" axis is
    # non-degenerate (both v7x TensorCores get work); 16-row bf16 alignment.
    if B <= 16:
        BT = 16
    elif B <= 256:
        BT = (((B + 1) // 2 + 15) // 16) * 16      # ~B/2, rounded to 16
    else:
        BT = 128                                   # (256 possible on v6e/v7x)
    B_pad = ((B + BT - 1) // BT) * BT

    # --- sequence chunking: cap so the bf16 xg slab stays ~<= 8 MiB (v7x safe)
    if seq_chunk is None:
        xg_budget = 8 * 1024 * 1024
        t_cap = max(1, xg_budget // (BT * fourH * 2))
        seq_chunk = int(min(128, t_cap, S))
    T = int(max(1, min(seq_chunk, S)))
    num_chunks = (S + T - 1) // T
    S_pad = num_chunks * T                         # padded steps masked in-kernel
    unroll = int(max(1, min(unroll, T)))

    tok = tokens
    if B_pad != B:
        tok = jnp.pad(tok, ((0, B_pad - B), (0, 0)))
    # Embedding gather directly into (S, B_pad, E): transpose the tiny int32
    # token matrix, not the embedded activations.
    x = jnp.take(emb, tok.T, axis=0)               # (S, B_pad, E) bf16
    if S_pad != S:
        x = jnp.pad(x, ((0, S_pad - S), (0, 0), (0, 0)))

    # --- VMEM budget (single-buffered weights, double-buffered embed chunk)
    weight_bytes = (w_ih0.size + w_hh0.size + w_ihr.size + w_hhr.size) * 2
    bias_bytes = (b0.size + b_rest.size + w_fc.size + b_fc.size) * 4
    scratch_bytes = L * BT * H * (2 + 4) + T * BT * fourH * 2
    est = 2 * T * BT * E * 2 + weight_bytes + bias_bytes + scratch_bytes + 2 * BT * 4
    try:
        phys_vmem = int(getattr(pltpu.get_tpu_info(), "vmem_capacity_bytes",
                                64 * 1024 * 1024))
    except Exception:
        phys_vmem = 64 * 1024 * 1024
    vmem_limit = int(min(int(phys_vmem * 0.75),
                         max(4 * 1024 * 1024, 2 * est)))

    flops = int(2 * S_pad * B_pad * (E + H) * fourH
                + 2 * S_pad * B_pad * max(L - 1, 0) * 2 * H * fourH
                + 2 * B_pad * H)
    transcendentals = int(S_pad * L * B_pad * 5 * H + B_pad)
    bytes_accessed = int(S_pad * B_pad * E * 2 + weight_bytes + bias_bytes
                         + B_pad * 4)
    cost = pl.CostEstimate(flops=flops, transcendentals=transcendentals,
                           bytes_accessed=bytes_accessed)

    kernel = _make_lstm_kernel(T, BT, E, H, L, S, unroll)
    shapes = (w_ih0.shape, w_hh0.shape, b0.shape, w_ihr.shape, w_hhr.shape,
              b_rest.shape, w_fc.shape, b_fc.shape)
    args = (x, w_ih0, w_hh0, b0, w_ihr, w_hhr, b_rest, w_fc, b_fc)

    def run(single_buffer_weights):
        call = _build_pallas_call(
            kernel, T=T, BT=BT, E=E, H=H, L=L, B_pad=B_pad,
            num_chunks=num_chunks, shapes=shapes,
            single_buffer_weights=single_buffer_weights,
            vmem_limit=vmem_limit, cost=cost)
        return call(*args)

    try:
        out = run(True)                    # single-buffered constant weights
    except Exception:
        out = run(False)                   # fallback: default double buffering

    return out[:B, 0]                      # (B,)


# --------------------------------------------------------------------------
# Parameters: canonical PyTorch-style layout + packer into kernel layout
# --------------------------------------------------------------------------
def init_params(key, vocab_size, output_size, embedding_dim, hidden_dim,
                n_layers):
    H, E = hidden_dim, embedding_dim
    ks = jax.random.split(key, 8)
    scale = 0.1
    return dict(
        emb=jax.random.normal(ks[0], (vocab_size, E), jnp.float32) * scale,
        w_ih0=jax.random.normal(ks[1], (4 * H, E), jnp.float32) * scale,
        w_ih_rest=jax.random.normal(ks[2], (max(n_layers - 1, 1), 4 * H, H),
                                    jnp.float32) * scale,
        w_hh=jax.random.normal(ks[3], (n_layers, 4 * H, H), jnp.float32) * scale,
        b_ih=jax.random.normal(ks[4], (n_layers, 4 * H), jnp.float32) * scale,
        b_hh=jax.random.normal(ks[5], (n_layers, 4 * H), jnp.float32) * scale,
        w_fc=jax.random.normal(ks[6], (output_size, H), jnp.float32) * scale,
        b_fc=jax.random.normal(ks[7], (output_size,), jnp.float32) * scale,
        n_layers=n_layers,
    )


def pack_params(p, compute_dtype=jnp.bfloat16):
    L = p["n_layers"]
    H = p["w_hh"].shape[-1]
    fourH = 4 * H
    # Gate reorder: PyTorch [i, f, g, o] -> packed [i, f, o, g].
    perm = jnp.concatenate([jnp.arange(0, 2 * H),
                            jnp.arange(3 * H, 4 * H),
                            jnp.arange(2 * H, 3 * H)])

    def reorder(w):        # reorder along the 4H axis (axis 0)
        return w[perm]

    w_ih0 = reorder(p["w_ih0"]).T.astype(compute_dtype)              # (E, 4H)
    w_hh0 = reorder(p["w_hh"][0]).T.astype(compute_dtype)            # (H, 4H)
    b0 = reorder(p["b_ih"][0] + p["b_hh"][0]).reshape(1, fourH).astype(jnp.float32)

    if L > 1:
        w_ihr = jnp.stack([reorder(p["w_ih_rest"][l - 1]).T
                           for l in range(1, L)]).astype(compute_dtype)
        w_hhr = jnp.stack([reorder(p["w_hh"][l]).T
                           for l in range(1, L)]).astype(compute_dtype)
        b_rest = jnp.stack([reorder(p["b_ih"][l] + p["b_hh"][l]).reshape(1, fourH)
                            for l in range(1, L)]).astype(jnp.float32)
    else:
        w_ihr = jnp.zeros((1, H, fourH), compute_dtype)
        w_hhr = jnp.zeros((1, H, fourH), compute_dtype)
        b_rest = jnp.zeros((1, 1, fourH), jnp.float32)

    return dict(
        emb=p["emb"].astype(compute_dtype),
        w_ih0=w_ih0, w_hh0=w_hh0, b0=b0,
        w_ihr=w_ihr, w_hhr=w_hhr, b_rest=b_rest,
        w_fc=p["w_fc"][-1].reshape(1, H).astype(jnp.float32),
        b_fc=p["b_fc"][-1].reshape(1, 1).astype(jnp.float32),
        n_layers=L,
    )


# --------------------------------------------------------------------------
# Pure-JAX reference (PyTorch semantics, f32, ifgo gate order)
# --------------------------------------------------------------------------
def sentiment_lstm_reference(tokens, p):
    L = p["n_layers"]
    H = p["w_hh"].shape[-1]
    x = jnp.take(p["emb"], tokens, axis=0)               # (B, S, E)
    B = x.shape[0]
    h = tuple(jnp.zeros((B, H), jnp.float32) for _ in range(L))
    c = tuple(jnp.zeros((B, H), jnp.float32) for _ in range(L))

    def step(carry, x_t):
        h, c = list(carry[0]), list(carry[1])
        inp = x_t
        for l in range(L):
            w_ih = p["w_ih0"] if l == 0 else p["w_ih_rest"][l - 1]
            g = (inp @ w_ih.T + h[l] @ p["w_hh"][l].T
                 + p["b_ih"][l] + p["b_hh"][l])
            i = jax.nn.sigmoid(g[:, :H])
            f = jax.nn.sigmoid(g[:, H:2 * H])
            gg = jnp.tanh(g[:, 2 * H:3 * H])
            o = jax.nn.sigmoid(g[:, 3 * H:])
            c[l] = f * c[l] + i * gg
            h[l] = o * jnp.tanh(c[l])
            inp = h[l]
        return (tuple(h), tuple(c)), inp

    (h, c), _ = lax.scan(step, (h, c), jnp.transpose(x, (1, 0, 2)))
    sig = jax.nn.sigmoid(h[L - 1] @ p["w_fc"].T + p["b_fc"])   # (B, O)
    return sig.reshape(B, -1)[:, -1]


# --------------------------------------------------------------------------
if __name__ == "__main__":
    vocab_size = 50
    output_size = 1
    embedding_dim = 32
    hidden_dim = 32
    n_layers = 2

    key = jax.random.PRNGKey(0)
    k_tok, k_par, k_tok2 = jax.random.split(key, 3)

    params = init_params(k_par, vocab_size, output_size, embedding_dim,
                         hidden_dim, n_layers)
    packed = pack_params(params)

    # Case 1: batch=2, seq=8, two sequence chunks carried via VMEM scratch.
    tokens = jax.random.randint(k_tok, (2, 8), 0, vocab_size, dtype=jnp.int32)
    result = sentiment_lstm_forward(tokens, packed, seq_chunk=4)
    jax.block_until_ready(result)
    assert result.shape == (2,)
    ref = sentiment_lstm_reference(tokens, params)
    assert jnp.allclose(result, ref, atol=5e-2, rtol=5e-2), (result, ref)

    # Case 2: awkward seq length (7) + non-dividing chunk -> padded final
    # chunk with in-kernel time masking, plus batch padding (5 -> 16).
    tokens2 = jax.random.randint(k_tok2, (5, 7), 0, vocab_size, dtype=jnp.int32)
    result2 = sentiment_lstm_forward(tokens2, packed, seq_chunk=4)
    jax.block_until_ready(result2)
    assert result2.shape == (5,)
    ref2 = sentiment_lstm_reference(tokens2, params)
    assert jnp.allclose(result2, ref2, atol=5e-2, rtol=5e-2), (result2, ref2)

    print("KERNEL_OK")
</pallas_src>

<mosaic_0001>
module attributes {stable_mosaic.version = 11 : i64} {
  func.func @kernel(%arg0: i32, %arg1: i32, %arg2: memref<4x16x32xbf16, #tpu.memory_space<vmem>>, %arg3: memref<32x128xbf16, #tpu.memory_space<vmem>>, %arg4: memref<32x128xbf16, #tpu.memory_space<vmem>>, %arg5: memref<1x128xf32, #tpu.memory_space<vmem>>, %arg6: memref<1x32x128xbf16, #tpu.memory_space<vmem>>, %arg7: memref<1x32x128xbf16, #tpu.memory_space<vmem>>, %arg8: memref<1x1x128xf32, #tpu.memory_space<vmem>>, %arg9: memref<1x32xf32, #tpu.memory_space<vmem>>, %arg10: memref<1x1xf32, #tpu.memory_space<vmem>>, %arg11: memref<16x1xf32, #tpu.memory_space<vmem>>, %arg12: memref<2x16x32xbf16, #tpu.memory_space<vmem>>, %arg13: memref<2x16x32xf32, #tpu.memory_space<vmem>>, %arg14: memref<4x16x128xbf16, #tpu.memory_space<vmem>>) attributes {dimension_semantics = [#tpu.dimension_semantics<parallel>, #tpu.dimension_semantics<arbitrary>], iteration_bounds = array<i64: 1, 2>, scalar_prefetch = 0 : i64, scratch_operands = 3 : i64, tpu.core_type = #tpu.core_type<tc>, window_params = [{transform_indices = @transform_0, window_bounds = array<i64: 4, 16, 32>}, {pipeline_mode = #tpu.pipeline_mode<synchronous>, transform_indices = @transform_1, window_bounds = array<i64: 32, 128>}, {pipeline_mode = #tpu.pipeline_mode<synchronous>, transform_indices = @transform_2, window_bounds = array<i64: 32, 128>}, {pipeline_mode = #tpu.pipeline_mode<synchronous>, transform_indices = @transform_3, window_bounds = array<i64: 1, 128>}, {pipeline_mode = #tpu.pipeline_mode<synchronous>, transform_indices = @transform_4, window_bounds = array<i64: 1, 32, 128>}, {pipeline_mode = #tpu.pipeline_mode<synchronous>, transform_indices = @transform_5, window_bounds = array<i64: 1, 32, 128>}, {pipeline_mode = #tpu.pipeline_mode<synchronous>, transform_indices = @transform_6, window_bounds = array<i64: 1, 1, 128>}, {pipeline_mode = #tpu.pipeline_mode<synchronous>, transform_indices = @transform_7, window_bounds = array<i64: 1, 32>}, {pipeline_mode = #tpu.pipeline_mode<synchronous>, transform_indices = @transform_8, window_bounds = array<i64: 1, 1>}, {transform_indices = @transform_9, window_bounds = array<i64: 16, 1>}]} {
    %c0_i32 = arith.constant 0 : i32
    %0 = arith.cmpi eq, %arg1, %c0_i32 : i32
    %1 = arith.extui %0 : i1 to i32
    %c0_i32_0 = arith.constant 0 : i32
    %2 = arith.cmpi ne, %1, %c0_i32_0 : i32
    scf.if %2 {
      %cst_114 = arith.constant 0.000000e+00 : bf16
      %253 = vector.broadcast %cst_114 : bf16 to vector<2x16x32xbf16>
      %c0_115 = arith.constant 0 : index
      %c0_116 = arith.constant 0 : index
      %c0_117 = arith.constant 0 : index
      %254 = vector.load %arg12[%c0_115, %c0_116, %c0_117] : memref<2x16x32xbf16, #tpu.memory_space<vmem>>, vector<2x16x32xbf16>
      tpu.vector_store %arg12[%c0_115, %c0_116, %c0_117], %253 {strides = array<i32>} : memref<2x16x32xbf16, #tpu.memory_space<vmem>>, vector<2x16x32xbf16>,
      %cst_118 = arith.constant 0.000000e+00 : f32
      %255 = vector.broadcast %cst_118 : f32 to vector<2x16x32xf32>
      %c0_119 = arith.constant 0 : index
      %c0_120 = arith.constant 0 : index
      %c0_121 = arith.constant 0 : index
      %256 = vector.load %arg13[%c0_119, %c0_120, %c0_121] : memref<2x16x32xf32, #tpu.memory_space<vmem>>, vector<2x16x32xf32>
      tpu.vector_store %arg13[%c0_119, %c0_120, %c0_121], %255 {strides = array<i32>} : memref<2x16x32xf32, #tpu.memory_space<vmem>>, vector<2x16x32xf32>,
    } else {
    }
    %c0 = arith.constant 0 : index
    %c0_1 = arith.constant 0 : index
    %c0_2 = arith.constant 0 : index
    %3 = vector.load %arg2[%c0, %c0_1, %c0_2] : memref<4x16x32xbf16, #tpu.memory_space<vmem>>, vector<4x16x32xbf16>
    %4 = vector.shape_cast %3 : vector<4x16x32xbf16> to vector<64x32xbf16>
    %c0_3 = arith.constant 0 : index
    %c0_4 = arith.constant 0 : index
    %5 = vector.load %arg3[%c0_3, %c0_4] : memref<32x128xbf16, #tpu.memory_space<vmem>>, vector<32x128xbf16>
    %cst = arith.constant dense<0.000000e+00> : vector<64x128xf32>
    %6 = tpu.matmul %4, %5, %cst {dimension_numbers = #tpu.dot_dimension_numbers<[1], [0], [0], [1], [0, 0, 1, 1], [], []>} : vector<64x32xbf16>, vector<32x128xbf16>, vector<64x128xf32> -> vector<64x128xf32>
    %7 = arith.truncf %6 : vector<64x128xf32> to vector<64x128xbf16>
    %8 = vector.shape_cast %7 : vector<64x128xbf16> to vector<4x16x128xbf16>
    %c0_5 = arith.constant 0 : index
    %c0_6 = arith.constant 0 : index
    %c0_7 = arith.constant 0 : index
    %9 = vector.load %arg14[%c0_5, %c0_6, %c0_7] : memref<4x16x128xbf16, #tpu.memory_space<vmem>>, vector<4x16x128xbf16>
    tpu.vector_store %arg14[%c0_5, %c0_6, %c0_7], %8 {strides = array<i32>} : memref<4x16x128xbf16, #tpu.memory_space<vmem>>, vector<4x16x128xbf16>,
    %c0_8 = arith.constant 0 : index
    %c0_9 = arith.constant 0 : index
    %c0_10 = arith.constant 0 : index
    %10 = vector.load %arg12[%c0_8, %c0_9, %c0_10] : memref<2x16x32xbf16, #tpu.memory_space<vmem>>, vector<1x16x32xbf16>
    %11 = vector.shape_cast %10 : vector<1x16x32xbf16> to vector<16x32xbf16>
    %c1 = arith.constant 1 : index
    %c0_11 = arith.constant 0 : index
    %c0_12 = arith.constant 0 : index
    %12 = vector.load %arg12[%c1, %c0_11, %c0_12] : memref<2x16x32xbf16, #tpu.memory_space<vmem>>, vector<1x16x32xbf16>
    %13 = vector.shape_cast %12 : vector<1x16x32xbf16> to vector<16x32xbf16>
    %c0_13 = arith.constant 0 : index
    %c0_14 = arith.constant 0 : index
    %c0_15 = arith.constant 0 : index
    %14 = vector.load %arg13[%c0_13, %c0_14, %c0_15] : memref<2x16x32xf32, #tpu.memory_space<vmem>>, vector<1x16x32xf32>
    %15 = vector.shape_cast %14 : vector<1x16x32xf32> to vector<16x32xf32>
    %c1_16 = arith.constant 1 : index
    %c0_17 = arith.constant 0 : index
    %c0_18 = arith.constant 0 : index
    %16 = vector.load %arg13[%c1_16, %c0_17, %c0_18] : memref<2x16x32xf32, #tpu.memory_space<vmem>>, vector<1x16x32xf32>
    %17 = vector.shape_cast %16 : vector<1x16x32xf32> to vector<16x32xf32>
    %c0_i32_19 = arith.constant 0 : i32
    %18 = arith.index_cast %c0_i32_19 : i32 to index
    %c0_20 = arith.constant 0 : index
    %c0_21 = arith.constant 0 : index
    %19 = vector.load %arg14[%18, %c0_20, %c0_21] : memref<4x16x128xbf16, #tpu.memory_space<vmem>>, vector<1x16x128xbf16>
    %20 = vector.shape_cast %19 : vector<1x16x128xbf16> to vector<16x128xbf16>
    %21 = arith.extf %20 : vector<16x128xbf16> to vector<16x128xf32>
    %c0_22 = arith.constant 0 : index
    %c0_23 = arith.constant 0 : index
    %22 = vector.load %arg5[%c0_22, %c0_23] : memref<1x128xf32, #tpu.memory_space<vmem>>, vector<1x128xf32>
    %23 = vector.broadcast %22 : vector<1x128xf32> to vector<16x128xf32>
    %24 = arith.addf %21, %23 : vector<16x128xf32>
    %c0_24 = arith.constant 0 : index
    %c0_25 = arith.constant 0 : index
    %25 = vector.load %arg4[%c0_24, %c0_25] : memref<32x128xbf16, #tpu.memory_space<vmem>>, vector<32x128xbf16>
    %cst_26 = arith.constant dense<0.000000e+00> : vector<16x128xf32>
    %26 = tpu.matmul %11, %25, %cst_26 {dimension_numbers = #tpu.dot_dimension_numbers<[1], [0], [0], [1], [0, 0, 1, 1], [], []>} : vector<16x32xbf16>, vector<32x128xbf16>, vector<16x128xf32> -> vector<16x128xf32>
    %27 = arith.addf %24, %26 : vector<16x128xf32>
    %28 = vector.extract_strided_slice %27 {offsets = [0, 0], sizes = [16, 96], strides = [1, 1]} : vector<16x128xf32> to vector<16x96xf32>
    %29 = arith.negf %28 : vector<16x96xf32>
    %30 = math.exp %29 : vector<16x96xf32>
    %cst_27 = arith.constant 1.000000e+00 : f32
    %31 = vector.broadcast %cst_27 : f32 to vector<16x96xf32>
    %32 = arith.addf %31, %30 : vector<16x96xf32>
    %33 = arith.divf %31, %32 : vector<16x96xf32>
    %34 = vector.extract_strided_slice %27 {offsets = [0, 96], sizes = [16, 32], strides = [1, 1]} : vector<16x128xf32> to vector<16x32xf32>
    %35 = math.tanh %34 : vector<16x32xf32>
    %36 = vector.extract_strided_slice %33 {offsets = [0, 32], sizes = [16, 32], strides = [1, 1]} : vector<16x96xf32> to vector<16x32xf32>
    %37 = arith.mulf %36, %15 : vector<16x32xf32>
    %38 = vector.extract_strided_slice %33 {offsets = [0, 0], sizes = [16, 32], strides = [1, 1]} : vector<16x96xf32> to vector<16x32xf32>
    %39 = arith.mulf %38, %35 : vector<16x32xf32>
    %40 = arith.addf %37, %39 : vector<16x32xf32>
    %41 = vector.extract_strided_slice %33 {offsets = [0, 64], sizes = [16, 32], strides = [1, 1]} : vector<16x96xf32> to vector<16x32xf32>
    %42 = math.tanh %40 : vector<16x32xf32>
    %43 = arith.mulf %41, %42 : vector<16x32xf32>
    %44 = arith.truncf %43 : vector<16x32xf32> to vector<16x32xbf16>
    %c0_28 = arith.constant 0 : index
    %c0_29 = arith.constant 0 : index
    %c0_30 = arith.constant 0 : index
    %45 = vector.load %arg6[%c0_28, %c0_29, %c0_30] : memref<1x32x128xbf16, #tpu.memory_space<vmem>>, vector<1x32x128xbf16>
    %46 = vector.shape_cast %45 : vector<1x32x128xbf16> to vector<32x128xbf16>
    %cst_31 = arith.constant dense<0.000000e+00> : vector<16x128xf32>
    %47 = tpu.matmul %44, %46, %cst_31 {dimension_numbers = #tpu.dot_dimension_numbers<[1], [0], [0], [1], [0, 0, 1, 1], [], []>} : vector<16x32xbf16>, vector<32x128xbf16>, vector<16x128xf32> -> vector<16x128xf32>
    %c0_32 = arith.constant 0 : index
    %c0_33 = arith.constant 0 : index
    %c0_34 = arith.constant 0 : index
    %48 = vector.load %arg7[%c0_32, %c0_33, %c0_34] : memref<1x32x128xbf16, #tpu.memory_space<vmem>>, vector<1x32x128xbf16>
    %49 = vector.shape_cast %48 : vector<1x32x128xbf16> to vector<32x128xbf16>
    %cst_35 = arith.constant dense<0.000000e+00> : vector<16x128xf32>
    %50 = tpu.matmul %13, %49, %cst_35 {dimension_numbers = #tpu.dot_dimension_numbers<[1], [0], [0], [1], [0, 0, 1, 1], [], []>} : vector<16x32xbf16>, vector<32x128xbf16>, vector<16x128xf32> -> vector<16x128xf32>
    %51 = arith.addf %47, %50 : vector<16x128xf32>
    %c0_36 = arith.constant 0 : index
    %c0_37 = arith.constant 0 : index
    %c0_38 = arith.constant 0 : index
    %52 = vector.load %arg8[%c0_36, %c0_37, %c0_38] : memref<1x1x128xf32, #tpu.memory_space<vmem>>, vector<1x1x128xf32>
    %53 = vector.shape_cast %52 : vector<1x1x128xf32> to vector<1x128xf32>
    %54 = vector.broadcast %53 : vector<1x128xf32> to vector<16x128xf32>
    %55 = arith.addf %51, %54 : vector<16x128xf32>
    %56 = vector.extract_strided_slice %55 {offsets = [0, 0], sizes = [16, 96], strides = [1, 1]} : vector<16x128xf32> to vector<16x96xf32>
    %57 = arith.negf %56 : vector<16x96xf32>
    %58 = math.exp %57 : vector<16x96xf32>
    %cst_39 = arith.constant 1.000000e+00 : f32
    %59 = vector.broadcast %cst_39 : f32 to vector<16x96xf32>
    %60 = arith.addf %59, %58 : vector<16x96xf32>
    %61 = arith.divf %59, %60 : vector<16x96xf32>
    %62 = vector.extract_strided_slice %55 {offsets = [0, 96], sizes = [16, 32], strides = [1, 1]} : vector<16x128xf32> to vector<16x32xf32>
    %63 = math.tanh %62 : vector<16x32xf32>
    %64 = vector.extract_strided_slice %61 {offsets = [0, 32], sizes = [16, 32], strides = [1, 1]} : vector<16x96xf32> to vector<16x32xf32>
    %65 = arith.mulf %64, %17 : vector<16x32xf32>
    %66 = vector.extract_strided_slice %61 {offsets = [0, 0], sizes = [16, 32], strides = [1, 1]} : vector<16x96xf32> to vector<16x32xf32>
    %67 = arith.mulf %66, %63 : vector<16x32xf32>
    %68 = arith.addf %65, %67 : vector<16x32xf32>
    %69 = vector.extract_strided_slice %61 {offsets = [0, 64], sizes = [16, 32], strides = [1, 1]} : vector<16x96xf32> to vector<16x32xf32>
    %70 = math.tanh %68 : vector<16x32xf32>
    %71 = arith.mulf %69, %70 : vector<16x32xf32>
    %72 = arith.truncf %71 : vector<16x32xf32> to vector<16x32xbf16>
    %c1_i32 = arith.constant 1 : i32
    %73 = arith.index_cast %c1_i32 : i32 to index
    %c0_40 = arith.constant 0 : index
    %c0_41 = arith.constant 0 : index
    %74 = vector.load %arg14[%73, %c0_40, %c0_41] : memref<4x16x128xbf16, #tpu.memory_space<vmem>>, vector<1x16x128xbf16>
    %75 = vector.shape_cast %74 : vector<1x16x128xbf16> to vector<16x128xbf16>
    %76 = arith.extf %75 : vector<16x128xbf16> to vector<16x128xf32>
    %c0_42 = arith.constant 0 : index
    %c0_43 = arith.constant 0 : index
    %77 = vector.load %arg5[%c0_42, %c0_43] : memref<1x128xf32, #tpu.memory_space<vmem>>, vector<1x128xf32>
    %78 = vector.broadcast %77 : vector<1x128xf32> to vector<16x128xf32>
    %79 = arith.addf %76, %78 : vector<16x128xf32>
    %c0_44 = arith.constant 0 : index
    %c0_45 = arith.constant 0 : index
    %80 = vector.load %arg4[%c0_44, %c0_45] : memref<32x128xbf16, #tpu.memory_space<vmem>>, vector<32x128xbf16>
    %cst_46 = arith.constant dense<0.000000e+00> : vector<16x128xf32>
    %81 = tpu.matmul %44, %80, %cst_46 {dimension_numbers = #tpu.dot_dimension_numbers<[1], [0], [0], [1], [0, 0, 1, 1], [], []>} : vector<16x32xbf16>, vector<32x128xbf16>, vector<16x128xf32> -> vector<16x128xf32>
    %82 = arith.addf %79, %81 : vector<16x128xf32>
    %83 = vector.extract_strided_slice %82 {offsets = [0, 0], sizes = [16, 96], strides = [1, 1]} : vector<16x128xf32> to vector<16x96xf32>
    %84 = arith.negf %83 : vector<16x96xf32>
    %85 = math.exp %84 : vector<16x96xf32>
    %cst_47 = arith.constant 1.000000e+00 : f32
    %86 = vector.broadcast %cst_47 : f32 to vector<16x96xf32>
    %87 = arith.addf %86, %85 : vector<16x96xf32>
    %88 = arith.divf %86, %87 : vector<16x96xf32>
    %89 = vector.extract_strided_slice %82 {offsets = [0, 96], sizes = [16, 32], strides = [1, 1]} : vector<16x128xf32> to vector<16x32xf32>
    %90 = math.tanh %89 : vector<16x32xf32>
    %91 = vector.extract_strided_slice %88 {offsets = [0, 32], sizes = [16, 32], strides = [1, 1]} : vector<16x96xf32> to vector<16x32xf32>
    %92 = arith.mulf %91, %40 : vector<16x32xf32>
    %93 = vector.extract_strided_slice %88 {offsets = [0, 0], sizes = [16, 32], strides = [1, 1]} : vector<16x96xf32> to vector<16x32xf32>
    %94 = arith.mulf %93, %90 : vector<16x32xf32>
    %95 = arith.addf %92, %94 : vector<16x32xf32>
    %96 = vector.extract_strided_slice %88 {offsets = [0, 64], sizes = [16, 32], strides = [1, 1]} : vector<16x96xf32> to vector<16x32xf32>
    %97 = math.tanh %95 : vector<16x32xf32>
    %98 = arith.mulf %96, %97 : vector<16x32xf32>
    %99 = arith.truncf %98 : vector<16x32xf32> to vector<16x32xbf16>
    %c0_48 = arith.constant 0 : index
    %c0_49 = arith.constant 0 : index
    %c0_50 = arith.constant 0 : index
    %100 = vector.load %arg6[%c0_48, %c0_49, %c0_50] : memref<1x32x128xbf16, #tpu.memory_space<vmem>>, vector<1x32x128xbf16>
    %101 = vector.shape_cast %100 : vector<1x32x128xbf16> to vector<32x128xbf16>
    %cst_51 = arith.constant dense<0.000000e+00> : vector<16x128xf32>
    %102 = tpu.matmul %99, %101, %cst_51 {dimension_numbers = #tpu.dot_dimension_numbers<[1], [0], [0], [1], [0, 0, 1, 1], [], []>} : vector<16x32xbf16>, vector<32x128xbf16>, vector<16x128xf32> -> vector<16x128xf32>
    %c0_52 = arith.constant 0 : index
    %c0_53 = arith.constant 0 : index
    %c0_54 = arith.constant 0 : index
    %103 = vector.load %arg7[%c0_52, %c0_53, %c0_54] : memref<1x32x128xbf16, #tpu.memory_space<vmem>>, vector<1x32x128xbf16>
    %104 = vector.shape_cast %103 : vector<1x32x128xbf16> to vector<32x128xbf16>
    %cst_55 = arith.constant dense<0.000000e+00> : vector<16x128xf32>
    %105 = tpu.matmul %72, %104, %cst_55 {dimension_numbers = #tpu.dot_dimension_numbers<[1], [0], [0], [1], [0, 0, 1, 1], [], []>} : vector<16x32xbf16>, vector<32x128xbf16>, vector<16x128xf32> -> vector<16x128xf32>
    %106 = arith.addf %102, %105 : vector<16x128xf32>
    %c0_56 = arith.constant 0 : index
    %c0_57 = arith.constant 0 : index
    %c0_58 = arith.constant 0 : index
    %107 = vector.load %arg8[%c0_56, %c0_57, %c0_58] : memref<1x1x128xf32, #tpu.memory_space<vmem>>, vector<1x1x128xf32>
    %108 = vector.shape_cast %107 : vector<1x1x128xf32> to vector<1x128xf32>
    %109 = vector.broadcast %108 : vector<1x128xf32> to vector<16x128xf32>
    %110 = arith.addf %106, %109 : vector<16x128xf32>
    %111 = vector.extract_strided_slice %110 {offsets = [0, 0], sizes = [16, 96], strides = [1, 1]} : vector<16x128xf32> to vector<16x96xf32>
    %112 = arith.negf %111 : vector<16x96xf32>
    %113 = math.exp %112 : vector<16x96xf32>
    %cst_59 = arith.constant 1.000000e+00 : f32
    %114 = vector.broadcast %cst_59 : f32 to vector<16x96xf32>
    %115 = arith.addf %114, %113 : vector<16x96xf32>
    %116 = arith.divf %114, %115 : vector<16x96xf32>
    %117 = vector.extract_strided_slice %110 {offsets = [0, 96], sizes = [16, 32], strides = [1, 1]} : vector<16x128xf32> to vector<16x32xf32>
    %118 = math.tanh %117 : vector<16x32xf32>
    %119 = vector.extract_strided_slice %116 {offsets = [0, 32], sizes = [16, 32], strides = [1, 1]} : vector<16x96xf32> to vector<16x32xf32>
    %120 = arith.mulf %119, %68 : vector<16x32xf32>
    %121 = vector.extract_strided_slice %116 {offsets = [0, 0], sizes = [16, 32], strides = [1, 1]} : vector<16x96xf32> to vector<16x32xf32>
    %122 = arith.mulf %121, %118 : vector<16x32xf32>
    %123 = arith.addf %120, %122 : vector<16x32xf32>
    %124 = vector.extract_strided_slice %116 {offsets = [0, 64], sizes = [16, 32], strides = [1, 1]} : vector<16x96xf32> to vector<16x32xf32>
    %125 = math.tanh %123 : vector<16x32xf32>
    %126 = arith.mulf %124, %125 : vector<16x32xf32>
    %127 = arith.truncf %126 : vector<16x32xf32> to vector<16x32xbf16>
    %c2_i32 = arith.constant 2 : i32
    %128 = arith.index_cast %c2_i32 : i32 to index
    %c0_60 = arith.constant 0 : index
    %c0_61 = arith.constant 0 : index
    %129 = vector.load %arg14[%128, %c0_60, %c0_61] : memref<4x16x128xbf16, #tpu.memory_space<vmem>>, vector<1x16x128xbf16>
    %130 = vector.shape_cast %129 : vector<1x16x128xbf16> to vector<16x128xbf16>
    %131 = arith.extf %130 : vector<16x128xbf16> to vector<16x128xf32>
    %c0_62 = arith.constant 0 : index
    %c0_63 = arith.constant 0 : index
    %132 = vector.load %arg5[%c0_62, %c0_63] : memref<1x128xf32, #tpu.memory_space<vmem>>, vector<1x128xf32>
    %133 = vector.broadcast %132 : vector<1x128xf32> to vector<16x128xf32>
    %134 = arith.addf %131, %133 : vector<16x128xf32>
    %c0_64 = arith.constant 0 : index
    %c0_65 = arith.constant 0 : index
    %135 = vector.load %arg4[%c0_64, %c0_65] : memref<32x128xbf16, #tpu.memory_space<vmem>>, vector<32x128xbf16>
    %cst_66 = arith.constant dense<0.000000e+00> : vector<16x128xf32>
    %136 = tpu.matmul %99, %135, %cst_66 {dimension_numbers = #tpu.dot_dimension_numbers<[1], [0], [0], [1], [0, 0, 1, 1], [], []>} : vector<16x32xbf16>, vector<32x128xbf16>, vector<16x128xf32> -> vector<16x128xf32>
    %137 = arith.addf %134, %136 : vector<16x128xf32>
    %138 = vector.extract_strided_slice %137 {offsets = [0, 0], sizes = [16, 96], strides = [1, 1]} : vector<16x128xf32> to vector<16x96xf32>
    %139 = arith.negf %138 : vector<16x96xf32>
    %140 = math.exp %139 : vector<16x96xf32>
    %cst_67 = arith.constant 1.000000e+00 : f32
    %141 = vector.broadcast %cst_67 : f32 to vector<16x96xf32>
    %142 = arith.addf %141, %140 : vector<16x96xf32>
    %143 = arith.divf %141, %142 : vector<16x96xf32>
    %144 = vector.extract_strided_slice %137 {offsets = [0, 96], sizes = [16, 32], strides = [1, 1]} : vector<16x128xf32> to vector<16x32xf32>
    %145 = math.tanh %144 : vector<16x32xf32>
    %146 = vector.extract_strided_slice %143 {offsets = [0, 32], sizes = [16, 32], strides = [1, 1]} : vector<16x96xf32> to vector<16x32xf32>
    %147 = arith.mulf %146, %95 : vector<16x32xf32>
    %148 = vector.extract_strided_slice %143 {offsets = [0, 0], sizes = [16, 32], strides = [1, 1]} : vector<16x96xf32> to vector<16x32xf32>
    %149 = arith.mulf %148, %145 : vector<16x32xf32>
    %150 = arith.addf %147, %149 : vector<16x32xf32>
    %151 = vector.extract_strided_slice %143 {offsets = [0, 64], sizes = [16, 32], strides = [1, 1]} : vector<16x96xf32> to vector<16x32xf32>
    %152 = math.tanh %150 : vector<16x32xf32>
    %153 = arith.mulf %151, %152 : vector<16x32xf32>
    %154 = arith.truncf %153 : vector<16x32xf32> to vector<16x32xbf16>
    %c0_68 = arith.constant 0 : index
    %c0_69 = arith.constant 0 : index
    %c0_70 = arith.constant 0 : index
    %155 = vector.load %arg6[%c0_68, %c0_69, %c0_70] : memref<1x32x128xbf16, #tpu.memory_space<vmem>>, vector<1x32x128xbf16>
    %156 = vector.shape_cast %155 : vector<1x32x128xbf16> to vector<32x128xbf16>
    %cst_71 = arith.constant dense<0.000000e+00> : vector<16x128xf32>
    %157 = tpu.matmul %154, %156, %cst_71 {dimension_numbers = #tpu.dot_dimension_numbers<[1], [0], [0], [1], [0, 0, 1, 1], [], []>} : vector<16x32xbf16>, vector<32x128xbf16>, vector<16x128xf32> -> vector<16x128xf32>
    %c0_72 = arith.constant 0 : index
    %c0_73 = arith.constant 0 : index
    %c0_74 = arith.constant 0 : index
    %158 = vector.load %arg7[%c0_72, %c0_73, %c0_74] : memref<1x32x128xbf16, #tpu.memory_space<vmem>>, vector<1x32x128xbf16>
    %159 = vector.shape_cast %158 : vector<1x32x128xbf16> to vector<32x128xbf16>
    %cst_75 = arith.constant dense<0.000000e+00> : vector<16x128xf32>
    %160 = tpu.matmul %127, %159, %cst_75 {dimension_numbers = #tpu.dot_dimension_numbers<[1], [0], [0], [1], [0, 0, 1, 1], [], []>} : vector<16x32xbf16>, vector<32x128xbf16>, vector<16x128xf32> -> vector<16x128xf32>
    %161 = arith.addf %157, %160 : vector<16x128xf32>
    %c0_76 = arith.constant 0 : index
    %c0_77 = arith.constant 0 : index
    %c0_78 = arith.constant 0 : index
    %162 = vector.load %arg8[%c0_76, %c0_77, %c0_78] : memref<1x1x128xf32, #tpu.memory_space<vmem>>, vector<1x1x128xf32>
    %163 = vector.shape_cast %162 : vector<1x1x128xf32> to vector<1x128xf32>
    %164 = vector.broadcast %163 : vector<1x128xf32> to vector<16x128xf32>
    %165 = arith.addf %161, %164 : vector<16x128xf32>
    %166 = vector.extract_strided_slice %165 {offsets = [0, 0], sizes = [16, 96], strides = [1, 1]} : vector<16x128xf32> to vector<16x96xf32>
    %167 = arith.negf %166 : vector<16x96xf32>
    %168 = math.exp %167 : vector<16x96xf32>
    %cst_79 = arith.constant 1.000000e+00 : f32
    %169 = vector.broadcast %cst_79 : f32 to vector<16x96xf32>
    %170 = arith.addf %169, %168 : vector<16x96xf32>
    %171 = arith.divf %169, %170 : vector<16x96xf32>
    %172 = vector.extract_strided_slice %165 {offsets = [0, 96], sizes = [16, 32], strides = [1, 1]} : vector<16x128xf32> to vector<16x32xf32>
    %173 = math.tanh %172 : vector<16x32xf32>
    %174 = vector.extract_strided_slice %171 {offsets = [0, 32], sizes = [16, 32], strides = [1, 1]} : vector<16x96xf32> to vector<16x32xf32>
    %175 = arith.mulf %174, %123 : vector<16x32xf32>
    %176 = vector.extract_strided_slice %171 {offsets = [0, 0], sizes = [16, 32], strides = [1, 1]} : vector<16x96xf32> to vector<16x32xf32>
    %177 = arith.mulf %176, %173 : vector<16x32xf32>
    %178 = arith.addf %175, %177 : vector<16x32xf32>
    %179 = vector.extract_strided_slice %171 {offsets = [0, 64], sizes = [16, 32], strides = [1, 1]} : vector<16x96xf32> to vector<16x32xf32>
    %180 = math.tanh %178 : vector<16x32xf32>
    %181 = arith.mulf %179, %180 : vector<16x32xf32>
    %182 = arith.truncf %181 : vector<16x32xf32> to vector<16x32xbf16>
    %c3_i32 = arith.constant 3 : i32
    %183 = arith.index_cast %c3_i32 : i32 to index
    %c0_80 = arith.constant 0 : index
    %c0_81 = arith.constant 0 : index
    %184 = vector.load %arg14[%183, %c0_80, %c0_81] : memref<4x16x128xbf16, #tpu.memory_space<vmem>>, vector<1x16x128xbf16>
    %185 = vector.shape_cast %184 : vector<1x16x128xbf16> to vector<16x128xbf16>
    %186 = arith.extf %185 : vector<16x128xbf16> to vector<16x128xf32>
    %c0_82 = arith.constant 0 : index
    %c0_83 = arith.constant 0 : index
    %187 = vector.load %arg5[%c0_82, %c0_83] : memref<1x128xf32, #tpu.memory_space<vmem>>, vector<1x128xf32>
    %188 = vector.broadcast %187 : vector<1x128xf32> to vector<16x128xf32>
    %189 = arith.addf %186, %188 : vector<16x128xf32>
    %c0_84 = arith.constant 0 : index
    %c0_85 = arith.constant 0 : index
    %190 = vector.load %arg4[%c0_84, %c0_85] : memref<32x128xbf16, #tpu.memory_space<vmem>>, vector<32x128xbf16>
    %cst_86 = arith.constant dense<0.000000e+00> : vector<16x128xf32>
    %191 = tpu.matmul %154, %190, %cst_86 {dimension_numbers = #tpu.dot_dimension_numbers<[1], [0], [0], [1], [0, 0, 1, 1], [], []>} : vector<16x32xbf16>, vector<32x128xbf16>, vector<16x128xf32> -> vector<16x128xf32>
    %192 = arith.addf %189, %191 : vector<16x128xf32>
    %193 = vector.extract_strided_slice %192 {offsets = [0, 0], sizes = [16, 96], strides = [1, 1]} : vector<16x128xf32> to vector<16x96xf32>
    %194 = arith.negf %193 : vector<16x96xf32>
    %195 = math.exp %194 : vector<16x96xf32>
    %cst_87 = arith.constant 1.000000e+00 : f32
    %196 = vector.broadcast %cst_87 : f32 to vector<16x96xf32>
    %197 = arith.addf %196, %195 : vector<16x96xf32>
    %198 = arith.divf %196, %197 : vector<16x96xf32>
    %199 = vector.extract_strided_slice %192 {offsets = [0, 96], sizes = [16, 32], strides = [1, 1]} : vector<16x128xf32> to vector<16x32xf32>
    %200 = math.tanh %199 : vector<16x32xf32>
    %201 = vector.extract_strided_slice %198 {offsets = [0, 32], sizes = [16, 32], strides = [1, 1]} : vector<16x96xf32> to vector<16x32xf32>
    %202 = arith.mulf %201, %150 : vector<16x32xf32>
    %203 = vector.extract_strided_slice %198 {offsets = [0, 0], sizes = [16, 32], strides = [1, 1]} : vector<16x96xf32> to vector<16x32xf32>
    %204 = arith.mulf %203, %200 : vector<16x32xf32>
    %205 = arith.addf %202, %204 : vector<16x32xf32>
    %206 = vector.extract_strided_slice %198 {offsets = [0, 64], sizes = [16, 32], strides = [1, 1]} : vector<16x96xf32> to vector<16x32xf32>
    %207 = math.tanh %205 : vector<16x32xf32>
    %208 = arith.mulf %206, %207 : vector<16x32xf32>
    %209 = arith.truncf %208 : vector<16x32xf32> to vector<16x32xbf16>
    %c0_88 = arith.constant 0 : index
    %c0_89 = arith.constant 0 : index
    %c0_90 = arith.constant 0 : index
    %210 = vector.load %arg6[%c0_88, %c0_89, %c0_90] : memref<1x32x128xbf16, #tpu.memory_space<vmem>>, vector<1x32x128xbf16>
    %211 = vector.shape_cast %210 : vector<1x32x128xbf16> to vector<32x128xbf16>
    %cst_91 = arith.constant dense<0.000000e+00> : vector<16x128xf32>
    %212 = tpu.matmul %209, %211, %cst_91 {dimension_numbers = #tpu.dot_dimension_numbers<[1], [0], [0], [1], [0, 0, 1, 1], [], []>} : vector<16x32xbf16>, vector<32x128xbf16>, vector<16x128xf32> -> vector<16x128xf32>
    %c0_92 = arith.constant 0 : index
    %c0_93 = arith.constant 0 : index
    %c0_94 = arith.constant 0 : index
    %213 = vector.load %arg7[%c0_92, %c0_93, %c0_94] : memref<1x32x128xbf16, #tpu.memory_space<vmem>>, vector<1x32x128xbf16>
    %214 = vector.shape_cast %213 : vector<1x32x128xbf16> to vector<32x128xbf16>
    %cst_95 = arith.constant dense<0.000000e+00> : vector<16x128xf32>
    %215 = tpu.matmul %182, %214, %cst_95 {dimension_numbers = #tpu.dot_dimension_numbers<[1], [0], [0], [1], [0, 0, 1, 1], [], []>} : vector<16x32xbf16>, vector<32x128xbf16>, vector<16x128xf32> -> vector<16x128xf32>
    %216 = arith.addf %212, %215 : vector<16x128xf32>
    %c0_96 = arith.constant 0 : index
    %c0_97 = arith.constant 0 : index
    %c0_98 = arith.constant 0 : index
    %217 = vector.load %arg8[%c0_96, %c0_97, %c0_98] : memref<1x1x128xf32, #tpu.memory_space<vmem>>, vector<1x1x128xf32>
    %218 = vector.shape_cast %217 : vector<1x1x128xf32> to vector<1x128xf32>
    %219 = vector.broadcast %218 : vector<1x128xf32> to vector<16x128xf32>
    %220 = arith.addf %216, %219 : vector<16x128xf32>
    %221 = vector.extract_strided_slice %220 {offsets = [0, 0], sizes = [16, 96], strides = [1, 1]} : vector<16x128xf32> to vector<16x96xf32>
    %222 = arith.negf %221 : vector<16x96xf32>
    %223 = math.exp %222 : vector<16x96xf32>
    %cst_99 = arith.constant 1.000000e+00 : f32
    %224 = vector.broadcast %cst_99 : f32 to vector<16x96xf32>
    %225 = arith.addf %224, %223 : vector<16x96xf32>
    %226 = arith.divf %224, %225 : vector<16x96xf32>
    %227 = vector.extract_strided_slice %220 {offsets = [0, 96], sizes = [16, 32], strides = [1, 1]} : vector<16x128xf32> to vector<16x32xf32>
    %228 = math.tanh %227 : vector<16x32xf32>
    %229 = vector.extract_strided_slice %226 {offsets = [0, 32], sizes = [16, 32], strides = [1, 1]} : vector<16x96xf32> to vector<16x32xf32>
    %230 = arith.mulf %229, %178 : vector<16x32xf32>
    %231 = vector.extract_strided_slice %226 {offsets = [0, 0], sizes = [16, 32], strides = [1, 1]} : vector<16x96xf32> to vector<16x32xf32>
    %232 = arith.mulf %231, %228 : vector<16x32xf32>
    %233 = arith.addf %230, %232 : vector<16x32xf32>
    %234 = vector.extract_strided_slice %226 {offsets = [0, 64], sizes = [16, 32], strides = [1, 1]} : vector<16x96xf32> to vector<16x32xf32>
    %235 = math.tanh %233 : vector<16x32xf32>
    %236 = arith.mulf %234, %235 : vector<16x32xf32>
    %237 = arith.truncf %236 : vector<16x32xf32> to vector<16x32xbf16>
    %c4_i32 = arith.constant 4 : i32
    %c0_100 = arith.constant 0 : index
    %c0_101 = arith.constant 0 : index
    %c0_102 = arith.constant 0 : index
    %238 = vector.load %arg12[%c0_100, %c0_101, %c0_102] : memref<2x16x32xbf16, #tpu.memory_space<vmem>>, vector<1x16x32xbf16>
    %239 = vector.shape_cast %238 : vector<1x16x32xbf16> to vector<16x32xbf16>
    %240 = vector.shape_cast %209 : vector<16x32xbf16> to vector<1x16x32xbf16>
    tpu.vector_store %arg12[%c0_100, %c0_101, %c0_102], %240 {strides = array<i32>} : memref<2x16x32xbf16, #tpu.memory_space<vmem>>, vector<1x16x32xbf16>,
    %c0_103 = arith.constant 0 : index
    %c0_104 = arith.constant 0 : index
    %c0_105 = arith.constant 0 : index
    %241 = vector.load %arg13[%c0_103, %c0_104, %c0_105] : memref<2x16x32xf32, #tpu.memory_space<vmem>>, vector<1x16x32xf32>
    %242 = vector.shape_cast %241 : vector<1x16x32xf32> to vector<16x32xf32>
    %243 = vector.shape_cast %205 : vector<16x32xf32> to vector<1x16x32xf32>
    tpu.vector_store %arg13[%c0_103, %c0_104, %c0_105], %243 {strides = array<i32>} : memref<2x16x32xf32, #tpu.memory_space<vmem>>, vector<1x16x32xf32>,
    %c1_106 = arith.constant 1 : index
    %c0_107 = arith.constant 0 : index
    %c0_108 = arith.constant 0 : index
    %244 = vector.load %arg12[%c1_106, %c0_107, %c0_108] : memref<2x16x32xbf16, #tpu.memory_space<vmem>>, vector<1x16x32xbf16>
    %245 = vector.shape_cast %244 : vector<1x16x32xbf16> to vector<16x32xbf16>
    %246 = vector.shape_cast %237 : vector<16x32xbf16> to vector<1x16x32xbf16>
    tpu.vector_store %arg12[%c1_106, %c0_107, %c0_108], %246 {strides = array<i32>} : memref<2x16x32xbf16, #tpu.memory_space<vmem>>, vector<1x16x32xbf16>,
    %c1_109 = arith.constant 1 : index
    %c0_110 = arith.constant 0 : index
    %c0_111 = arith.constant 0 : index
    %247 = vector.load %arg13[%c1_109, %c0_110, %c0_111] : memref<2x16x32xf32, #tpu.memory_space<vmem>>, vector<1x16x32xf32>
    %248 = vector.shape_cast %247 : vector<1x16x32xf32> to vector<16x32xf32>
    %249 = vector.shape_cast %233 : vector<16x32xf32> to vector<1x16x32xf32>
    tpu.vector_store %arg13[%c1_109, %c0_110, %c0_111], %249 {strides = array<i32>} : memref<2x16x32xf32, #tpu.memory_space<vmem>>, vector<1x16x32xf32>,
    %c1_i32_112 = arith.constant 1 : i32
    %250 = arith.cmpi eq, %arg1, %c1_i32_112 : i32
    %251 = arith.extui %250 : i1 to i32
    %c0_i32_113 = arith.constant 0 : i32
    %252 = arith.cmpi ne, %251, %c0_i32_113 : i32
    scf.if %252 {
      %253 = arith.extf %237 : vector<16x32xbf16> to vector<16x32xf32>
      %c0_114 = arith.constant 0 : index
      %c0_115 = arith.constant 0 : index
      %254 = vector.load %arg9[%c0_114, %c0_115] : memref<1x32xf32, #tpu.memory_space<vmem>>, vector<1x32xf32>
      %255 = vector.broadcast %254 : vector<1x32xf32> to vector<16x32xf32>
      %256 = arith.mulf %253, %255 : vector<16x32xf32>
      %cst_116 = arith.constant dense<0.000000e+00> : vector<16xf32>
      %257 = vector.multi_reduction <add>, %256, %cst_116 [1] : vector<16x32xf32> to vector<16xf32>
      %258 = vector.shape_cast %257 : vector<16xf32> to vector<16x1xf32>
      %c0_117 = arith.constant 0 : index
      %c0_118 = arith.constant 0 : index
      %259 = vector.load %arg10[%c0_117, %c0_118] : memref<1x1xf32, #tpu.memory_space<vmem>>, vector<1x1xf32>
      %260 = vector.broadcast %259 : vector<1x1xf32> to vector<16x1xf32>
      %261 = arith.addf %258, %260 : vector<16x1xf32>
      %262 = arith.negf %261 : vector<16x1xf32>
      %263 = math.exp %262 : vector<16x1xf32>
      %cst_119 = arith.constant 1.000000e+00 : f32
      %264 = vector.broadcast %cst_119 : f32 to vector<16x1xf32>
      %265 = arith.addf %264, %263 : vector<16x1xf32>
      %266 = arith.divf %264, %265 : vector<16x1xf32>
      %c0_120 = arith.constant 0 : index
      %c0_121 = arith.constant 0 : index
      %267 = vector.load %arg11[%c0_120, %c0_121] : memref<16x1xf32, #tpu.memory_space<vmem>>, vector<16x1xf32>
      tpu.vector_store %arg11[%c0_120, %c0_121], %266 {strides = array<i32>} : memref<16x1xf32, #tpu.memory_space<vmem>>, vector<16x1xf32>,
    } else {
    }
    return
  }
  func.func @transform_0(%arg0: i32, %arg1: i32) -> (i32, i32, i32) {
    %c0_i32 = arith.constant 0 : i32
    %c0_i32_0 = arith.constant 0 : i32
    return %arg1, %arg0, %c0_i32 : i32, i32, i32
  }
  func.func @transform_1(%arg0: i32, %arg1: i32) -> (i32, i32) {
    %c0_i32 = arith.constant 0 : i32
    %c0_i32_0 = arith.constant 0 : i32
    %c0_i32_1 = arith.constant 0 : i32
    return %c0_i32, %c0_i32_0 : i32, i32
  }
  func.func @transform_2(%arg0: i32, %arg1: i32) -> (i32, i32) {
    %c0_i32 = arith.constant 0 : i32
    %c0_i32_0 = arith.constant 0 : i32
    %c0_i32_1 = arith.constant 0 : i32
    return %c0_i32, %c0_i32_0 : i32, i32
  }
  func.func @transform_3(%arg0: i32, %arg1: i32) -> (i32, i32) {
    %c0_i32 = arith.constant 0 : i32
    %c0_i32_0 = arith.constant 0 : i32
    %c0_i32_1 = arith.constant 0 : i32
    return %c0_i32, %c0_i32_0 : i32, i32
  }
  func.func @transform_4(%arg0: i32, %arg1: i32) -> (i32, i32, i32) {
    %c0_i32 = arith.constant 0 : i32
    %c0_i32_0 = arith.constant 0 : i32
    %c0_i32_1 = arith.constant 0 : i32
    %c0_i32_2 = arith.constant 0 : i32
    return %c0_i32, %c0_i32_0, %c0_i32_1 : i32, i32, i32
  }
  func.func @transform_5(%arg0: i32, %arg1: i32) -> (i32, i32, i32) {
    %c0_i32 = arith.constant 0 : i32
    %c0_i32_0 = arith.constant 0 : i32
    %c0_i32_1 = arith.constant 0 : i32
    %c0_i32_2 = arith.constant 0 : i32
    return %c0_i32, %c0_i32_0, %c0_i32_1 : i32, i32, i32
  }
  func.func @transform_6(%arg0: i32, %arg1: i32) -> (i32, i32, i32) {
    %c0_i32 = arith.constant 0 : i32
    %c0_i32_0 = arith.constant 0 : i32
    %c0_i32_1 = arith.constant 0 : i32
    %c0_i32_2 = arith.constant 0 : i32
    return %c0_i32, %c0_i32_0, %c0_i32_1 : i32, i32, i32
  }
  func.func @transform_7(%arg0: i32, %arg1: i32) -> (i32, i32) {
    %c0_i32 = arith.constant 0 : i32
    %c0_i32_0 = arith.constant 0 : i32
    %c0_i32_1 = arith.constant 0 : i32
    return %c0_i32, %c0_i32_0 : i32, i32
  }
  func.func @transform_8(%arg0: i32, %arg1: i32) -> (i32, i32) {
    %c0_i32 = arith.constant 0 : i32
    %c0_i32_0 = arith.constant 0 : i32
    %c0_i32_1 = arith.constant 0 : i32
    return %c0_i32, %c0_i32_0 : i32, i32
  }
  func.func @transform_9(%arg0: i32, %arg1: i32) -> (i32, i32) {
    %c0_i32 = arith.constant 0 : i32
    %c0_i32_0 = arith.constant 0 : i32
    return %arg0, %c0_i32 : i32, i32
  }
}

module attributes {stable_mosaic.version = 11 : i64} {
  func.func @kernel(%arg0: i32, %arg1: i32, %arg2: memref<4x16x32xbf16, #tpu.memory_space<vmem>>, %arg3: memref<32x128xbf16, #tpu.memory_space<vmem>>, %arg4: memref<32x128xbf16, #tpu.memory_space<vmem>>, %arg5: memref<1x128xf32, #tpu.memory_space<vmem>>, %arg6: memref<1x32x128xbf16, #tpu.memory_space<vmem>>, %arg7: memref<1x32x128xbf16, #tpu.memory_space<vmem>>, %arg8: memref<1x1x128xf32, #tpu.memory_space<vmem>>, %arg9: memref<1x32xf32, #tpu.memory_space<vmem>>, %arg10: memref<1x1xf32, #tpu.memory_space<vmem>>, %arg11: memref<16x1xf32, #tpu.memory_space<vmem>>, %arg12: memref<2x16x32xbf16, #tpu.memory_space<vmem>>, %arg13: memref<2x16x32xf32, #tpu.memory_space<vmem>>, %arg14: memref<4x16x128xbf16, #tpu.memory_space<vmem>>) attributes {dimension_semantics = [#tpu.dimension_semantics<parallel>, #tpu.dimension_semantics<arbitrary>], iteration_bounds = array<i64: 1, 2>, scalar_prefetch = 0 : i64, scratch_operands = 3 : i64, tpu.core_type = #tpu.core_type<tc>, window_params = [{transform_indices = @transform_0, window_bounds = array<i64: 4, 16, 32>}, {pipeline_mode = #tpu.pipeline_mode<synchronous>, transform_indices = @transform_1, window_bounds = array<i64: 32, 128>}, {pipeline_mode = #tpu.pipeline_mode<synchronous>, transform_indices = @transform_2, window_bounds = array<i64: 32, 128>}, {pipeline_mode = #tpu.pipeline_mode<synchronous>, transform_indices = @transform_3, window_bounds = array<i64: 1, 128>}, {pipeline_mode = #tpu.pipeline_mode<synchronous>, transform_indices = @transform_4, window_bounds = array<i64: 1, 32, 128>}, {pipeline_mode = #tpu.pipeline_mode<synchronous>, transform_indices = @transform_5, window_bounds = array<i64: 1, 32, 128>}, {pipeline_mode = #tpu.pipeline_mode<synchronous>, transform_indices = @transform_6, window_bounds = array<i64: 1, 1, 128>}, {pipeline_mode = #tpu.pipeline_mode<synchronous>, transform_indices = @transform_7, window_bounds = array<i64: 1, 32>}, {pipeline_mode = #tpu.pipeline_mode<synchronous>, transform_indices = @transform_8, window_bounds = array<i64: 1, 1>}, {transform_indices = @transform_9, window_bounds = array<i64: 16, 1>}]} {
    %c0_i32 = arith.constant 0 : i32
    %0 = arith.cmpi eq, %arg1, %c0_i32 : i32
    %1 = arith.extui %0 : i1 to i32
    %c0_i32_0 = arith.constant 0 : i32
    %2 = arith.cmpi ne, %1, %c0_i32_0 : i32
    scf.if %2 {
      %cst_114 = arith.constant 0.000000e+00 : bf16
      %253 = vector.broadcast %cst_114 : bf16 to vector<2x16x32xbf16>
      %c0_115 = arith.constant 0 : index
      %c0_116 = arith.constant 0 : index
      %c0_117 = arith.constant 0 : index
      %254 = vector.load %arg12[%c0_115, %c0_116, %c0_117] : memref<2x16x32xbf16, #tpu.memory_space<vmem>>, vector<2x16x32xbf16>
      tpu.vector_store %arg12[%c0_115, %c0_116, %c0_117], %253 {strides = array<i32>} : memref<2x16x32xbf16, #tpu.memory_space<vmem>>, vector<2x16x32xbf16>,
      %cst_118 = arith.constant 0.000000e+00 : f32
      %255 = vector.broadcast %cst_118 : f32 to vector<2x16x32xf32>
      %c0_119 = arith.constant 0 : index
      %c0_120 = arith.constant 0 : index
      %c0_121 = arith.constant 0 : index
      %256 = vector.load %arg13[%c0_119, %c0_120, %c0_121] : memref<2x16x32xf32, #tpu.memory_space<vmem>>, vector<2x16x32xf32>
      tpu.vector_store %arg13[%c0_119, %c0_120, %c0_121], %255 {strides = array<i32>} : memref<2x16x32xf32, #tpu.memory_space<vmem>>, vector<2x16x32xf32>,
    } else {
    }
    %c0 = arith.constant 0 : index
    %c0_1 = arith.constant 0 : index
    %c0_2 = arith.constant 0 : index
    %3 = vector.load %arg2[%c0, %c0_1, %c0_2] : memref<4x16x32xbf16, #tpu.memory_space<vmem>>, vector<4x16x32xbf16>
    %4 = vector.shape_cast %3 : vector<4x16x32xbf16> to vector<64x32xbf16>
    %c0_3 = arith.constant 0 : index
    %c0_4 = arith.constant 0 : index
    %5 = vector.load %arg3[%c0_3, %c0_4] : memref<32x128xbf16, #tpu.memory_space<vmem>>, vector<32x128xbf16>
    %cst = arith.constant dense<0.000000e+00> : vector<64x128xf32>
    %6 = tpu.matmul %4, %5, %cst {dimension_numbers = #tpu.dot_dimension_numbers<[1], [0], [0], [1], [0, 0, 1, 1], [], []>} : vector<64x32xbf16>, vector<32x128xbf16>, vector<64x128xf32> -> vector<64x128xf32>
    %7 = arith.truncf %6 : vector<64x128xf32> to vector<64x128xbf16>
    %8 = vector.shape_cast %7 : vector<64x128xbf16> to vector<4x16x128xbf16>
    %c0_5 = arith.constant 0 : index
    %c0_6 = arith.constant 0 : index
    %c0_7 = arith.constant 0 : index
    %9 = vector.load %arg14[%c0_5, %c0_6, %c0_7] : memref<4x16x128xbf16, #tpu.memory_space<vmem>>, vector<4x16x128xbf16>
    tpu.vector_store %arg14[%c0_5, %c0_6, %c0_7], %8 {strides = array<i32>} : memref<4x16x128xbf16, #tpu.memory_space<vmem>>, vector<4x16x128xbf16>,
    %c0_8 = arith.constant 0 : index
    %c0_9 = arith.constant 0 : index
    %c0_10 = arith.constant 0 : index
    %10 = vector.load %arg12[%c0_8, %c0_9, %c0_10] : memref<2x16x32xbf16, #tpu.memory_space<vmem>>, vector<1x16x32xbf16>
    %11 = vector.shape_cast %10 : vector<1x16x32xbf16> to vector<16x32xbf16>
    %c1 = arith.constant 1 : index
    %c0_11 = arith.constant 0 : index
    %c0_12 = arith.constant 0 : index
    %12 = vector.load %arg12[%c1, %c0_11, %c0_12] : memref<2x16x32xbf16, #tpu.memory_space<vmem>>, vector<1x16x32xbf16>
    %13 = vector.shape_cast %12 : vector<1x16x32xbf16> to vector<16x32xbf16>
    %c0_13 = arith.constant 0 : index
    %c0_14 = arith.constant 0 : index
    %c0_15 = arith.constant 0 : index
    %14 = vector.load %arg13[%c0_13, %c0_14, %c0_15] : memref<2x16x32xf32, #tpu.memory_space<vmem>>, vector<1x16x32xf32>
    %15 = vector.shape_cast %14 : vector<1x16x32xf32> to vector<16x32xf32>
    %c1_16 = arith.constant 1 : index
    %c0_17 = arith.constant 0 : index
    %c0_18 = arith.constant 0 : index
    %16 = vector.load %arg13[%c1_16, %c0_17, %c0_18] : memref<2x16x32xf32, #tpu.memory_space<vmem>>, vector<1x16x32xf32>
    %17 = vector.shape_cast %16 : vector<1x16x32xf32> to vector<16x32xf32>
    %c0_i32_19 = arith.constant 0 : i32
    %18 = arith.index_cast %c0_i32_19 : i32 to index
    %c0_20 = arith.constant 0 : index
    %c0_21 = arith.constant 0 : index
    %19 = vector.load %arg14[%18, %c0_20, %c0_21] : memref<4x16x128xbf16, #tpu.memory_space<vmem>>, vector<1x16x128xbf16>
    %20 = vector.shape_cast %19 : vector<1x16x128xbf16> to vector<16x128xbf16>
    %21 = arith.extf %20 : vector<16x128xbf16> to vector<16x128xf32>
    %c0_22 = arith.constant 0 : index
    %c0_23 = arith.constant 0 : index
    %22 = vector.load %arg5[%c0_22, %c0_23] : memref<1x128xf32, #tpu.memory_space<vmem>>, vector<1x128xf32>
    %23 = vector.broadcast %22 : vector<1x128xf32> to vector<16x128xf32>
    %24 = arith.addf %21, %23 : vector<16x128xf32>
    %c0_24 = arith.constant 0 : index
    %c0_25 = arith.constant 0 : index
    %25 = vector.load %arg4[%c0_24, %c0_25] : memref<32x128xbf16, #tpu.memory_space<vmem>>, vector<32x128xbf16>
    %cst_26 = arith.constant dense<0.000000e+00> : vector<16x128xf32>
    %26 = tpu.matmul %11, %25, %cst_26 {dimension_numbers = #tpu.dot_dimension_numbers<[1], [0], [0], [1], [0, 0, 1, 1], [], []>} : vector<16x32xbf16>, vector<32x128xbf16>, vector<16x128xf32> -> vector<16x128xf32>
    %27 = arith.addf %24, %26 : vector<16x128xf32>
    %28 = vector.extract_strided_slice %27 {offsets = [0, 0], sizes = [16, 96], strides = [1, 1]} : vector<16x128xf32> to vector<16x96xf32>
    %29 = arith.negf %28 : vector<16x96xf32>
    %30 = math.exp %29 : vector<16x96xf32>
    %cst_27 = arith.constant 1.000000e+00 : f32
    %31 = vector.broadcast %cst_27 : f32 to vector<16x96xf32>
    %32 = arith.addf %31, %30 : vector<16x96xf32>
    %33 = arith.divf %31, %32 : vector<16x96xf32>
    %34 = vector.extract_strided_slice %27 {offsets = [0, 96], sizes = [16, 32], strides = [1, 1]} : vector<16x128xf32> to vector<16x32xf32>
    %35 = math.tanh %34 : vector<16x32xf32>
    %36 = vector.extract_strided_slice %33 {offsets = [0, 32], sizes = [16, 32], strides = [1, 1]} : vector<16x96xf32> to vector<16x32xf32>
    %37 = arith.mulf %36, %15 : vector<16x32xf32>
    %38 = vector.extract_strided_slice %33 {offsets = [0, 0], sizes = [16, 32], strides = [1, 1]} : vector<16x96xf32> to vector<16x32xf32>
    %39 = arith.mulf %38, %35 : vector<16x32xf32>
    %40 = arith.addf %37, %39 : vector<16x32xf32>
    %41 = vector.extract_strided_slice %33 {offsets = [0, 64], sizes = [16, 32], strides = [1, 1]} : vector<16x96xf32> to vector<16x32xf32>
    %42 = math.tanh %40 : vector<16x32xf32>
    %43 = arith.mulf %41, %42 : vector<16x32xf32>
    %44 = arith.truncf %43 : vector<16x32xf32> to vector<16x32xbf16>
    %c0_28 = arith.constant 0 : index
    %c0_29 = arith.constant 0 : index
    %c0_30 = arith.constant 0 : index
    %45 = vector.load %arg6[%c0_28, %c0_29, %c0_30] : memref<1x32x128xbf16, #tpu.memory_space<vmem>>, vector<1x32x128xbf16>
    %46 = vector.shape_cast %45 : vector<1x32x128xbf16> to vector<32x128xbf16>
    %cst_31 = arith.constant dense<0.000000e+00> : vector<16x128xf32>
    %47 = tpu.matmul %44, %46, %cst_31 {dimension_numbers = #tpu.dot_dimension_numbers<[1], [0], [0], [1], [0, 0, 1, 1], [], []>} : vector<16x32xbf16>, vector<32x128xbf16>, vector<16x128xf32> -> vector<16x128xf32>
    %c0_32 = arith.constant 0 : index
    %c0_33 = arith.constant 0 : index
    %c0_34 = arith.constant 0 : index
    %48 = vector.load %arg7[%c0_32, %c0_33, %c0_34] : memref<1x32x128xbf16, #tpu.memory_space<vmem>>, vector<1x32x128xbf16>
    %49 = vector.shape_cast %48 : vector<1x32x128xbf16> to vector<32x128xbf16>
    %cst_35 = arith.constant dense<0.000000e+00> : vector<16x128xf32>
    %50 = tpu.matmul %13, %49, %cst_35 {dimension_numbers = #tpu.dot_dimension_numbers<[1], [0], [0], [1], [0, 0, 1, 1], [], []>} : vector<16x32xbf16>, vector<32x128xbf16>, vector<16x128xf32> -> vector<16x128xf32>
    %51 = arith.addf %47, %50 : vector<16x128xf32>
    %c0_36 = arith.constant 0 : index
    %c0_37 = arith.constant 0 : index
    %c0_38 = arith.constant 0 : index
    %52 = vector.load %arg8[%c0_36, %c0_37, %c0_38] : memref<1x1x128xf32, #tpu.memory_space<vmem>>, vector<1x1x128xf32>
    %53 = vector.shape_cast %52 : vector<1x1x128xf32> to vector<1x128xf32>
    %54 = vector.broadcast %53 : vector<1x128xf32> to vector<16x128xf32>
    %55 = arith.addf %51, %54 : vector<16x128xf32>
    %56 = vector.extract_strided_slice %55 {offsets = [0, 0], sizes = [16, 96], strides = [1, 1]} : vector<16x128xf32> to vector<16x96xf32>
    %57 = arith.negf %56 : vector<16x96xf32>
    %58 = math.exp %57 : vector<16x96xf32>
    %cst_39 = arith.constant 1.000000e+00 : f32
    %59 = vector.broadcast %cst_39 : f32 to vector<16x96xf32>
    %60 = arith.addf %59, %58 : vector<16x96xf32>
    %61 = arith.divf %59, %60 : vector<16x96xf32>
    %62 = vector.extract_strided_slice %55 {offsets = [0, 96], sizes = [16, 32], strides = [1, 1]} : vector<16x128xf32> to vector<16x32xf32>
    %63 = math.tanh %62 : vector<16x32xf32>
    %64 = vector.extract_strided_slice %61 {offsets = [0, 32], sizes = [16, 32], strides = [1, 1]} : vector<16x96xf32> to vector<16x32xf32>
    %65 = arith.mulf %64, %17 : vector<16x32xf32>
    %66 = vector.extract_strided_slice %61 {offsets = [0, 0], sizes = [16, 32], strides = [1, 1]} : vector<16x96xf32> to vector<16x32xf32>
    %67 = arith.mulf %66, %63 : vector<16x32xf32>
    %68 = arith.addf %65, %67 : vector<16x32xf32>
    %69 = vector.extract_strided_slice %61 {offsets = [0, 64], sizes = [16, 32], strides = [1, 1]} : vector<16x96xf32> to vector<16x32xf32>
    %70 = math.tanh %68 : vector<16x32xf32>
    %71 = arith.mulf %69, %70 : vector<16x32xf32>
    %72 = arith.truncf %71 : vector<16x32xf32> to vector<16x32xbf16>
    %c1_i32 = arith.constant 1 : i32
    %73 = arith.index_cast %c1_i32 : i32 to index
    %c0_40 = arith.constant 0 : index
    %c0_41 = arith.constant 0 : index
    %74 = vector.load %arg14[%73, %c0_40, %c0_41] : memref<4x16x128xbf16, #tpu.memory_space<vmem>>, vector<1x16x128xbf16>
    %75 = vector.shape_cast %74 : vector<1x16x128xbf16> to vector<16x128xbf16>
    %76 = arith.extf %75 : vector<16x128xbf16> to vector<16x128xf32>
    %c0_42 = arith.constant 0 : index
    %c0_43 = arith.constant 0 : index
    %77 = vector.load %arg5[%c0_42, %c0_43] : memref<1x128xf32, #tpu.memory_space<vmem>>, vector<1x128xf32>
    %78 = vector.broadcast %77 : vector<1x128xf32> to vector<16x128xf32>
    %79 = arith.addf %76, %78 : vector<16x128xf32>
    %c0_44 = arith.constant 0 : index
    %c0_45 = arith.constant 0 : index
    %80 = vector.load %arg4[%c0_44, %c0_45] : memref<32x128xbf16, #tpu.memory_space<vmem>>, vector<32x128xbf16>
    %cst_46 = arith.constant dense<0.000000e+00> : vector<16x128xf32>
    %81 = tpu.matmul %44, %80, %cst_46 {dimension_numbers = #tpu.dot_dimension_numbers<[1], [0], [0], [1], [0, 0, 1, 1], [], []>} : vector<16x32xbf16>, vector<32x128xbf16>, vector<16x128xf32> -> vector<16x128xf32>
    %82 = arith.addf %79, %81 : vector<16x128xf32>
    %83 = vector.extract_strided_slice %82 {offsets = [0, 0], sizes = [16, 96], strides = [1, 1]} : vector<16x128xf32> to vector<16x96xf32>
    %84 = arith.negf %83 : vector<16x96xf32>
    %85 = math.exp %84 : vector<16x96xf32>
    %cst_47 = arith.constant 1.000000e+00 : f32
    %86 = vector.broadcast %cst_47 : f32 to vector<16x96xf32>
    %87 = arith.addf %86, %85 : vector<16x96xf32>
    %88 = arith.divf %86, %87 : vector<16x96xf32>
    %89 = vector.extract_strided_slice %82 {offsets = [0, 96], sizes = [16, 32], strides = [1, 1]} : vector<16x128xf32> to vector<16x32xf32>
    %90 = math.tanh %89 : vector<16x32xf32>
    %91 = vector.extract_strided_slice %88 {offsets = [0, 32], sizes = [16, 32], strides = [1, 1]} : vector<16x96xf32> to vector<16x32xf32>
    %92 = arith.mulf %91, %40 : vector<16x32xf32>
    %93 = vector.extract_strided_slice %88 {offsets = [0, 0], sizes = [16, 32], strides = [1, 1]} : vector<16x96xf32> to vector<16x32xf32>
    %94 = arith.mulf %93, %90 : vector<16x32xf32>
    %95 = arith.addf %92, %94 : vector<16x32xf32>
    %96 = vector.extract_strided_slice %88 {offsets = [0, 64], sizes = [16, 32], strides = [1, 1]} : vector<16x96xf32> to vector<16x32xf32>
    %97 = math.tanh %95 : vector<16x32xf32>
    %98 = arith.mulf %96, %97 : vector<16x32xf32>
    %99 = arith.truncf %98 : vector<16x32xf32> to vector<16x32xbf16>
    %c0_48 = arith.constant 0 : index
    %c0_49 = arith.constant 0 : index
    %c0_50 = arith.constant 0 : index
    %100 = vector.load %arg6[%c0_48, %c0_49, %c0_50] : memref<1x32x128xbf16, #tpu.memory_space<vmem>>, vector<1x32x128xbf16>
    %101 = vector.shape_cast %100 : vector<1x32x128xbf16> to vector<32x128xbf16>
    %cst_51 = arith.constant dense<0.000000e+00> : vector<16x128xf32>
    %102 = tpu.matmul %99, %101, %cst_51 {dimension_numbers = #tpu.dot_dimension_numbers<[1], [0], [0], [1], [0, 0, 1, 1], [], []>} : vector<16x32xbf16>, vector<32x128xbf16>, vector<16x128xf32> -> vector<16x128xf32>
    %c0_52 = arith.constant 0 : index
    %c0_53 = arith.constant 0 : index
    %c0_54 = arith.constant 0 : index
    %103 = vector.load %arg7[%c0_52, %c0_53, %c0_54] : memref<1x32x128xbf16, #tpu.memory_space<vmem>>, vector<1x32x128xbf16>
    %104 = vector.shape_cast %103 : vector<1x32x128xbf16> to vector<32x128xbf16>
    %cst_55 = arith.constant dense<0.000000e+00> : vector<16x128xf32>
    %105 = tpu.matmul %72, %104, %cst_55 {dimension_numbers = #tpu.dot_dimension_numbers<[1], [0], [0], [1], [0, 0, 1, 1], [], []>} : vector<16x32xbf16>, vector<32x128xbf16>, vector<16x128xf32> -> vector<16x128xf32>
    %106 = arith.addf %102, %105 : vector<16x128xf32>
    %c0_56 = arith.constant 0 : index
    %c0_57 = arith.constant 0 : index
    %c0_58 = arith.constant 0 : index
    %107 = vector.load %arg8[%c0_56, %c0_57, %c0_58] : memref<1x1x128xf32, #tpu.memory_space<vmem>>, vector<1x1x128xf32>
    %108 = vector.shape_cast %107 : vector<1x1x128xf32> to vector<1x128xf32>
    %109 = vector.broadcast %108 : vector<1x128xf32> to vector<16x128xf32>
    %110 = arith.addf %106, %109 : vector<16x128xf32>
    %111 = vector.extract_strided_slice %110 {offsets = [0, 0], sizes = [16, 96], strides = [1, 1]} : vector<16x128xf32> to vector<16x96xf32>
    %112 = arith.negf %111 : vector<16x96xf32>
    %113 = math.exp %112 : vector<16x96xf32>
    %cst_59 = arith.constant 1.000000e+00 : f32
    %114 = vector.broadcast %cst_59 : f32 to vector<16x96xf32>
    %115 = arith.addf %114, %113 : vector<16x96xf32>
    %116 = arith.divf %114, %115 : vector<16x96xf32>
    %117 = vector.extract_strided_slice %110 {offsets = [0, 96], sizes = [16, 32], strides = [1, 1]} : vector<16x128xf32> to vector<16x32xf32>
    %118 = math.tanh %117 : vector<16x32xf32>
    %119 = vector.extract_strided_slice %116 {offsets = [0, 32], sizes = [16, 32], strides = [1, 1]} : vector<16x96xf32> to vector<16x32xf32>
    %120 = arith.mulf %119, %68 : vector<16x32xf32>
    %121 = vector.extract_strided_slice %116 {offsets = [0, 0], sizes = [16, 32], strides = [1, 1]} : vector<16x96xf32> to vector<16x32xf32>
    %122 = arith.mulf %121, %118 : vector<16x32xf32>
    %123 = arith.addf %120, %122 : vector<16x32xf32>
    %124 = vector.extract_strided_slice %116 {offsets = [0, 64], sizes = [16, 32], strides = [1, 1]} : vector<16x96xf32> to vector<16x32xf32>
    %125 = math.tanh %123 : vector<16x32xf32>
    %126 = arith.mulf %124, %125 : vector<16x32xf32>
    %127 = arith.truncf %126 : vector<16x32xf32> to vector<16x32xbf16>
    %c2_i32 = arith.constant 2 : i32
    %128 = arith.index_cast %c2_i32 : i32 to index
    %c0_60 = arith.constant 0 : index
    %c0_61 = arith.constant 0 : index
    %129 = vector.load %arg14[%128, %c0_60, %c0_61] : memref<4x16x128xbf16, #tpu.memory_space<vmem>>, vector<1x16x128xbf16>
    %130 = vector.shape_cast %129 : vector<1x16x128xbf16> to vector<16x128xbf16>
    %131 = arith.extf %130 : vector<16x128xbf16> to vector<16x128xf32>
    %c0_62 = arith.constant 0 : index
    %c0_63 = arith.constant 0 : index
    %132 = vector.load %arg5[%c0_62, %c0_63] : memref<1x128xf32, #tpu.memory_space<vmem>>, vector<1x128xf32>
    %133 = vector.broadcast %132 : vector<1x128xf32> to vector<16x128xf32>
    %134 = arith.addf %131, %133 : vector<16x128xf32>
    %c0_64 = arith.constant 0 : index
    %c0_65 = arith.constant 0 : index
    %135 = vector.load %arg4[%c0_64, %c0_65] : memref<32x128xbf16, #tpu.memory_space<vmem>>, vector<32x128xbf16>
    %cst_66 = arith.constant dense<0.000000e+00> : vector<16x128xf32>
    %136 = tpu.matmul %99, %135, %cst_66 {dimension_numbers = #tpu.dot_dimension_numbers<[1], [0], [0], [1], [0, 0, 1, 1], [], []>} : vector<16x32xbf16>, vector<32x128xbf16>, vector<16x128xf32> -> vector<16x128xf32>
    %137 = arith.addf %134, %136 : vector<16x128xf32>
    %138 = vector.extract_strided_slice %137 {offsets = [0, 0], sizes = [16, 96], strides = [1, 1]} : vector<16x128xf32> to vector<16x96xf32>
    %139 = arith.negf %138 : vector<16x96xf32>
    %140 = math.exp %139 : vector<16x96xf32>
    %cst_67 = arith.constant 1.000000e+00 : f32
    %141 = vector.broadcast %cst_67 : f32 to vector<16x96xf32>
    %142 = arith.addf %141, %140 : vector<16x96xf32>
    %143 = arith.divf %141, %142 : vector<16x96xf32>
    %144 = vector.extract_strided_slice %137 {offsets = [0, 96], sizes = [16, 32], strides = [1, 1]} : vector<16x128xf32> to vector<16x32xf32>
    %145 = math.tanh %144 : vector<16x32xf32>
    %146 = vector.extract_strided_slice %143 {offsets = [0, 32], sizes = [16, 32], strides = [1, 1]} : vector<16x96xf32> to vector<16x32xf32>
    %147 = arith.mulf %146, %95 : vector<16x32xf32>
    %148 = vector.extract_strided_slice %143 {offsets = [0, 0], sizes = [16, 32], strides = [1, 1]} : vector<16x96xf32> to vector<16x32xf32>
    %149 = arith.mulf %148, %145 : vector<16x32xf32>
    %150 = arith.addf %147, %149 : vector<16x32xf32>
    %151 = vector.extract_strided_slice %143 {offsets = [0, 64], sizes = [16, 32], strides = [1, 1]} : vector<16x96xf32> to vector<16x32xf32>
    %152 = math.tanh %150 : vector<16x32xf32>
    %153 = arith.mulf %151, %152 : vector<16x32xf32>
    %154 = arith.truncf %153 : vector<16x32xf32> to vector<16x32xbf16>
    %c0_68 = arith.constant 0 : index
    %c0_69 = arith.constant 0 : index
    %c0_70 = arith.constant 0 : index
    %155 = vector.load %arg6[%c0_68, %c0_69, %c0_70] : memref<1x32x128xbf16, #tpu.memory_space<vmem>>, vector<1x32x128xbf16>
    %156 = vector.shape_cast %155 : vector<1x32x128xbf16> to vector<32x128xbf16>
    %cst_71 = arith.constant dense<0.000000e+00> : vector<16x128xf32>
    %157 = tpu.matmul %154, %156, %cst_71 {dimension_numbers = #tpu.dot_dimension_numbers<[1], [0], [0], [1], [0, 0, 1, 1], [], []>} : vector<16x32xbf16>, vector<32x128xbf16>, vector<16x128xf32> -> vector<16x128xf32>
    %c0_72 = arith.constant 0 : index
    %c0_73 = arith.constant 0 : index
    %c0_74 = arith.constant 0 : index
    %158 = vector.load %arg7[%c0_72, %c0_73, %c0_74] : memref<1x32x128xbf16, #tpu.memory_space<vmem>>, vector<1x32x128xbf16>
    %159 = vector.shape_cast %158 : vector<1x32x128xbf16> to vector<32x128xbf16>
    %cst_75 = arith.constant dense<0.000000e+00> : vector<16x128xf32>
    %160 = tpu.matmul %127, %159, %cst_75 {dimension_numbers = #tpu.dot_dimension_numbers<[1], [0], [0], [1], [0, 0, 1, 1], [], []>} : vector<16x32xbf16>, vector<32x128xbf16>, vector<16x128xf32> -> vector<16x128xf32>
    %161 = arith.addf %157, %160 : vector<16x128xf32>
    %c0_76 = arith.constant 0 : index
    %c0_77 = arith.constant 0 : index
    %c0_78 = arith.constant 0 : index
    %162 = vector.load %arg8[%c0_76, %c0_77, %c0_78] : memref<1x1x128xf32, #tpu.memory_space<vmem>>, vector<1x1x128xf32>
    %163 = vector.shape_cast %162 : vector<1x1x128xf32> to vector<1x128xf32>
    %164 = vector.broadcast %163 : vector<1x128xf32> to vector<16x128xf32>
    %165 = arith.addf %161, %164 : vector<16x128xf32>
    %166 = vector.extract_strided_slice %165 {offsets = [0, 0], sizes = [16, 96], strides = [1, 1]} : vector<16x128xf32> to vector<16x96xf32>
    %167 = arith.negf %166 : vector<16x96xf32>
    %168 = math.exp %167 : vector<16x96xf32>
    %cst_79 = arith.constant 1.000000e+00 : f32
    %169 = vector.broadcast %cst_79 : f32 to vector<16x96xf32>
    %170 = arith.addf %169, %168 : vector<16x96xf32>
    %171 = arith.divf %169, %170 : vector<16x96xf32>
    %172 = vector.extract_strided_slice %165 {offsets = [0, 96], sizes = [16, 32], strides = [1, 1]} : vector<16x128xf32> to vector<16x32xf32>
    %173 = math.tanh %172 : vector<16x32xf32>
    %174 = vector.extract_strided_slice %171 {offsets = [0, 32], sizes = [16, 32], strides = [1, 1]} : vector<16x96xf32> to vector<16x32xf32>
    %175 = arith.mulf %174, %123 : vector<16x32xf32>
    %176 = vector.extract_strided_slice %171 {offsets = [0, 0], sizes = [16, 32], strides = [1, 1]} : vector<16x96xf32> to vector<16x32xf32>
    %177 = arith.mulf %176, %173 : vector<16x32xf32>
    %178 = arith.addf %175, %177 : vector<16x32xf32>
    %179 = vector.extract_strided_slice %171 {offsets = [0, 64], sizes = [16, 32], strides = [1, 1]} : vector<16x96xf32> to vector<16x32xf32>
    %180 = math.tanh %178 : vector<16x32xf32>
    %181 = arith.mulf %179, %180 : vector<16x32xf32>
    %182 = arith.truncf %181 : vector<16x32xf32> to vector<16x32xbf16>
    %c3_i32 = arith.constant 3 : i32
    %183 = arith.index_cast %c3_i32 : i32 to index
    %c0_80 = arith.constant 0 : index
    %c0_81 = arith.constant 0 : index
    %184 = vector.load %arg14[%183, %c0_80, %c0_81] : memref<4x16x128xbf16, #tpu.memory_space<vmem>>, vector<1x16x128xbf16>
    %185 = vector.shape_cast %184 : vector<1x16x128xbf16> to vector<16x128xbf16>
    %186 = arith.extf %185 : vector<16x128xbf16> to vector<16x128xf32>
    %c0_82 = arith.constant 0 : index
    %c0_83 = arith.constant 0 : index
    %187 = vector.load %arg5[%c0_82, %c0_83] : memref<1x128xf32, #tpu.memory_space<vmem>>, vector<1x128xf32>
    %188 = vector.broadcast %187 : vector<1x128xf32> to vector<16x128xf32>
    %189 = arith.addf %186, %188 : vector<16x128xf32>
    %c0_84 = arith.constant 0 : index
    %c0_85 = arith.constant 0 : index
    %190 = vector.load %arg4[%c0_84, %c0_85] : memref<32x128xbf16, #tpu.memory_space<vmem>>, vector<32x128xbf16>
    %cst_86 = arith.constant dense<0.000000e+00> : vector<16x128xf32>
    %191 = tpu.matmul %154, %190, %cst_86 {dimension_numbers = #tpu.dot_dimension_numbers<[1], [0], [0], [1], [0, 0, 1, 1], [], []>} : vector<16x32xbf16>, vector<32x128xbf16>, vector<16x128xf32> -> vector<16x128xf32>
    %192 = arith.addf %189, %191 : vector<16x128xf32>
    %193 = vector.extract_strided_slice %192 {offsets = [0, 0], sizes = [16, 96], strides = [1, 1]} : vector<16x128xf32> to vector<16x96xf32>
    %194 = arith.negf %193 : vector<16x96xf32>
    %195 = math.exp %194 : vector<16x96xf32>
    %cst_87 = arith.constant 1.000000e+00 : f32
    %196 = vector.broadcast %cst_87 : f32 to vector<16x96xf32>
    %197 = arith.addf %196, %195 : vector<16x96xf32>
    %198 = arith.divf %196, %197 : vector<16x96xf32>
    %199 = vector.extract_strided_slice %192 {offsets = [0, 96], sizes = [16, 32], strides = [1, 1]} : vector<16x128xf32> to vector<16x32xf32>
    %200 = math.tanh %199 : vector<16x32xf32>
    %201 = vector.extract_strided_slice %198 {offsets = [0, 32], sizes = [16, 32], strides = [1, 1]} : vector<16x96xf32> to vector<16x32xf32>
    %202 = arith.mulf %201, %150 : vector<16x32xf32>
    %203 = vector.extract_strided_slice %198 {offsets = [0, 0], sizes = [16, 32], strides = [1, 1]} : vector<16x96xf32> to vector<16x32xf32>
    %204 = arith.mulf %203, %200 : vector<16x32xf32>
    %205 = arith.addf %202, %204 : vector<16x32xf32>
    %206 = vector.extract_strided_slice %198 {offsets = [0, 64], sizes = [16, 32], strides = [1, 1]} : vector<16x96xf32> to vector<16x32xf32>
    %207 = math.tanh %205 : vector<16x32xf32>
    %208 = arith.mulf %206, %207 : vector<16x32xf32>
    %209 = arith.truncf %208 : vector<16x32xf32> to vector<16x32xbf16>
    %c0_88 = arith.constant 0 : index
    %c0_89 = arith.constant 0 : index
    %c0_90 = arith.constant 0 : index
    %210 = vector.load %arg6[%c0_88, %c0_89, %c0_90] : memref<1x32x128xbf16, #tpu.memory_space<vmem>>, vector<1x32x128xbf16>
    %211 = vector.shape_cast %210 : vector<1x32x128xbf16> to vector<32x128xbf16>
    %cst_91 = arith.constant dense<0.000000e+00> : vector<16x128xf32>
    %212 = tpu.matmul %209, %211, %cst_91 {dimension_numbers = #tpu.dot_dimension_numbers<[1], [0], [0], [1], [0, 0, 1, 1], [], []>} : vector<16x32xbf16>, vector<32x128xbf16>, vector<16x128xf32> -> vector<16x128xf32>
    %c0_92 = arith.constant 0 : index
    %c0_93 = arith.constant 0 : index
    %c0_94 = arith.constant 0 : index
    %213 = vector.load %arg7[%c0_92, %c0_93, %c0_94] : memref<1x32x128xbf16, #tpu.memory_space<vmem>>, vector<1x32x128xbf16>
    %214 = vector.shape_cast %213 : vector<1x32x128xbf16> to vector<32x128xbf16>
    %cst_95 = arith.constant dense<0.000000e+00> : vector<16x128xf32>
    %215 = tpu.matmul %182, %214, %cst_95 {dimension_numbers = #tpu.dot_dimension_numbers<[1], [0], [0], [1], [0, 0, 1, 1], [], []>} : vector<16x32xbf16>, vector<32x128xbf16>, vector<16x128xf32> -> vector<16x128xf32>
    %216 = arith.addf %212, %215 : vector<16x128xf32>
    %c0_96 = arith.constant 0 : index
    %c0_97 = arith.constant 0 : index
    %c0_98 = arith.constant 0 : index
    %217 = vector.load %arg8[%c0_96, %c0_97, %c0_98] : memref<1x1x128xf32, #tpu.memory_space<vmem>>, vector<1x1x128xf32>
    %218 = vector.shape_cast %217 : vector<1x1x128xf32> to vector<1x128xf32>
    %219 = vector.broadcast %218 : vector<1x128xf32> to vector<16x128xf32>
    %220 = arith.addf %216, %219 : vector<16x128xf32>
    %221 = vector.extract_strided_slice %220 {offsets = [0, 0], sizes = [16, 96], strides = [1, 1]} : vector<16x128xf32> to vector<16x96xf32>
    %222 = arith.negf %221 : vector<16x96xf32>
    %223 = math.exp %222 : vector<16x96xf32>
    %cst_99 = arith.constant 1.000000e+00 : f32
    %224 = vector.broadcast %cst_99 : f32 to vector<16x96xf32>
    %225 = arith.addf %224, %223 : vector<16x96xf32>
    %226 = arith.divf %224, %225 : vector<16x96xf32>
    %227 = vector.extract_strided_slice %220 {offsets = [0, 96], sizes = [16, 32], strides = [1, 1]} : vector<16x128xf32> to vector<16x32xf32>
    %228 = math.tanh %227 : vector<16x32xf32>
    %229 = vector.extract_strided_slice %226 {offsets = [0, 32], sizes = [16, 32], strides = [1, 1]} : vector<16x96xf32> to vector<16x32xf32>
    %230 = arith.mulf %229, %178 : vector<16x32xf32>
    %231 = vector.extract_strided_slice %226 {offsets = [0, 0], sizes = [16, 32], strides = [1, 1]} : vector<16x96xf32> to vector<16x32xf32>
    %232 = arith.mulf %231, %228 : vector<16x32xf32>
    %233 = arith.addf %230, %232 : vector<16x32xf32>
    %234 = vector.extract_strided_slice %226 {offsets = [0, 64], sizes = [16, 32], strides = [1, 1]} : vector<16x96xf32> to vector<16x32xf32>
    %235 = math.tanh %233 : vector<16x32xf32>
    %236 = arith.mulf %234, %235 : vector<16x32xf32>
    %237 = arith.truncf %236 : vector<16x32xf32> to vector<16x32xbf16>
    %c4_i32 = arith.constant 4 : i32
    %c0_100 = arith.constant 0 : index
    %c0_101 = arith.constant 0 : index
    %c0_102 = arith.constant 0 : index
    %238 = vector.load %arg12[%c0_100, %c0_101, %c0_102] : memref<2x16x32xbf16, #tpu.memory_space<vmem>>, vector<1x16x32xbf16>
    %239 = vector.shape_cast %238 : vector<1x16x32xbf16> to vector<16x32xbf16>
    %240 = vector.shape_cast %209 : vector<16x32xbf16> to vector<1x16x32xbf16>
    tpu.vector_store %arg12[%c0_100, %c0_101, %c0_102], %240 {strides = array<i32>} : memref<2x16x32xbf16, #tpu.memory_space<vmem>>, vector<1x16x32xbf16>,
    %c0_103 = arith.constant 0 : index
    %c0_104 = arith.constant 0 : index
    %c0_105 = arith.constant 0 : index
    %241 = vector.load %arg13[%c0_103, %c0_104, %c0_105] : memref<2x16x32xf32, #tpu.memory_space<vmem>>, vector<1x16x32xf32>
    %242 = vector.shape_cast %241 : vector<1x16x32xf32> to vector<16x32xf32>
    %243 = vector.shape_cast %205 : vector<16x32xf32> to vector<1x16x32xf32>
    tpu.vector_store %arg13[%c0_103, %c0_104, %c0_105], %243 {strides = array<i32>} : memref<2x16x32xf32, #tpu.memory_space<vmem>>, vector<1x16x32xf32>,
    %c1_106 = arith.constant 1 : index
    %c0_107 = arith.constant 0 : index
    %c0_108 = arith.constant 0 : index
    %244 = vector.load %arg12[%c1_106, %c0_107, %c0_108] : memref<2x16x32xbf16, #tpu.memory_space<vmem>>, vector<1x16x32xbf16>
    %245 = vector.shape_cast %244 : vector<1x16x32xbf16> to vector<16x32xbf16>
    %246 = vector.shape_cast %237 : vector<16x32xbf16> to vector<1x16x32xbf16>
    tpu.vector_store %arg12[%c1_106, %c0_107, %c0_108], %246 {strides = array<i32>} : memref<2x16x32xbf16, #tpu.memory_space<vmem>>, vector<1x16x32xbf16>,
    %c1_109 = arith.constant 1 : index
    %c0_110 = arith.constant 0 : index
    %c0_111 = arith.constant 0 : index
    %247 = vector.load %arg13[%c1_109, %c0_110, %c0_111] : memref<2x16x32xf32, #tpu.memory_space<vmem>>, vector<1x16x32xf32>
    %248 = vector.shape_cast %247 : vector<1x16x32xf32> to vector<16x32xf32>
    %249 = vector.shape_cast %233 : vector<16x32xf32> to vector<1x16x32xf32>
    tpu.vector_store %arg13[%c1_109, %c0_110, %c0_111], %249 {strides = array<i32>} : memref<2x16x32xf32, #tpu.memory_space<vmem>>, vector<1x16x32xf32>,
    %c1_i32_112 = arith.constant 1 : i32
    %250 = arith.cmpi eq, %arg1, %c1_i32_112 : i32
    %251 = arith.extui %250 : i1 to i32
    %c0_i32_113 = arith.constant 0 : i32
    %252 = arith.cmpi ne, %251, %c0_i32_113 : i32
    scf.if %252 {
      %253 = arith.extf %237 : vector<16x32xbf16> to vector<16x32xf32>
      %c0_114 = arith.constant 0 : index
      %c0_115 = arith.constant 0 : index
      %254 = vector.load %arg9[%c0_114, %c0_115] : memref<1x32xf32, #tpu.memory_space<vmem>>, vector<1x32xf32>
      %255 = vector.broadcast %254 : vector<1x32xf32> to vector<16x32xf32>
      %256 = arith.mulf %253, %255 : vector<16x32xf32>
      %cst_116 = arith.constant dense<0.000000e+00> : vector<16xf32>
      %257 = vector.multi_reduction <add>, %256, %cst_116 [1] : vector<16x32xf32> to vector<16xf32>
      %258 = vector.shape_cast %257 : vector<16xf32> to vector<16x1xf32>
      %c0_117 = arith.constant 0 : index
      %c0_118 = arith.constant 0 : index
      %259 = vector.load %arg10[%c0_117, %c0_118] : memref<1x1xf32, #tpu.memory_space<vmem>>, vector<1x1xf32>
      %260 = vector.broadcast %259 : vector<1x1xf32> to vector<16x1xf32>
      %261 = arith.addf %258, %260 : vector<16x1xf32>
      %262 = arith.negf %261 : vector<16x1xf32>
      %263 = math.exp %262 : vector<16x1xf32>
      %cst_119 = arith.constant 1.000000e+00 : f32
      %264 = vector.broadcast %cst_119 : f32 to vector<16x1xf32>
      %265 = arith.addf %264, %263 : vector<16x1xf32>
      %266 = arith.divf %264, %265 : vector<16x1xf32>
      %c0_120 = arith.constant 0 : index
      %c0_121 = arith.constant 0 : index
      %267 = vector.load %arg11[%c0_120, %c0_121] : memref<16x1xf32, #tpu.memory_space<vmem>>, vector<16x1xf32>
      tpu.vector_store %arg11[%c0_120, %c0_121], %266 {strides = array<i32>} : memref<16x1xf32, #tpu.memory_space<vmem>>, vector<16x1xf32>,
    } else {
    }
    return
  }
  func.func @transform_0(%arg0: i32, %arg1: i32) -> (i32, i32, i32) {
    %c0_i32 = arith.constant 0 : i32
    %c0_i32_0 = arith.constant 0 : i32
    return %arg1, %arg0, %c0_i32 : i32, i32, i32
  }
  func.func @transform_1(%arg0: i32, %arg1: i32) -> (i32, i32) {
    %c0_i32 = arith.constant 0 : i32
    %c0_i32_0 = arith.constant 0 : i32
    %c0_i32_1 = arith.constant 0 : i32
    return %c0_i32, %c0_i32_0 : i32, i32
  }
  func.func @transform_2(%arg0: i32, %arg1: i32) -> (i32, i32) {
    %c0_i32 = arith.constant 0 : i32
    %c0_i32_0 = arith.constant 0 : i32
    %c0_i32_1 = arith.constant 0 : i32
    return %c0_i32, %c0_i32_0 : i32, i32
  }
  func.func @transform_3(%arg0: i32, %arg1: i32) -> (i32, i32) {
    %c0_i32 = arith.constant 0 : i32
    %c0_i32_0 = arith.constant 0 : i32
    %c0_i32_1 = arith.constant 0 : i32
    return %c0_i32, %c0_i32_0 : i32, i32
  }
  func.func @transform_4(%arg0: i32, %arg1: i32) -> (i32, i32, i32) {
    %c0_i32 = arith.constant 0 : i32
    %c0_i32_0 = arith.constant 0 : i32
    %c0_i32_1 = arith.constant 0 : i32
    %c0_i32_2 = arith.constant 0 : i32
    return %c0_i32, %c0_i32_0, %c0_i32_1 : i32, i32, i32
  }
  func.func @transform_5(%arg0: i32, %arg1: i32) -> (i32, i32, i32) {
    %c0_i32 = arith.constant 0 : i32
    %c0_i32_0 = arith.constant 0 : i32
    %c0_i32_1 = arith.constant 0 : i32
    %c0_i32_2 = arith.constant 0 : i32
    return %c0_i32, %c0_i32_0, %c0_i32_1 : i32, i32, i32
  }
  func.func @transform_6(%arg0: i32, %arg1: i32) -> (i32, i32, i32) {
    %c0_i32 = arith.constant 0 : i32
    %c0_i32_0 = arith.constant 0 : i32
    %c0_i32_1 = arith.constant 0 : i32
    %c0_i32_2 = arith.constant 0 : i32
    return %c0_i32, %c0_i32_0, %c0_i32_1 : i32, i32, i32
  }
  func.func @transform_7(%arg0: i32, %arg1: i32) -> (i32, i32) {
    %c0_i32 = arith.constant 0 : i32
    %c0_i32_0 = arith.constant 0 : i32
    %c0_i32_1 = arith.constant 0 : i32
    return %c0_i32, %c0_i32_0 : i32, i32
  }
  func.func @transform_8(%arg0: i32, %arg1: i32) -> (i32, i32) {
    %c0_i32 = arith.constant 0 : i32
    %c0_i32_0 = arith.constant 0 : i32
    %c0_i32_1 = arith.constant 0 : i32
    return %c0_i32, %c0_i32_0 : i32, i32
  }
  func.func @transform_9(%arg0: i32, %arg1: i32) -> (i32, i32) {
    %c0_i32 = arith.constant 0 : i32
    %c0_i32_0 = arith.constant 0 : i32
    return %arg0, %c0_i32 : i32, i32
  }
}

</mosaic_0001>

<llo_original>
// kernel: tpu_custom_call.1
$region0: #{tpu_custom_call.1}
  #allocation0 [shape = 'u32[]', space=smem, size = 0x4, offset = 0x4, fixed_abs, tag = 'smem constant byte address 0x4 - core index']
  #allocation1 [shape = 'u32[72,128]{1,0:T(1,128)}', space=vmem, size = 0x9000, scoped, tag = 'internal scratch']
  #allocation2 [shape = 'bf16[2,16,32]{2,1,0:T(8,128)(2,1)}', space=vmem, size = 0x2000, scoped, tag = 'scratch operand']
  #allocation3 [shape = 'f32[2,16,32]{2,1,0:T(8,128)}', space=vmem, size = 0x4000, scoped, tag = 'scratch operand']
  #allocation4 [shape = 'bf16[4,16,128]{2,1,0:T(8,128)(2,1)}', space=vmem, size = 0x4000, scoped, tag = 'scratch operand']
  #allocation5 [shape = 'f32[1,1]{1,0:T(1,128)S(1)}', space=vmem, size = 0x200, scoped, tag = 'scoped memory for tpu_custom_call.1']
  %s0 = inlined_call_operand.hbm [shape: bf16[8,16,32], index: 0, kind: input, shape index: {}]
  %s1 = inlined_call_operand.hbm [shape: bf16[32,128], index: 1, kind: input, shape index: {}]
  %s2 = inlined_call_operand.hbm [shape: bf16[32,128], index: 2, kind: input, shape index: {}]
  %s3 = inlined_call_operand.vmem [shape: f32[1,128], index: 3, kind: input, shape index: {}]
  %s4 = inlined_call_operand.hbm [shape: bf16[1,32,128], index: 4, kind: input, shape index: {}]
  %s5 = inlined_call_operand.hbm [shape: bf16[1,32,128], index: 5, kind: input, shape index: {}]
  %s6 = inlined_call_operand.vmem [shape: f32[1,1,128], index: 6, kind: input, shape index: {}]
  %s7 = inlined_call_operand.vmem [shape: f32[1,32], index: 7, kind: input, shape index: {}]
  %s8 = inlined_call_operand.<no memory space> [shape: f32[1,1], index: 8, kind: input, shape index: {}]
  %s9 = inlined_call_operand.vmem [shape: f32[16,1], index: 9, kind: output, shape index: {}]
  %s10 = sld [smem:[#allocation0]]
  $region97: #{tpu_custom_call.1} parent=0
    _
  %s12 = ssub.s32 1, %s10
  %s13 = scalar_select 0, %s12, %s10
  %v14 = vstv %s8
  %15 = vst [vmem:[#allocation5] sm:$0x1] %v14
  $region1: #{tpu_custom_call.1} parent=0
    #allocation6 [shape = 'u8[32768]{0}', space=vmem, size = 0x8000, scoped, tag = 'input window, operand 0']
    #allocation7 [shape = 's32[2]{0}', space=sflag, size = 0x8, scoped, tag = 'scoped memory for tpu_custom_call.1']
    #allocation8 [shape = 'u8[8192]{0}', space=vmem, size = 0x2000, scoped, tag = 'input window, operand 1, single buffered']
    #allocation9 [shape = 's32[1]{0}', space=sflag, size = 0x4, scoped, tag = 'scoped memory for tpu_custom_call.1']
    #allocation10 [shape = 'u8[8192]{0}', space=vmem, size = 0x2000, scoped, tag = 'input window, operand 2, single buffered']
    #allocation11 [shape = 'u8[8192]{0}', space=vmem, size = 0x2000, scoped, tag = 'input window, operand 4, single buffered']
    #allocation12 [shape = 's32[1]{0}', space=sflag, size = 0x4, scoped, tag = 'scoped memory for tpu_custom_call.1']
    #allocation13 [shape = 'u8[8192]{0}', space=vmem, size = 0x2000, scoped, tag = 'input window, operand 5, single buffered']
    %16 = vsyncpa [#allocation7], 0
    %s17 = scalar_lea.sflag [#allocation7], 1
    %18 = vsyncpa %s17, 0
    %19 = vsyncpa [#allocation9], 0
    %20 = vsyncpa [#allocation12], 0
    loop: start=0, step=1, limit=4
    $region2: #{tpu_custom_call.1} parent=1 // loop_pre_header
      _
    $region3: #{tpu_custom_call.1} parent=1 // loop_header
      %s22 = sphi 0, %s26
      %p23 = scmp.ge.s32.totalorder %s22, 4
      %s29 = sphi 0, %s41
      %s30 = sphi 0, %s37
      %s31 = sphi 0, %s29
      %s32 = sphi 0, %s30
      %s33 = sphi 0, %s31
      %s34 = sphi 0, %s32
      %s46 = sphi 0, %s48
      %s49 = sphi 0, %s46
      %s50 = sphi 0, %s49
      %s66 = sphi 0, %s50
      %s70 = sphi 0, %s70
      %s72 = sphi 0, %s70
      %s73 = sphi 0, %s72
      %s87 = sphi 0, %s73
      %s91 = sphi 0, %s91
      %s93 = sphi 0, %s91
      %s94 = sphi 0, %s93
      %s108 = sphi 0, %s94
      %s112 = sphi 0, %s112
      %s114 = sphi 0, %s112
      %s115 = sphi 0, %s114
      %s129 = sphi 0, %s115
      %s133 = sphi 0, %s133
      %s135 = sphi 0, %s133
      %s136 = sphi 0, %s135
      %s150 = sphi 0, %s136
      %s154 = sphi 0, %s154
      %s156 = sphi 0, %s154
      %s157 = sphi 0, %s156
      %s171 = sphi 0, %s157
      %s175 = sphi 0, %s175
      %s177 = sphi 0, %s175
      %s178 = sphi 0, %s177
      %s192 = sphi 0, %s178
      %s196 = sphi 0, %s196
      %s198 = sphi 0, %s196
      %s199 = sphi 0, %s198
      %s213 = sphi 0, %s199
      %s217 = sphi 0, %s217
      %s219 = sphi 0, %s217
      %s220 = sphi 0, %s219
      %s234 = sphi 0, %s220
      %s240 = sphi 0, %s242
      %s243 = sphi 0, %s240
      %s244 = sphi 0, %s243
      %s260 = sphi 0, %s244
    $region4: #{tpu_custom_call.1} parent=1 // loop_header_branch
      %25 = sbr.rel (%p23) target = $region8
    $region5: #{tpu_custom_call.1} parent=1 // loop_body
      %s27 = ssub.s32 %s22, 1
      %s28 = ssub.s32 %s22, 2
      %s35 = sadd.s32 1, %s30
      %p36 = scmp.ge.s32.totalorder %s35, 2
      %s37 = scalar_select %p36, 0, %s35
      %s38 = sadd.s32 1, %s29
      %s39 = scalar_select %p36, %s38, %s29
      %p40 = scmp.ge.s32.totalorder %s39, 1
      %s41 = scalar_select %p40, 0, %s39
      %s42 = ssub.s32 %s30, %s37
      %s43 = ssub.s32 %s29, %s41
      %s44 = sor.u32 %s42, %s43
      %p45 = scmp.eq.s32.totalorder %s44, 0
      %s47 = sadd.s32 %s46, 1
      %s48 = scalar_select %p45, %s46, %s47
      %p51 = pneg %p45
      %p52 = scmp.eq.s32.totalorder %s22, 1
      %p53 = por %p51, %p52
      %p54 = scmp.ne.s32.totalorder %s46, %s49
      %p55 = scmp.eq.s32.totalorder %s22, 0
      %p56 = por %p54, %p55
      %p57 = scmp.ne.s32.totalorder %s46, %s49
      %p58 = scmp.eq.s32.totalorder %s27, 1
      %p59 = por %p57, %p58
      %p60 = scmp.ne.s32.totalorder %s49, %s50
      %p61 = scmp.eq.s32.totalorder %s27, 0
      %p62 = por %p60, %p61
      %p63 = scmp.ne.s32.totalorder %s49, %s50
      %p64 = scmp.eq.s32.totalorder %s28, 1
      %p65 = por %p63, %p64
      %p67 = scmp.ne.s32.totalorder %s50, %s66
      %p68 = scmp.eq.s32.totalorder %s28, 0
      %p69 = por %p67, %p68
      %s71 = sadd.s32 %s70, 1
      %p74 = scmp.eq.s32.totalorder %s22, 1
      %p75 = scmp.ne.s32.totalorder %s70, %s72
      %p76 = scmp.eq.s32.totalorder %s22, 0
      %p77 = por %p75, %p76
      %p78 = scmp.ne.s32.totalorder %s70, %s72
      %p79 = scmp.eq.s32.totalorder %s27, 1
      %p80 = por %p78, %p79
      %p81 = scmp.ne.s32.totalorder %s72, %s73
      %p82 = scmp.eq.s32.totalorder %s27, 0
      %p83 = por %p81, %p82
      %p84 = scmp.ne.s32.totalorder %s72, %s73
      %p85 = scmp.eq.s32.totalorder %s28, 1
      %p86 = por %p84, %p85
      %p88 = scmp.ne.s32.totalorder %s73, %s87
      %p89 = scmp.eq.s32.totalorder %s28, 0
      %p90 = por %p88, %p89
      %s92 = sadd.s32 %s91, 1
      %p95 = scmp.eq.s32.totalorder %s22, 1
      %p96 = scmp.ne.s32.totalorder %s91, %s93
      %p97 = scmp.eq.s32.totalorder %s22, 0
      %p98 = por %p96, %p97
      %p99 = scmp.ne.s32.totalorder %s91, %s93
      %p100 = scmp.eq.s32.totalorder %s27, 1
      %p101 = por %p99, %p100
      %p102 = scmp.ne.s32.totalorder %s93, %s94
      %p103 = scmp.eq.s32.totalorder %s27, 0
      %p104 = por %p102, %p103
      %p105 = scmp.ne.s32.totalorder %s93, %s94
      %p106 = scmp.eq.s32.totalorder %s28, 1
      %p107 = por %p105, %p106
      %p109 = scmp.ne.s32.totalorder %s94, %s108
      %p110 = scmp.eq.s32.totalorder %s28, 0
      %p111 = por %p109, %p110
      %s113 = sadd.s32 %s112, 1
      %p116 = scmp.eq.s32.totalorder %s22, 1
      %p117 = scmp.ne.s32.totalorder %s112, %s114
      %p118 = scmp.eq.s32.totalorder %s22, 0
      %p119 = por %p117, %p118
      %p120 = scmp.ne.s32.totalorder %s112, %s114
      %p121 = scmp.eq.s32.totalorder %s27, 1
      %p122 = por %p120, %p121
      %p123 = scmp.ne.s32.totalorder %s114, %s115
      %p124 = scmp.eq.s32.totalorder %s27, 0
      %p125 = por %p123, %p124
      %p126 = scmp.ne.s32.totalorder %s114, %s115
      %p127 = scmp.eq.s32.totalorder %s28, 1
      %p128 = por %p126, %p127
      %p130 = scmp.ne.s32.totalorder %s115, %s129
      %p131 = scmp.eq.s32.totalorder %s28, 0
      %p132 = por %p130, %p131
      %s134 = sadd.s32 %s133, 1
      %p137 = scmp.eq.s32.totalorder %s22, 1
      %p138 = scmp.ne.s32.totalorder %s133, %s135
      %p139 = scmp.eq.s32.totalorder %s22, 0
      %p140 = por %p138, %p139
      %p141 = scmp.ne.s32.totalorder %s133, %s135
      %p142 = scmp.eq.s32.totalorder %s27, 1
      %p143 = por %p141, %p142
      %p144 = scmp.ne.s32.totalorder %s135, %s136
      %p145 = scmp.eq.s32.totalorder %s27, 0
      %p146 = por %p144, %p145
      %p147 = scmp.ne.s32.totalorder %s135, %s136
      %p148 = scmp.eq.s32.totalorder %s28, 1
      %p149 = por %p147, %p148
      %p151 = scmp.ne.s32.totalorder %s136, %s150
      %p152 = scmp.eq.s32.totalorder %s28, 0
      %p153 = por %p151, %p152
      %s155 = sadd.s32 %s154, 1
      %p158 = scmp.eq.s32.totalorder %s22, 1
      %p159 = scmp.ne.s32.totalorder %s154, %s156
      %p160 = scmp.eq.s32.totalorder %s22, 0
      %p161 = por %p159, %p160
      %p162 = scmp.ne.s32.totalorder %s154, %s156
      %p163 = scmp.eq.s32.totalorder %s27, 1
      %p164 = por %p162, %p163
      %p165 = scmp.ne.s32.totalorder %s156, %s157
      %p166 = scmp.eq.s32.totalorder %s27, 0
      %p167 = por %p165, %p166
      %p168 = scmp.ne.s32.totalorder %s156, %s157
      %p169 = scmp.eq.s32.totalorder %s28, 1
      %p170 = por %p168, %p169
      %p172 = scmp.ne.s32.totalorder %s157, %s171
      %p173 = scmp.eq.s32.totalorder %s28, 0
      %p174 = por %p172, %p173
      %s176 = sadd.s32 %s175, 1
      %p179 = scmp.eq.s32.totalorder %s22, 1
      %p180 = scmp.ne.s32.totalorder %s175, %s177
      %p181 = scmp.eq.s32.totalorder %s22, 0
      %p182 = por %p180, %p181
      %p183 = scmp.ne.s32.totalorder %s175, %s177
      %p184 = scmp.eq.s32.totalorder %s27, 1
      %p185 = por %p183, %p184
      %p186 = scmp.ne.s32.totalorder %s177, %s178
      %p187 = scmp.eq.s32.totalorder %s27, 0
      %p188 = por %p186, %p187
      %p189 = scmp.ne.s32.totalorder %s177, %s178
      %p190 = scmp.eq.s32.totalorder %s28, 1
      %p191 = por %p189, %p190
      %p193 = scmp.ne.s32.totalorder %s178, %s192
      %p194 = scmp.eq.s32.totalorder %s28, 0
      %p195 = por %p193, %p194
      %s197 = sadd.s32 %s196, 1
      %p200 = scmp.eq.s32.totalorder %s22, 1
      %p201 = scmp.ne.s32.totalorder %s196, %s198
      %p202 = scmp.eq.s32.totalorder %s22, 0
      %p203 = por %p201, %p202
      %p204 = scmp.ne.s32.totalorder %s196, %s198
      %p205 = scmp.eq.s32.totalorder %s27, 1
      %p206 = por %p204, %p205
      %p207 = scmp.ne.s32.totalorder %s198, %s199
      %p208 = scmp.eq.s32.totalorder %s27, 0
      %p209 = por %p207, %p208
      %p210 = scmp.ne.s32.totalorder %s198, %s199
      %p211 = scmp.eq.s32.totalorder %s28, 1
      %p212 = por %p210, %p211
      %p214 = scmp.ne.s32.totalorder %s199, %s213
      %p215 = scmp.eq.s32.totalorder %s28, 0
      %p216 = por %p214, %p215
      %s218 = sadd.s32 %s217, 1
      %p221 = scmp.eq.s32.totalorder %s22, 1
      %p222 = scmp.ne.s32.totalorder %s217, %s219
      %p223 = scmp.eq.s32.totalorder %s22, 0
      %p224 = por %p222, %p223
      %p225 = scmp.ne.s32.totalorder %s217, %s219
      %p226 = scmp.eq.s32.totalorder %s27, 1
      %p227 = por %p225, %p226
      %p228 = scmp.ne.s32.totalorder %s219, %s220
      %p229 = scmp.eq.s32.totalorder %s27, 0
      %p230 = por %p228, %p229
      %p231 = scmp.ne.s32.totalorder %s219, %s220
      %p232 = scmp.eq.s32.totalorder %s28, 1
      %p233 = por %p231, %p232
      %p235 = scmp.ne.s32.totalorder %s220, %s234
      %p236 = scmp.eq.s32.totalorder %s28, 0
      %p237 = por %p235, %p236
      %s238 = ssub.s32 %s29, %s41
      %p239 = scmp.eq.s32.totalorder %s238, 0
      %s241 = sadd.s32 %s240, 1
      %s242 = scalar_select %p239, %s240, %s241
      %p245 = pneg %p239
      %p246 = scmp.eq.s32.totalorder %s22, 1
      %p247 = por %p245, %p246
      %p248 = scmp.ne.s32.totalorder %s240, %s243
      %p249 = scmp.eq.s32.totalorder %s22, 0
      %p250 = por %p248, %p249
      %p251 = scmp.ne.s32.totalorder %s240, %s243
      %p252 = scmp.eq.s32.totalorder %s27, 1
      %p253 = por %p251, %p252
      %p254 = scmp.ne.s32.totalorder %s243, %s244
      %p255 = scmp.eq.s32.totalorder %s27, 0
      %p256 = por %p254, %p255
      %p257 = scmp.ne.s32.totalorder %s243, %s244
      %p258 = scmp.eq.s32.totalorder %s28, 1
      %p259 = por %p257, %p258
      %p261 = scmp.ne.s32.totalorder %s244, %s260
      %p262 = scmp.eq.s32.totalorder %s28, 0
      %p263 = por %p261, %p262
      %p264 = scmp.le.s32.totalorder 1, %s22
      %p265 = scmp.lt.s32.totalorder %s22, 3
      %p266 = pnand %p264, %p265
      %p267 = pneg %p266
      // Predicated region
      $region9: #{tpu_custom_call.1} parent=5 // pred_check
        _
      $region10: #{tpu_custom_call.1} parent=5 // pred_check_branch
        %269 = sbr.rel (%p266) target = $region12
      $region11: #{tpu_custom_call.1} parent=5 // pred_region
        %s270 = ssub.s32 %s22, 1
        // Predicated region
        $region13: #{tpu_custom_call.1} parent=11 // pred_check
          %p271 = pneg %p83
        $region14: #{tpu_custom_call.1} parent=11 // pred_check_branch
          %273 = sbr.rel (%p271) target = $region16
        $region15: #{tpu_custom_call.1} parent=11 // pred_region
          %275 = vsyncadd [#allocation9], 0
          %s276 = sshll.u32 %s1, 4
          %s277 = int_to_ptr.hbm [resolvable:$true] %s276
          %s278 = sshll.u32 [#allocation8], 4
          %s279 = int_to_ptr.vmem [resolvable:$true] %s278
          %284 = dma.hbm_to_vmem [thread:$0]  %s277, 256, %s279, [#allocation9], 64, 64, 4
        $region16: #{tpu_custom_call.1} parent=11 // pred_fallthru
          _
        // Predicated region
        $region17: #{tpu_custom_call.1} parent=11 // pred_check
          %p285 = pneg %p104
        $region18: #{tpu_custom_call.1} parent=11 // pred_check_branch
          %287 = sbr.rel (%p285) target = $region20
        $region19: #{tpu_custom_call.1} parent=11 // pred_region
          %289 = vsyncadd [#allocation9], 0
          %s290 = sshll.u32 %s2, 4
          %s291 = int_to_ptr.hbm [resolvable:$true] %s290
          %s292 = sshll.u32 [#allocation10], 4
          %s293 = int_to_ptr.vmem [resolvable:$true] %s292
          %298 = dma.hbm_to_vmem [thread:$0]  %s291, 256, %s293, [#allocation9], 64, 64, 4
        $region20: #{tpu_custom_call.1} parent=11 // pred_fallthru
          _
        // Predicated region
        $region21: #{tpu_custom_call.1} parent=11 // pred_check
          %p299 = pneg %p125
        $region22: #{tpu_custom_call.1} parent=11 // pred_check_branch
          %301 = sbr.rel (%p299) target = $region24
        $region23: #{tpu_custom_call.1} parent=11 // pred_region
          _
        $region24: #{tpu_custom_call.1} parent=11 // pred_fallthru
          _
        // Predicated region
        $region25: #{tpu_custom_call.1} parent=11 // pred_check
          %p302 = pneg %p146
        $region26: #{tpu_custom_call.1} parent=11 // pred_check_branch
          %304 = sbr.rel (%p302) target = $region28
        $region27: #{tpu_custom_call.1} parent=11 // pred_region
          %306 = vsyncadd [#allocation12], 0
          %s307 = sshll.u32 %s4, 4
          %s308 = int_to_ptr.hbm [resolvable:$true] %s307
          %s309 = sshll.u32 [#allocation11], 4
          %s310 = int_to_ptr.vmem [resolvable:$true] %s309
          %315 = dma.hbm_to_vmem [thread:$0]  %s308, 256, %s310, [#allocation12], 64, 64, 4
        $region28: #{tpu_custom_call.1} parent=11 // pred_fallthru
          _
        // Predicated region
        $region29: #{tpu_custom_call.1} parent=11 // pred_check
          %p316 = pneg %p167
        $region30: #{tpu_custom_call.1} parent=11 // pred_check_branch
          %318 = sbr.rel (%p316) target = $region32
        $region31: #{tpu_custom_call.1} parent=11 // pred_region
          %320 = vsyncadd [#allocation12], 0
          %s321 = sshll.u32 %s5, 4
          %s322 = int_to_ptr.hbm [resolvable:$true] %s321
          %s323 = sshll.u32 [#allocation13], 4
          %s324 = int_to_ptr.vmem [resolvable:$true] %s323
          %329 = dma.hbm_to_vmem [thread:$0]  %s322, 256, %s324, [#allocation12], 64, 64, 4
        $region32: #{tpu_custom_call.1} parent=11 // pred_fallthru
          _
        // Predicated region
        $region33: #{tpu_custom_call.1} parent=11 // pred_check
          %p330 = pneg %p188
        $region34: #{tpu_custom_call.1} parent=11 // pred_check_branch
          %332 = sbr.rel (%p330) target = $region36
        $region35: #{tpu_custom_call.1} parent=11 // pred_region
          _
        $region36: #{tpu_custom_call.1} parent=11 // pred_fallthru
          _
        // Predicated region
        $region37: #{tpu_custom_call.1} parent=11 // pred_check
          %p333 = pneg %p209
        $region38: #{tpu_custom_call.1} parent=11 // pred_check_branch
          %335 = sbr.rel (%p333) target = $region40
        $region39: #{tpu_custom_call.1} parent=11 // pred_region
          _
        $region40: #{tpu_custom_call.1} parent=11 // pred_fallthru
          _
        // Predicated region
        $region41: #{tpu_custom_call.1} parent=11 // pred_check
          %p336 = pneg %p230
        $region42: #{tpu_custom_call.1} parent=11 // pred_check_branch
          %338 = sbr.rel (%p336) target = $region44
        $region43: #{tpu_custom_call.1} parent=11 // pred_region
          _
        $region44: #{tpu_custom_call.1} parent=11 // pred_fallthru
          _
      $region12: #{tpu_custom_call.1} parent=5 // pred_fallthru
        _
      %p339 = scmp.lt.s32.totalorder %s22, 2
      // Predicated region
      $region45: #{tpu_custom_call.1} parent=5 // pred_check
        %p340 = pneg %p339
      $region46: #{tpu_custom_call.1} parent=5 // pred_check_branch
        %342 = sbr.rel (%p340) target = $region48
      $region47: #{tpu_custom_call.1} parent=5 // pred_region
        // Predicated region
        $region49: #{tpu_custom_call.1} parent=47 // pred_check
          %p343 = pneg %p56
        $region50: #{tpu_custom_call.1} parent=47 // pred_check_branch
          %345 = sbr.rel (%p343) target = $region52
        $region51: #{tpu_custom_call.1} parent=47 // pred_region
          %s346 = sand.u32 %s46, 1
          %s347 = scalar_lea.sflag [#allocation7], %s346
          %s348 = sand.u32 %s46, 1
          %s349 = smul.addr %s348, 32
          %s350 = scalar_lea.vmem [#allocation6], %s349
          %s351 = smul.u32 4, %s30
          %s352 = smul.u32 2, %s29
          %354 = vsyncadd %s347, 0
          %s355 = smul.addr %s351, 2
          %s356 = sadd.s32 %s352, %s355
          %s357 = smul.addr %s356, 4
          %s358 = scalar_lea.hbm %s0, %s357
          %s359 = sshll.u32 %s358, 4
          %s360 = int_to_ptr.hbm [resolvable:$true] %s359
          %s361 = sshll.u32 %s350, 4
          %s362 = int_to_ptr.vmem [resolvable:$true] %s361
          %367 = dma.hbm_to_vmem [thread:$0]  %s360, 512, %s362, %s347, 64, 64, 4
        $region52: #{tpu_custom_call.1} parent=47 // pred_fallthru
          _
      $region48: #{tpu_custom_call.1} parent=5 // pred_fallthru
        _
      %p368 = scmp.le.s32.totalorder 1, %s22
      %p369 = scmp.lt.s32.totalorder %s22, 3
      %p370 = pnand %p368, %p369
      %p371 = pneg %p370
      // Predicated region
      $region53: #{tpu_custom_call.1} parent=5 // pred_check
        _
      $region54: #{tpu_custom_call.1} parent=5 // pred_check_branch
        %373 = sbr.rel (%p370) target = $region56
      $region55: #{tpu_custom_call.1} parent=5 // pred_region
        %s374 = ssub.s32 %s22, 1
        %s375 = sand.u32 %s49, 1
        %s376 = scalar_lea.sflag [#allocation7], %s375
        %s377 = sand.u32 %s49, 1
        %s378 = smul.addr %s377, 32
        %s379 = scalar_lea.vmem [#allocation6], %s378
        // Predicated region
        $region57: #{tpu_custom_call.1} parent=55 // pred_check
          %p380 = pneg %p62
        $region58: #{tpu_custom_call.1} parent=55 // pred_check_branch
          %382 = sbr.rel (%p380) target = $region60
        $region59: #{tpu_custom_call.1} parent=55 // pred_region
          %384 = dma.done %s376, 512
        $region60: #{tpu_custom_call.1} parent=55 // pred_fallthru
          _
        // Predicated region
        $region61: #{tpu_custom_call.1} parent=55 // pred_check
          %p385 = pneg %p83
        $region62: #{tpu_custom_call.1} parent=55 // pred_check_branch
          %387 = sbr.rel (%p385) target = $region64
        $region63: #{tpu_custom_call.1} parent=55 // pred_region
          %389 = dma.done [#allocation9], 256
        $region64: #{tpu_custom_call.1} parent=55 // pred_fallthru
          _
        // Predicated region
        $region65: #{tpu_custom_call.1} parent=55 // pred_check
          %p390 = pneg %p104
        $region66: #{tpu_custom_call.1} parent=55 // pred_check_branch
          %392 = sbr.rel (%p390) target = $region68
        $region67: #{tpu_custom_call.1} parent=55 // pred_region
          %394 = dma.done [#allocation9], 256
        $region68: #{tpu_custom_call.1} parent=55 // pred_fallthru
          _
        // Predicated region
        $region69: #{tpu_custom_call.1} parent=55 // pred_check
          %p395 = pneg %p146
        $region70: #{tpu_custom_call.1} parent=55 // pred_check_branch
          %397 = sbr.rel (%p395) target = $region72
        $region71: #{tpu_custom_call.1} parent=55 // pred_region
          %399 = dma.done [#allocation12], 256
        $region72: #{tpu_custom_call.1} parent=55 // pred_fallthru
          _
        // Predicated region
        $region73: #{tpu_custom_call.1} parent=55 // pred_check
          %p400 = pneg %p167
        $region74: #{tpu_custom_call.1} parent=55 // pred_check_branch
          %402 = sbr.rel (%p400) target = $region76
        $region75: #{tpu_custom_call.1} parent=55 // pred_region
          %404 = dma.done [#allocation12], 256
        $region76: #{tpu_custom_call.1} parent=55 // pred_fallthru
          _
        %s405 = sand.u32 %s49, 1
        %s406 = scalar_lea.sflag [#allocation7], %s405
        %s407 = sand.u32 %s49, 1
        %s408 = smul.addr %s407, 32
        %s409 = scalar_lea.vmem [#allocation6], %s408
        %p410 = pneg %p62
        %p411 = pneg %p59
        %p412 = pneg %p83
        %p413 = pneg %p80
        %p414 = pneg %p104
        %p415 = pneg %p101
        %p416 = pneg %p125
        %p417 = pneg %p122
        %p418 = pneg %p146
        %p419 = pneg %p143
        %p420 = pneg %p167
        %p421 = pneg %p164
        %p422 = pneg %p188
        %p423 = pneg %p185
        %p424 = pneg %p209
        %p425 = pneg %p206
        %p426 = pneg %p230
        %p427 = pneg %p227
        %p428 = pneg %p256
        %p429 = pneg %p253
        %s430 = smul.u32 2, %s31
        %p431 = scmp.lt.s32.totalorder %s430, 1
        %s432 = scalar_select %p431, %s430, 1
        %s433 = smul.addr %s432, 8
        %s434 = scalar_lea.vmem %s9, %s433
        %s435 = smul.u32 4, %s32
        %s436 = smul.u32 2, %s31
        %s437 = smul.u32 2, %s31
        %p438 = scmp.lt.s32.totalorder %s437, 1
        %s439 = scalar_select %p438, %s437, 1
        %s440 = smul.addr %s439, 8
        %s441 = scalar_lea.vmem %s9, %s440
        %s442 = smul.u32 2, %s31
        %p444 = scmp.eq.s32.totalorder %s32, 0
        // Predicated region
        $region77: #{tpu_custom_call.1} parent=55 // pred_check
          %p445 = pneg %p444
        $region78: #{tpu_custom_call.1} parent=55 // pred_check_branch
          %447 = sbr.rel (%p445) target = $region80
        $region79: #{tpu_custom_call.1} parent=55 // pred_region
          %vm448 = vcmask 257024
          %449 = vst.msk [vmem:[#allocation2] sm:$0xf] %vm448, 0
          %450 = vst.msk [vmem:[#allocation2 + $0x4] sm:$0xf] %vm448, 0
          %451 = vst.msk [vmem:[#allocation2 + $0x8] sm:$0xf] %vm448, 0
          %452 = vst.msk [vmem:[#allocation2 + $0xc] sm:$0xf] %vm448, 0
          %vm453 = vcmask 261120
          %454 = vst.msk [vmem:[#allocation3] sm:$0xff] %vm453, 0.0
          %455 = vst.msk [vmem:[#allocation3 + $0x8] sm:$0xff] %vm453, 0.0
          %456 = vst.msk [vmem:[#allocation3 + $0x10] sm:$0xff] %vm453, 0.0
          %457 = vst.msk [vmem:[#allocation3 + $0x18] sm:$0xff] %vm453, 0.0
        $region80: #{tpu_custom_call.1} parent=55 // pred_fallthru
          _
        %v458 = vld [vmem:[%s379] sm:$0xf]
        %v459 = vld [vmem:[%s379 + $0x4] sm:$0xf]
        %v460 = vld [vmem:[%s379 + $0x8] sm:$0xf]
        %v461 = vld [vmem:[%s379 + $0xc] sm:$0xf]
        %v462 = vld [vmem:[%s379 + $0x10] sm:$0xf]
        %v463 = vld [vmem:[%s379 + $0x14] sm:$0xf]
        %v464 = vld [vmem:[%s379 + $0x18] sm:$0xf]
        %v465 = vld [vmem:[%s379 + $0x1c] sm:$0xf]
        %v466 = vld [vmem:[#allocation8] sm:$0xf]
        %v467 = vld [vmem:[#allocation8 + $0x4] sm:$0xf]
        %v468 = vld [vmem:[#allocation8 + $0x8] sm:$0xf]
        %v469 = vld [vmem:[#allocation8 + $0xc] sm:$0xf]
        %v478 = vunpack.c.l.b16 %v458
        %v479 = vunpack.c.l.b16 %v459
        %v480 = vunpack.c.l.b16 %v460
        %v481 = vunpack.c.l.b16 %v461
        %v482 = vunpack.c.l.b16 %v462
        %v483 = vunpack.c.l.b16 %v463
        %v484 = vunpack.c.l.b16 %v464
        %v485 = vunpack.c.l.b16 %v465
        %v486 = vpack.c.b16 %v479, %v478
        %v487 = vpack.c.b16 %v481, %v480
        %v488 = vpack.c.b16 %v483, %v482
        %v489 = vpack.c.b16 %v485, %v484
        %v494 = vunpack.c.l.b16 %v466
        %v495 = vunpack.c.l.b16 %v467
        %v496 = vunpack.c.l.b16 %v468
        %v497 = vunpack.c.l.b16 %v469
        %v498 = vpack.c.b16 %v495, %v494
        %v499 = vpack.c.b16 %v497, %v496
        %vm502 = vcmask 261120
        %v504 = vsel %vm502, %v486, 0
        %v507 = vsel %vm502, %v487, 0
        %v510 = vsel %vm502, %v488, 0
        %v513 = vsel %vm502, %v489, 0
        %515 = vmatpush.bf16.msra.mxu0 0
        %516 = vmatpush.bf16.msra.mxu0 0
        %517 = vmatpush.bf16.msra.mxu0 0
        %518 = vmatpush.bf16.msra.mxu0 0
        %519 = vmatpush.bf16.msra.mxu0 0
        %520 = vmatpush.bf16.msra.mxu0 0
        %521 = vmatpush.bf16.msra.mxu0 %v499
        %522 = vmatpush.bf16.msra.mxu0 %v498
        %523 = vmatmul.bf16.gmra.mxu0 %v504
        %v524 = vpop.f32.mrf.mxu0
        %v525 = vadd.f32 0.0, %v524
        %v526 = vpop.f32.mrf.mxu0
        %v527 = vadd.f32 0.0, %v526
        %528 = vmatmul.bf16.gmra.mxu0 %v507
        %v529 = vpop.f32.mrf.mxu0
        %v530 = vadd.f32 0.0, %v529
        %v531 = vpop.f32.mrf.mxu0
        %v532 = vadd.f32 0.0, %v531
        %533 = vmatmul.bf16.gmra.mxu0 %v510
        %v534 = vpop.f32.mrf.mxu0
        %v535 = vadd.f32 0.0, %v534
        %v536 = vpop.f32.mrf.mxu0
        %v537 = vadd.f32 0.0, %v536
        %538 = vmatmul.bf16.gmra.mxu0 %v513
        %v539 = vpop.f32.mrf.mxu0
        %v540 = vadd.f32 0.0, %v539
        %v541 = vpop.f32.mrf.mxu0
        %v542 = vadd.f32 0.0, %v541
        %543 = vdwg.mxu0
        %v544 = vpack.c.bf16 %v525, %v525
        %v545 = vpack.c.bf16 %v527, %v527
        %v546 = vpack.c.bf16 %v530, %v530
        %v547 = vpack.c.bf16 %v532, %v532
        %v548 = vpack.c.bf16 %v535, %v535
        %v549 = vpack.c.bf16 %v537, %v537
        %v550 = vpack.c.bf16 %v540, %v540
        %v551 = vpack.c.bf16 %v542, %v542
        %552 = vst [vmem:[#allocation4] sm:$0xf] %v544
        %553 = vst [vmem:[#allocation4 + $0x4] sm:$0xf] %v545
        %554 = vst [vmem:[#allocation4 + $0x8] sm:$0xf] %v546
        %555 = vst [vmem:[#allocation4 + $0xc] sm:$0xf] %v547
        %556 = vst [vmem:[#allocation4 + $0x10] sm:$0xf] %v548
        %557 = vst [vmem:[#allocation4 + $0x14] sm:$0xf] %v549
        %558 = vst [vmem:[#allocation4 + $0x18] sm:$0xf] %v550
        %559 = vst [vmem:[#allocation4 + $0x1c] sm:$0xf] %v551
        %v560 = vld [vmem:[#allocation2] sm:$0xf]
        %v561 = vld [vmem:[#allocation2 + $0x4] sm:$0xf]
        %s562 = scalar_lea.vmem [#allocation2], 8
        %v563 = vld [vmem:[%s562] sm:$0xf]
        %v564 = vld [vmem:[%s562 + $0x4] sm:$0xf]
        %v565 = vld [vmem:[#allocation3] sm:$0xff]
        %v566 = vld [vmem:[#allocation3 + $0x8] sm:$0xff]
        %s567 = scalar_lea.vmem [#allocation3], 16
        %v568 = vld [vmem:[%s567] sm:$0xff]
        %v569 = vld [vmem:[%s567 + $0x8] sm:$0xff]
        %v570 = vld [vmem:[#allocation4] sm:$0xf]
        %v571 = vld [vmem:[#allocation4 + $0x4] sm:$0xf]
        %v572 = vunpack.c.l.bf16 %v570
        %v573 = vunpack.c.l.bf16 %v571
        %v574 = vld [vmem:[%s3] sm:$0x1]
        %v576 = vperm.slane %v574, 0
        %v578 = vadd.f32 %v572, %v576
        %v579 = vadd.f32 %v573, %v576
        %v580 = vld [vmem:[#allocation10] sm:$0xf]
        %v581 = vld [vmem:[#allocation10 + $0x4] sm:$0xf]
        %v582 = vld [vmem:[#allocation10 + $0x8] sm:$0xf]
        %v583 = vld [vmem:[#allocation10 + $0xc] sm:$0xf]
        %v586 = vunpack.c.l.b16 %v560
        %v587 = vunpack.c.l.b16 %v561
        %v588 = vpack.c.b16 %v587, %v586
        %v593 = vunpack.c.l.b16 %v580
        %v594 = vunpack.c.l.b16 %v581
        %v595 = vunpack.c.l.b16 %v582
        %v596 = vunpack.c.l.b16 %v583
        %v597 = vpack.c.b16 %v594, %v593
        %v598 = vpack.c.b16 %v596, %v595
        %v602 = vsel %vm502, %v588, 0
        %604 = vmatpush.bf16.msra.mxu0 0
        %605 = vmatpush.bf16.msra.mxu0 0
        %606 = vmatpush.bf16.msra.mxu0 0
        %607 = vmatpush.bf16.msra.mxu0 0
        %608 = vmatpush.bf16.msra.mxu0 0
        %609 = vmatpush.bf16.msra.mxu0 0
        %610 = vmatpush.bf16.msra.mxu0 %v598
        %611 = vmatpush.bf16.msra.mxu0 %v597
        %612 = vmatmul.bf16.gmra.mxu0 %v602
        %v613 = vpop.f32.mrf.mxu0
        %v614 = vadd.f32 0.0, %v613
        %v615 = vpop.f32.mrf.mxu0
        %v616 = vadd.f32 0.0, %v615
        %617 = vdwg.mxu0
        %v618 = vadd.f32 %v578, %v614
        %v619 = vadd.f32 %v579, %v616
        %v620 = vxor.u32 %v618, 2147483648
        %v621 = vxor.u32 %v619, 2147483648
        %v622 = vmul.f32 %v620, 1.442695
        %v623 = vpow.pop %v622
        %v624 = vmul.f32 %v621, 1.442695
        %v625 = vpow.pop %v624
        %v626 = vadd.f32 %v623, 1.0
        %v627 = vadd.f32 %v625, 1.0
        %v628 = vrcp.pop %v626
        %v629 = vmul.f32 %v626, %v628
        %v630 = vsub.f32 1.0, %v629
        %v631 = vmul.f32 %v628, %v630
        %v632 = vadd.f32 %v628, %v631
        %vm633 = vweird.f32 %v626
        %vm634 = vweird.f32 %v628
        %vm635 = vmor %vm633, %vm634
        %v636 = vsel %vm635, %v628, %v632
        %v637 = vand.u32 2147483647, %v626
        %vm638 = vcmp.eq.f32.partialorder %v637, 8.507059e+37
        %v639 = vand.u32 %v626, 2147483648
        %v640 = vor.u32 1.1754944e-38, %v639
        %v641 = vsel %vm638, %v640, %v636
        %v642 = vmul.f32 1.0, %v641
        %v643 = vrcp.pop %v627
        %v644 = vmul.f32 %v627, %v643
        %v645 = vsub.f32 1.0, %v644
        %v646 = vmul.f32 %v643, %v645
        %v647 = vadd.f32 %v643, %v646
        %vm648 = vweird.f32 %v627
        %vm649 = vweird.f32 %v643
        %vm650 = vmor %vm648, %vm649
        %v651 = vsel %vm650, %v643, %v647
        %v652 = vand.u32 2147483647, %v627
        %vm653 = vcmp.eq.f32.partialorder %v652, 8.507059e+37
        %v654 = vand.u32 %v627, 2147483648
        %v655 = vor.u32 1.1754944e-38, %v654
        %v656 = vsel %vm653, %v655, %v651
        %v657 = vmul.f32 1.0, %v656
        %v658 = vtanh.pop %v618
        %v659 = vtanh.pop %v619
        %662 = vrot.lane.b32.xlu0 %v565, 32
        %v663 = vpop.permute.xlu0 %662
        %664 = vrot.lane.b32.xlu0 %v566, 32
        %v665 = vpop.permute.xlu0 %664
        %v668 = vmul.f32 %v642, %v663
        %v669 = vmul.f32 %v657, %v665
        %672 = vrot.lane.b32.xlu0 %v658, 32
        %v673 = vpop.permute.xlu0 %672
        %674 = vrot.lane.b32.xlu0 %v659, 32
        %v675 = vpop.permute.xlu0 %674
        %v678 = vmul.f32 %v642, %v673
        %v679 = vmul.f32 %v657, %v675
        %682 = vrot.lane.b32.xlu0 %v678, 32
        %v683 = vpop.permute.xlu0 %682
        %684 = vrot.lane.b32.xlu0 %v679, 32
        %v685 = vpop.permute.xlu0 %684
        %v688 = vadd.f32 %v668, %v683
        %v689 = vadd.f32 %v669, %v685
        %v690 = vtanh.pop %v688
        %v691 = vtanh.pop %v689
        %694 = vrot.lane.b32.xlu0 %v690, 32
        %v695 = vpop.permute.xlu0 %694
        %696 = vrot.lane.b32.xlu0 %v691, 32
        %v697 = vpop.permute.xlu0 %696
        %v700 = vmul.f32 %v642, %v695
        %v701 = vmul.f32 %v657, %v697
        %v702 = vpack.c.bf16 %v701, %v700
        %v703 = vld [vmem:[#allocation11] sm:$0xf]
        %v704 = vld [vmem:[#allocation11 + $0x4] sm:$0xf]
        %v705 = vld [vmem:[#allocation11 + $0x8] sm:$0xf]
        %v706 = vld [vmem:[#allocation11 + $0xc] sm:$0xf]
        %v707 = vld [vmem:[#allocation13] sm:$0xf]
        %v708 = vld [vmem:[#allocation13 + $0x4] sm:$0xf]
        %v709 = vld [vmem:[#allocation13 + $0x8] sm:$0xf]
        %v710 = vld [vmem:[#allocation13 + $0xc] sm:$0xf]
        %v713 = vunpack.c.l.b16 %v563
        %v714 = vunpack.c.l.b16 %v564
        %v715 = vpack.c.b16 %v714, %v713
        %v720 = vunpack.c.l.b16 %v707
        %v721 = vunpack.c.l.b16 %v708
        %v722 = vunpack.c.l.b16 %v709
        %v723 = vunpack.c.l.b16 %v710
        %v724 = vpack.c.b16 %v721, %v720
        %v725 = vpack.c.b16 %v723, %v722
        %v729 = vsel %vm502, %v715, 0
        %731 = vmatpush.bf16.msra.mxu0 0
        %732 = vmatpush.bf16.msra.mxu0 0
        %733 = vmatpush.bf16.msra.mxu0 0
        %734 = vmatpush.bf16.msra.mxu0 0
        %735 = vmatpush.bf16.msra.mxu0 0
        %736 = vmatpush.bf16.msra.mxu0 0
        %737 = vmatpush.bf16.msra.mxu0 %v725
        %738 = vmatpush.bf16.msra.mxu0 %v724
        %739 = vmatmul.bf16.gmra.mxu0 %v729
        %v740 = vpop.f32.mrf.mxu0
        %v741 = vadd.f32 0.0, %v740
        %v742 = vpop.f32.mrf.mxu0
        %v743 = vadd.f32 0.0, %v742
        %744 = vdwg.mxu0
        %746 = vrot.lane.b32.xlu0 %v702, 64
        %v747 = vpop.permute.xlu0 %746
        %v752 = vunpack.c.l.b16 %v703
        %v753 = vunpack.c.l.b16 %v704
        %v754 = vunpack.c.l.b16 %v705
        %v755 = vunpack.c.l.b16 %v706
        %v756 = vpack.c.b16 %v753, %v752
        %v757 = vpack.c.b16 %v755, %v754
        %v761 = vsel %vm502, %v747, 0
        %763 = vmatpush.bf16.msra.mxu0 0
        %764 = vmatpush.bf16.msra.mxu0 0
        %765 = vmatpush.bf16.msra.mxu0 0
        %766 = vmatpush.bf16.msra.mxu0 0
        %767 = vmatpush.bf16.msra.mxu0 0
        %768 = vmatpush.bf16.msra.mxu0 0
        %769 = vmatpush.bf16.msra.mxu0 %v757
        %770 = vmatpush.bf16.msra.mxu0 %v756
        %771 = vmatmul.bf16.gmra.mxu0 %v761
        %v772 = vpop.f32.mrf.mxu0
        %v773 = vadd.f32 %v741, %v772
        %v774 = vpop.f32.mrf.mxu0
        %v775 = vadd.f32 %v743, %v774
        %776 = vdwg.mxu0
        %v777 = vld [vmem:[%s6] sm:$0x1]
        %v779 = vperm.slane %v777, 0
        %v781 = vadd.f32 %v773, %v779
        %v782 = vadd.f32 %v775, %v779
        %v783 = vxor.u32 %v781, 2147483648
        %v784 = vxor.u32 %v782, 2147483648
        %v785 = vmul.f32 %v783, 1.442695
        %v786 = vpow.pop %v785
        %v787 = vmul.f32 %v784, 1.442695
        %v788 = vpow.pop %v787
        %v789 = vadd.f32 %v786, 1.0
        %v790 = vadd.f32 %v788, 1.0
        %v791 = vrcp.pop %v789
        %v792 = vmul.f32 %v789, %v791
        %v793 = vsub.f32 1.0, %v792
        %v794 = vmul.f32 %v791, %v793
        %v795 = vadd.f32 %v791, %v794
        %vm796 = vweird.f32 %v789
        %vm797 = vweird.f32 %v791
        %vm798 = vmor %vm796, %vm797
        %v799 = vsel %vm798, %v791, %v795
        %v800 = vand.u32 2147483647, %v789
        %vm801 = vcmp.eq.f32.partialorder %v800, 8.507059e+37
        %v802 = vand.u32 %v789, 2147483648
        %v803 = vor.u32 1.1754944e-38, %v802
        %v804 = vsel %vm801, %v803, %v799
        %v805 = vmul.f32 1.0, %v804
        %v806 = vrcp.pop %v790
        %v807 = vmul.f32 %v790, %v806
        %v808 = vsub.f32 1.0, %v807
        %v809 = vmul.f32 %v806, %v808
        %v810 = vadd.f32 %v806, %v809
        %vm811 = vweird.f32 %v790
        %vm812 = vweird.f32 %v806
        %vm813 = vmor %vm811, %vm812
        %v814 = vsel %vm813, %v806, %v810
        %v815 = vand.u32 2147483647, %v790
        %vm816 = vcmp.eq.f32.partialorder %v815, 8.507059e+37
        %v817 = vand.u32 %v790, 2147483648
        %v818 = vor.u32 1.1754944e-38, %v817
        %v819 = vsel %vm816, %v818, %v814
        %v820 = vmul.f32 1.0, %v819
        %v821 = vtanh.pop %v781
        %v822 = vtanh.pop %v782
        %825 = vrot.lane.b32.xlu0 %v568, 32
        %v826 = vpop.permute.xlu0 %825
        %827 = vrot.lane.b32.xlu0 %v569, 32
        %v828 = vpop.permute.xlu0 %827
        %v831 = vmul.f32 %v805, %v826
        %v832 = vmul.f32 %v820, %v828
        %835 = vrot.lane.b32.xlu0 %v821, 32
        %v836 = vpop.permute.xlu0 %835
        %837 = vrot.lane.b32.xlu0 %v822, 32
        %v838 = vpop.permute.xlu0 %837
        %v841 = vmul.f32 %v805, %v836
        %v842 = vmul.f32 %v820, %v838
        %845 = vrot.lane.b32.xlu0 %v841, 32
        %v846 = vpop.permute.xlu0 %845
        %847 = vrot.lane.b32.xlu0 %v842, 32
        %v848 = vpop.permute.xlu0 %847
        %v851 = vadd.f32 %v831, %v846
        %v852 = vadd.f32 %v832, %v848
        %v853 = vtanh.pop %v851
        %v854 = vtanh.pop %v852
        %857 = vrot.lane.b32.xlu0 %v853, 32
        %v858 = vpop.permute.xlu0 %857
        %859 = vrot.lane.b32.xlu0 %v854, 32
        %v860 = vpop.permute.xlu0 %859
        %v863 = vmul.f32 %v805, %v858
        %v864 = vmul.f32 %v820, %v860
        %v865 = vpack.c.bf16 %v864, %v863
        %s866 = scalar_lea.vmem [#allocation4], 8
        %v867 = vld [vmem:[%s866] sm:$0xf]
        %v868 = vld [vmem:[%s866 + $0x4] sm:$0xf]
        %v869 = vunpack.c.l.bf16 %v867
        %v870 = vunpack.c.l.bf16 %v868
        %v871 = vadd.f32 %v869, %v576
        %v872 = vadd.f32 %v870, %v576
        %873 = vmatpush.bf16.msra.mxu0 0
        %874 = vmatpush.bf16.msra.mxu0 0
        %875 = vmatpush.bf16.msra.mxu0 0
        %876 = vmatpush.bf16.msra.mxu0 0
        %877 = vmatpush.bf16.msra.mxu0 0
        %878 = vmatpush.bf16.msra.mxu0 0
        %879 = vmatpush.bf16.msra.mxu0 %v598
        %880 = vmatpush.bf16.msra.mxu0 %v597
        %881 = vmatmul.bf16.gmra.mxu0 %v761
        %v882 = vpop.f32.mrf.mxu0
        %v883 = vadd.f32 0.0, %v882
        %v884 = vpop.f32.mrf.mxu0
        %v885 = vadd.f32 0.0, %v884
        %886 = vdwg.mxu0
        %v887 = vadd.f32 %v871, %v883
        %v888 = vadd.f32 %v872, %v885
        %v889 = vxor.u32 %v887, 2147483648
        %v890 = vxor.u32 %v888, 2147483648
        %v891 = vmul.f32 %v889, 1.442695
        %v892 = vpow.pop %v891
        %v893 = vmul.f32 %v890, 1.442695
        %v894 = vpow.pop %v893
        %v895 = vadd.f32 %v892, 1.0
        %v896 = vadd.f32 %v894, 1.0
        %v897 = vrcp.pop %v895
        %v898 = vmul.f32 %v895, %v897
        %v899 = vsub.f32 1.0, %v898
        %v900 = vmul.f32 %v897, %v899
        %v901 = vadd.f32 %v897, %v900
        %vm902 = vweird.f32 %v895
        %vm903 = vweird.f32 %v897
        %vm904 = vmor %vm902, %vm903
        %v905 = vsel %vm904, %v897, %v901
        %v906 = vand.u32 2147483647, %v895
        %vm907 = vcmp.eq.f32.partialorder %v906, 8.507059e+37
        %v908 = vand.u32 %v895, 2147483648
        %v909 = vor.u32 1.1754944e-38, %v908
        %v910 = vsel %vm907, %v909, %v905
        %v911 = vmul.f32 1.0, %v910
        %v912 = vrcp.pop %v896
        %v913 = vmul.f32 %v896, %v912
        %v914 = vsub.f32 1.0, %v913
        %v915 = vmul.f32 %v912, %v914
        %v916 = vadd.f32 %v912, %v915
        %vm917 = vweird.f32 %v896
        %vm918 = vweird.f32 %v912
        %vm919 = vmor %vm917, %vm918
        %v920 = vsel %vm919, %v912, %v916
        %v921 = vand.u32 2147483647, %v896
        %vm922 = vcmp.eq.f32.partialorder %v921, 8.507059e+37
        %v923 = vand.u32 %v896, 2147483648
        %v924 = vor.u32 1.1754944e-38, %v923
        %v925 = vsel %vm922, %v924, %v920
        %v926 = vmul.f32 1.0, %v925
        %v927 = vtanh.pop %v887
        %v928 = vtanh.pop %v888
        %v929 = vmul.f32 %v911, %v688
        %v930 = vmul.f32 %v926, %v689
        %933 = vrot.lane.b32.xlu0 %v927, 32
        %v934 = vpop.permute.xlu0 %933
        %935 = vrot.lane.b32.xlu0 %v928, 32
        %v936 = vpop.permute.xlu0 %935
        %v939 = vmul.f32 %v911, %v934
        %v940 = vmul.f32 %v926, %v936
        %943 = vrot.lane.b32.xlu0 %v939, 32
        %v944 = vpop.permute.xlu0 %943
        %945 = vrot.lane.b32.xlu0 %v940, 32
        %v946 = vpop.permute.xlu0 %945
        %v949 = vadd.f32 %v929, %v944
        %v950 = vadd.f32 %v930, %v946
        %v951 = vtanh.pop %v949
        %v952 = vtanh.pop %v950
        %955 = vrot.lane.b32.xlu0 %v951, 32
        %v956 = vpop.permute.xlu0 %955
        %957 = vrot.lane.b32.xlu0 %v952, 32
        %v958 = vpop.permute.xlu0 %957
        %v961 = vmul.f32 %v911, %v956
        %v962 = vmul.f32 %v926, %v958
        %v963 = vpack.c.bf16 %v962, %v961
        %965 = vrot.lane.b32.xlu0 %v865, 64
        %v966 = vpop.permute.xlu0 %965
        %v968 = vsel %vm502, %v966, 0
        %970 = vmatpush.bf16.msra.mxu0 0
        %971 = vmatpush.bf16.msra.mxu0 0
        %972 = vmatpush.bf16.msra.mxu0 0
        %973 = vmatpush.bf16.msra.mxu0 0
        %974 = vmatpush.bf16.msra.mxu0 0
        %975 = vmatpush.bf16.msra.mxu0 0
        %976 = vmatpush.bf16.msra.mxu0 %v725
        %977 = vmatpush.bf16.msra.mxu0 %v724
        %978 = vmatmul.bf16.gmra.mxu0 %v968
        %v979 = vpop.f32.mrf.mxu0
        %v980 = vadd.f32 0.0, %v979
        %v981 = vpop.f32.mrf.mxu0
        %v982 = vadd.f32 0.0, %v981
        %983 = vdwg.mxu0
        %985 = vrot.lane.b32.xlu0 %v963, 64
        %v986 = vpop.permute.xlu0 %985
        %v988 = vsel %vm502, %v986, 0
        %990 = vmatpush.bf16.msra.mxu0 0
        %991 = vmatpush.bf16.msra.mxu0 0
        %992 = vmatpush.bf16.msra.mxu0 0
        %993 = vmatpush.bf16.msra.mxu0 0
        %994 = vmatpush.bf16.msra.mxu0 0
        %995 = vmatpush.bf16.msra.mxu0 0
        %996 = vmatpush.bf16.msra.mxu0 %v757
        %997 = vmatpush.bf16.msra.mxu0 %v756
        %998 = vmatmul.bf16.gmra.mxu0 %v988
        %v999 = vpop.f32.mrf.mxu0
        %v1000 = vadd.f32 %v980, %v999
        %v1001 = vpop.f32.mrf.mxu0
        %v1002 = vadd.f32 %v982, %v1001
        %1003 = vdwg.mxu0
        %v1004 = vadd.f32 %v1000, %v779
        %v1005 = vadd.f32 %v1002, %v779
        %v1006 = vxor.u32 %v1004, 2147483648
        %v1007 = vxor.u32 %v1005, 2147483648
        %v1008 = vmul.f32 %v1006, 1.442695
        %v1009 = vpow.pop %v1008
        %v1010 = vmul.f32 %v1007, 1.442695
        %v1011 = vpow.pop %v1010
        %v1012 = vadd.f32 %v1009, 1.0
        %v1013 = vadd.f32 %v1011, 1.0
        %v1014 = vrcp.pop %v1012
        %v1015 = vmul.f32 %v1012, %v1014
        %v1016 = vsub.f32 1.0, %v1015
        %v1017 = vmul.f32 %v1014, %v1016
        %v1018 = vadd.f32 %v1014, %v1017
        %vm1019 = vweird.f32 %v1012
        %vm1020 = vweird.f32 %v1014
        %vm1021 = vmor %vm1019, %vm1020
        %v1022 = vsel %vm1021, %v1014, %v1018
        %v1023 = vand.u32 2147483647, %v1012
        %vm1024 = vcmp.eq.f32.partialorder %v1023, 8.507059e+37
        %v1025 = vand.u32 %v1012, 2147483648
        %v1026 = vor.u32 1.1754944e-38, %v1025
        %v1027 = vsel %vm1024, %v1026, %v1022
        %v1028 = vmul.f32 1.0, %v1027
        %v1029 = vrcp.pop %v1013
        %v1030 = vmul.f32 %v1013, %v1029
        %v1031 = vsub.f32 1.0, %v1030
        %v1032 = vmul.f32 %v1029, %v1031
        %v1033 = vadd.f32 %v1029, %v1032
        %vm1034 = vweird.f32 %v1013
        %vm1035 = vweird.f32 %v1029
        %vm1036 = vmor %vm1034, %vm1035
        %v1037 = vsel %vm1036, %v1029, %v1033
        %v1038 = vand.u32 2147483647, %v1013
        %vm1039 = vcmp.eq.f32.partialorder %v1038, 8.507059e+37
        %v1040 = vand.u32 %v1013, 2147483648
        %v1041 = vor.u32 1.1754944e-38, %v1040
        %v1042 = vsel %vm1039, %v1041, %v1037
        %v1043 = vmul.f32 1.0, %v1042
        %v1044 = vtanh.pop %v1004
        %v1045 = vtanh.pop %v1005
        %v1046 = vmul.f32 %v1028, %v851
        %v1047 = vmul.f32 %v1043, %v852
        %1050 = vrot.lane.b32.xlu0 %v1044, 32
        %v1051 = vpop.permute.xlu0 %1050
        %1052 = vrot.lane.b32.xlu0 %v1045, 32
        %v1053 = vpop.permute.xlu0 %1052
        %v1056 = vmul.f32 %v1028, %v1051
        %v1057 = vmul.f32 %v1043, %v1053
        %1060 = vrot.lane.b32.xlu0 %v1056, 32
        %v1061 = vpop.permute.xlu0 %1060
        %1062 = vrot.lane.b32.xlu0 %v1057, 32
        %v1063 = vpop.permute.xlu0 %1062
        %v1066 = vadd.f32 %v1046, %v1061
        %v1067 = vadd.f32 %v1047, %v1063
        %v1068 = vtanh.pop %v1066
        %v1069 = vtanh.pop %v1067
        %1072 = vrot.lane.b32.xlu0 %v1068, 32
        %v1073 = vpop.permute.xlu0 %1072
        %1074 = vrot.lane.b32.xlu0 %v1069, 32
        %v1075 = vpop.permute.xlu0 %1074
        %v1078 = vmul.f32 %v1028, %v1073
        %v1079 = vmul.f32 %v1043, %v1075
        %v1080 = vpack.c.bf16 %v1079, %v1078
        %s1081 = scalar_lea.vmem [#allocation4], 16
        %v1082 = vld [vmem:[%s1081] sm:$0xf]
        %v1083 = vld [vmem:[%s1081 + $0x4] sm:$0xf]
        %v1084 = vunpack.c.l.bf16 %v1082
        %v1085 = vunpack.c.l.bf16 %v1083
        %v1086 = vadd.f32 %v1084, %v576
        %v1087 = vadd.f32 %v1085, %v576
        %1088 = vmatpush.bf16.msra.mxu0 0
        %1089 = vmatpush.bf16.msra.mxu0 0
        %1090 = vmatpush.bf16.msra.mxu0 0
        %1091 = vmatpush.bf16.msra.mxu0 0
        %1092 = vmatpush.bf16.msra.mxu0 0
        %1093 = vmatpush.bf16.msra.mxu0 0
        %1094 = vmatpush.bf16.msra.mxu0 %v598
        %1095 = vmatpush.bf16.msra.mxu0 %v597
        %1096 = vmatmul.bf16.gmra.mxu0 %v988
        %v1097 = vpop.f32.mrf.mxu0
        %v1098 = vadd.f32 0.0, %v1097
        %v1099 = vpop.f32.mrf.mxu0
        %v1100 = vadd.f32 0.0, %v1099
        %1101 = vdwg.mxu0
        %v1102 = vadd.f32 %v1086, %v1098
        %v1103 = vadd.f32 %v1087, %v1100
        %v1104 = vxor.u32 %v1102, 2147483648
        %v1105 = vxor.u32 %v1103, 2147483648
        %v1106 = vmul.f32 %v1104, 1.442695
        %v1107 = vpow.pop %v1106
        %v1108 = vmul.f32 %v1105, 1.442695
        %v1109 = vpow.pop %v1108
        %v1110 = vadd.f32 %v1107, 1.0
        %v1111 = vadd.f32 %v1109, 1.0
        %v1112 = vrcp.pop %v1110
        %v1113 = vmul.f32 %v1110, %v1112
        %v1114 = vsub.f32 1.0, %v1113
        %v1115 = vmul.f32 %v1112, %v1114
        %v1116 = vadd.f32 %v1112, %v1115
        %vm1117 = vweird.f32 %v1110
        %vm1118 = vweird.f32 %v1112
        %vm1119 = vmor %vm1117, %vm1118
        %v1120 = vsel %vm1119, %v1112, %v1116
        %v1121 = vand.u32 2147483647, %v1110
        %vm1122 = vcmp.eq.f32.partialorder %v1121, 8.507059e+37
        %v1123 = vand.u32 %v1110, 2147483648
        %v1124 = vor.u32 1.1754944e-38, %v1123
        %v1125 = vsel %vm1122, %v1124, %v1120
        %v1126 = vmul.f32 1.0, %v1125
        %v1127 = vrcp.pop %v1111
        %v1128 = vmul.f32 %v1111, %v1127
        %v1129 = vsub.f32 1.0, %v1128
        %v1130 = vmul.f32 %v1127, %v1129
        %v1131 = vadd.f32 %v1127, %v1130
        %vm1132 = vweird.f32 %v1111
        %vm1133 = vweird.f32 %v1127
        %vm1134 = vmor %vm1132, %vm1133
        %v1135 = vsel %vm1134, %v1127, %v1131
        %v1136 = vand.u32 2147483647, %v1111
        %vm1137 = vcmp.eq.f32.partialorder %v1136, 8.507059e+37
        %v1138 = vand.u32 %v1111, 2147483648
        %v1139 = vor.u32 1.1754944e-38, %v1138
        %v1140 = vsel %vm1137, %v1139, %v1135
        %v1141 = vmul.f32 1.0, %v1140
        %v1142 = vtanh.pop %v1102
        %v1143 = vtanh.pop %v1103
        %v1144 = vmul.f32 %v1126, %v949
        %v1145 = vmul.f32 %v1141, %v950
        %1148 = vrot.lane.b32.xlu0 %v1142, 32
        %v1149 = vpop.permute.xlu0 %1148
        %1150 = vrot.lane.b32.xlu0 %v1143, 32
        %v1151 = vpop.permute.xlu0 %1150
        %v1154 = vmul.f32 %v1126, %v1149
        %v1155 = vmul.f32 %v1141, %v1151
        %1158 = vrot.lane.b32.xlu0 %v1154, 32
        %v1159 = vpop.permute.xlu0 %1158
        %1160 = vrot.lane.b32.xlu0 %v1155, 32
        %v1161 = vpop.permute.xlu0 %1160
        %v1164 = vadd.f32 %v1144, %v1159
        %v1165 = vadd.f32 %v1145, %v1161
        %v1166 = vtanh.pop %v1164
        %v1167 = vtanh.pop %v1165
        %1170 = vrot.lane.b32.xlu0 %v1166, 32
        %v1171 = vpop.permute.xlu0 %1170
        %1172 = vrot.lane.b32.xlu0 %v1167, 32
        %v1173 = vpop.permute.xlu0 %1172
        %v1176 = vmul.f32 %v1126, %v1171
        %v1177 = vmul.f32 %v1141, %v1173
        %v1178 = vpack.c.bf16 %v1177, %v1176
        %1180 = vrot.lane.b32.xlu0 %v1080, 64
        %v1181 = vpop.permute.xlu0 %1180
        %v1183 = vsel %vm502, %v1181, 0
        %1185 = vmatpush.bf16.msra.mxu0 0
        %1186 = vmatpush.bf16.msra.mxu0 0
        %1187 = vmatpush.bf16.msra.mxu0 0
        %1188 = vmatpush.bf16.msra.mxu0 0
        %1189 = vmatpush.bf16.msra.mxu0 0
        %1190 = vmatpush.bf16.msra.mxu0 0
        %1191 = vmatpush.bf16.msra.mxu0 %v725
        %1192 = vmatpush.bf16.msra.mxu0 %v724
        %1193 = vmatmul.bf16.gmra.mxu0 %v1183
        %v1194 = vpop.f32.mrf.mxu0
        %v1195 = vadd.f32 0.0, %v1194
        %v1196 = vpop.f32.mrf.mxu0
        %v1197 = vadd.f32 0.0, %v1196
        %1198 = vdwg.mxu0
        %1200 = vrot.lane.b32.xlu0 %v1178, 64
        %v1201 = vpop.permute.xlu0 %1200
        %v1203 = vsel %vm502, %v1201, 0
        %1205 = vmatpush.bf16.msra.mxu0 0
        %1206 = vmatpush.bf16.msra.mxu0 0
        %1207 = vmatpush.bf16.msra.mxu0 0
        %1208 = vmatpush.bf16.msra.mxu0 0
        %1209 = vmatpush.bf16.msra.mxu0 0
        %1210 = vmatpush.bf16.msra.mxu0 0
        %1211 = vmatpush.bf16.msra.mxu0 %v757
        %1212 = vmatpush.bf16.msra.mxu0 %v756
        %1213 = vmatmul.bf16.gmra.mxu0 %v1203
        %v1214 = vpop.f32.mrf.mxu0
        %v1215 = vadd.f32 %v1195, %v1214
        %v1216 = vpop.f32.mrf.mxu0
        %v1217 = vadd.f32 %v1197, %v1216
        %1218 = vdwg.mxu0
        %v1219 = vadd.f32 %v1215, %v779
        %v1220 = vadd.f32 %v1217, %v779
        %v1221 = vxor.u32 %v1219, 2147483648
        %v1222 = vxor.u32 %v1220, 2147483648
        %v1223 = vmul.f32 %v1221, 1.442695
        %v1224 = vpow.pop %v1223
        %v1225 = vmul.f32 %v1222, 1.442695
        %v1226 = vpow.pop %v1225
        %v1227 = vadd.f32 %v1224, 1.0
        %v1228 = vadd.f32 %v1226, 1.0
        %v1229 = vrcp.pop %v1227
        %v1230 = vmul.f32 %v1227, %v1229
        %v1231 = vsub.f32 1.0, %v1230
        %v1232 = vmul.f32 %v1229, %v1231
        %v1233 = vadd.f32 %v1229, %v1232
        %vm1234 = vweird.f32 %v1227
        %vm1235 = vweird.f32 %v1229
        %vm1236 = vmor %vm1234, %vm1235
        %v1237 = vsel %vm1236, %v1229, %v1233
        %v1238 = vand.u32 2147483647, %v1227
        %vm1239 = vcmp.eq.f32.partialorder %v1238, 8.507059e+37
        %v1240 = vand.u32 %v1227, 2147483648
        %v1241 = vor.u32 1.1754944e-38, %v1240
        %v1242 = vsel %vm1239, %v1241, %v1237
        %v1243 = vmul.f32 1.0, %v1242
        %v1244 = vrcp.pop %v1228
        %v1245 = vmul.f32 %v1228, %v1244
        %v1246 = vsub.f32 1.0, %v1245
        %v1247 = vmul.f32 %v1244, %v1246
        %v1248 = vadd.f32 %v1244, %v1247
        %vm1249 = vweird.f32 %v1228
        %vm1250 = vweird.f32 %v1244
        %vm1251 = vmor %vm1249, %vm1250
        %v1252 = vsel %vm1251, %v1244, %v1248
        %v1253 = vand.u32 2147483647, %v1228
        %vm1254 = vcmp.eq.f32.partialorder %v1253, 8.507059e+37
        %v1255 = vand.u32 %v1228, 2147483648
        %v1256 = vor.u32 1.1754944e-38, %v1255
        %v1257 = vsel %vm1254, %v1256, %v1252
        %v1258 = vmul.f32 1.0, %v1257
        %v1259 = vtanh.pop %v1219
        %v1260 = vtanh.pop %v1220
        %v1261 = vmul.f32 %v1243, %v1066
        %v1262 = vmul.f32 %v1258, %v1067
        %1265 = vrot.lane.b32.xlu0 %v1259, 32
        %v1266 = vpop.permute.xlu0 %1265
        %1267 = vrot.lane.b32.xlu0 %v1260, 32
        %v1268 = vpop.permute.xlu0 %1267
        %v1271 = vmul.f32 %v1243, %v1266
        %v1272 = vmul.f32 %v1258, %v1268
        %1275 = vrot.lane.b32.xlu0 %v1271, 32
        %v1276 = vpop.permute.xlu0 %1275
        %1277 = vrot.lane.b32.xlu0 %v1272, 32
        %v1278 = vpop.permute.xlu0 %1277
        %v1281 = vadd.f32 %v1261, %v1276
        %v1282 = vadd.f32 %v1262, %v1278
        %v1283 = vtanh.pop %v1281
        %v1284 = vtanh.pop %v1282
        %1287 = vrot.lane.b32.xlu0 %v1283, 32
        %v1288 = vpop.permute.xlu0 %1287
        %1289 = vrot.lane.b32.xlu0 %v1284, 32
        %v1290 = vpop.permute.xlu0 %1289
        %v1293 = vmul.f32 %v1243, %v1288
        %v1294 = vmul.f32 %v1258, %v1290
        %v1295 = vpack.c.bf16 %v1294, %v1293
        %s1296 = scalar_lea.vmem [#allocation4], 24
        %v1297 = vld [vmem:[%s1296] sm:$0xf]
        %v1298 = vld [vmem:[%s1296 + $0x4] sm:$0xf]
        %v1299 = vunpack.c.l.bf16 %v1297
        %v1300 = vunpack.c.l.bf16 %v1298
        %v1301 = vadd.f32 %v1299, %v576
        %v1302 = vadd.f32 %v1300, %v576
        %1303 = vmatpush.bf16.msra.mxu0 0
        %1304 = vmatpush.bf16.msra.mxu0 0
        %1305 = vmatpush.bf16.msra.mxu0 0
        %1306 = vmatpush.bf16.msra.mxu0 0
        %1307 = vmatpush.bf16.msra.mxu0 0
        %1308 = vmatpush.bf16.msra.mxu0 0
        %1309 = vmatpush.bf16.msra.mxu0 %v598
        %1310 = vmatpush.bf16.msra.mxu0 %v597
        %1311 = vmatmul.bf16.gmra.mxu0 %v1203
        %v1312 = vpop.f32.mrf.mxu0
        %v1313 = vadd.f32 0.0, %v1312
        %v1314 = vpop.f32.mrf.mxu0
        %v1315 = vadd.f32 0.0, %v1314
        %1316 = vdwg.mxu0
        %v1317 = vadd.f32 %v1301, %v1313
        %v1318 = vadd.f32 %v1302, %v1315
        %v1319 = vxor.u32 %v1317, 2147483648
        %v1320 = vxor.u32 %v1318, 2147483648
        %v1321 = vmul.f32 %v1319, 1.442695
        %v1322 = vpow.pop %v1321
        %v1323 = vmul.f32 %v1320, 1.442695
        %v1324 = vpow.pop %v1323
        %v1325 = vadd.f32 %v1322, 1.0
        %v1326 = vadd.f32 %v1324, 1.0
        %v1327 = vrcp.pop %v1325
        %v1328 = vmul.f32 %v1325, %v1327
        %v1329 = vsub.f32 1.0, %v1328
        %v1330 = vmul.f32 %v1327, %v1329
        %v1331 = vadd.f32 %v1327, %v1330
        %vm1332 = vweird.f32 %v1325
        %vm1333 = vweird.f32 %v1327
        %vm1334 = vmor %vm1332, %vm1333
        %v1335 = vsel %vm1334, %v1327, %v1331
        %v1336 = vand.u32 2147483647, %v1325
        %vm1337 = vcmp.eq.f32.partialorder %v1336, 8.507059e+37
        %v1338 = vand.u32 %v1325, 2147483648
        %v1339 = vor.u32 1.1754944e-38, %v1338
        %v1340 = vsel %vm1337, %v1339, %v1335
        %v1341 = vmul.f32 1.0, %v1340
        %v1342 = vrcp.pop %v1326
        %v1343 = vmul.f32 %v1326, %v1342
        %v1344 = vsub.f32 1.0, %v1343
        %v1345 = vmul.f32 %v1342, %v1344
        %v1346 = vadd.f32 %v1342, %v1345
        %vm1347 = vweird.f32 %v1326
        %vm1348 = vweird.f32 %v1342
        %vm1349 = vmor %vm1347, %vm1348
        %v1350 = vsel %vm1349, %v1342, %v1346
        %v1351 = vand.u32 2147483647, %v1326
        %vm1352 = vcmp.eq.f32.partialorder %v1351, 8.507059e+37
        %v1353 = vand.u32 %v1326, 2147483648
        %v1354 = vor.u32 1.1754944e-38, %v1353
        %v1355 = vsel %vm1352, %v1354, %v1350
        %v1356 = vmul.f32 1.0, %v1355
        %v1357 = vtanh.pop %v1317
        %v1358 = vtanh.pop %v1318
        %v1359 = vmul.f32 %v1341, %v1164
        %v1360 = vmul.f32 %v1356, %v1165
        %1363 = vrot.lane.b32.xlu0 %v1357, 32
        %v1364 = vpop.permute.xlu0 %1363
        %1365 = vrot.lane.b32.xlu0 %v1358, 32
        %v1366 = vpop.permute.xlu0 %1365
        %v1369 = vmul.f32 %v1341, %v1364
        %v1370 = vmul.f32 %v1356, %v1366
        %1373 = vrot.lane.b32.xlu0 %v1369, 32
        %v1374 = vpop.permute.xlu0 %1373
        %1375 = vrot.lane.b32.xlu0 %v1370, 32
        %v1376 = vpop.permute.xlu0 %1375
        %v1379 = vadd.f32 %v1359, %v1374
        %v1380 = vadd.f32 %v1360, %v1376
        %v1381 = vtanh.pop %v1379
        %v1382 = vtanh.pop %v1380
        %1385 = vrot.lane.b32.xlu0 %v1381, 32
        %v1386 = vpop.permute.xlu0 %1385
        %1387 = vrot.lane.b32.xlu0 %v1382, 32
        %v1388 = vpop.permute.xlu0 %1387
        %v1391 = vmul.f32 %v1341, %v1386
        %v1392 = vmul.f32 %v1356, %v1388
        %v1393 = vpack.c.bf16 %v1391, %v1391
        %v1394 = vpack.c.bf16 %v1392, %v1392
        %1396 = vrot.lane.b32.xlu0 %v1295, 64
        %v1397 = vpop.permute.xlu0 %1396
        %v1399 = vsel %vm502, %v1397, 0
        %1401 = vmatpush.bf16.msra.mxu0 0
        %1402 = vmatpush.bf16.msra.mxu0 0
        %1403 = vmatpush.bf16.msra.mxu0 0
        %1404 = vmatpush.bf16.msra.mxu0 0
        %1405 = vmatpush.bf16.msra.mxu0 0
        %1406 = vmatpush.bf16.msra.mxu0 0
        %1407 = vmatpush.bf16.msra.mxu0 %v725
        %1408 = vmatpush.bf16.msra.mxu0 %v724
        %1409 = vmatmul.bf16.gmra.mxu0 %v1399
        %v1410 = vpop.f32.mrf.mxu0
        %v1411 = vadd.f32 0.0, %v1410
        %v1412 = vpop.f32.mrf.mxu0
        %v1413 = vadd.f32 0.0, %v1412
        %1414 = vdwg.mxu0
        %v1417 = vunpack.c.l.b16 %v1393
        %v1418 = vunpack.c.l.b16 %v1394
        %v1419 = vpack.c.b16 %v1418, %v1417
        %1420 = vrot.lane.b32.xlu0 %v1419, 64
        %v1421 = vpop.permute.xlu0 %1420
        %v1423 = vsel %vm502, %v1421, 0
        %1425 = vmatpush.bf16.msra.mxu0 0
        %1426 = vmatpush.bf16.msra.mxu0 0
        %1427 = vmatpush.bf16.msra.mxu0 0
        %1428 = vmatpush.bf16.msra.mxu0 0
        %1429 = vmatpush.bf16.msra.mxu0 0
        %1430 = vmatpush.bf16.msra.mxu0 0
        %1431 = vmatpush.bf16.msra.mxu0 %v757
        %1432 = vmatpush.bf16.msra.mxu0 %v756
        %1433 = vmatmul.bf16.gmra.mxu0 %v1423
        %v1434 = vpop.f32.mrf.mxu0
        %v1435 = vadd.f32 %v1411, %v1434
        %v1436 = vpop.f32.mrf.mxu0
        %v1437 = vadd.f32 %v1413, %v1436
        %1438 = vdwg.mxu0
        %v1439 = vadd.f32 %v1435, %v779
        %v1440 = vadd.f32 %v1437, %v779
        %v1441 = vxor.u32 %v1439, 2147483648
        %v1442 = vxor.u32 %v1440, 2147483648
        %v1443 = vmul.f32 %v1441, 1.442695
        %v1444 = vpow.pop %v1443
        %v1445 = vmul.f32 %v1442, 1.442695
        %v1446 = vpow.pop %v1445
        %v1447 = vadd.f32 %v1444, 1.0
        %v1448 = vadd.f32 %v1446, 1.0
        %v1449 = vrcp.pop %v1447
        %v1450 = vmul.f32 %v1447, %v1449
        %v1451 = vsub.f32 1.0, %v1450
        %v1452 = vmul.f32 %v1449, %v1451
        %v1453 = vadd.f32 %v1449, %v1452
        %vm1454 = vweird.f32 %v1447
        %vm1455 = vweird.f32 %v1449
        %vm1456 = vmor %vm1454, %vm1455
        %v1457 = vsel %vm1456, %v1449, %v1453
        %v1458 = vand.u32 2147483647, %v1447
        %vm1459 = vcmp.eq.f32.partialorder %v1458, 8.507059e+37
        %v1460 = vand.u32 %v1447, 2147483648
        %v1461 = vor.u32 1.1754944e-38, %v1460
        %v1462 = vsel %vm1459, %v1461, %v1457
        %v1463 = vmul.f32 1.0, %v1462
        %v1464 = vrcp.pop %v1448
        %v1465 = vmul.f32 %v1448, %v1464
        %v1466 = vsub.f32 1.0, %v1465
        %v1467 = vmul.f32 %v1464, %v1466
        %v1468 = vadd.f32 %v1464, %v1467
        %vm1469 = vweird.f32 %v1448
        %vm1470 = vweird.f32 %v1464
        %vm1471 = vmor %vm1469, %vm1470
        %v1472 = vsel %vm1471, %v1464, %v1468
        %v1473 = vand.u32 2147483647, %v1448
        %vm1474 = vcmp.eq.f32.partialorder %v1473, 8.507059e+37
        %v1475 = vand.u32 %v1448, 2147483648
        %v1476 = vor.u32 1.1754944e-38, %v1475
        %v1477 = vsel %vm1474, %v1476, %v1472
        %v1478 = vmul.f32 1.0, %v1477
        %v1479 = vtanh.pop %v1439
        %v1480 = vtanh.pop %v1440
        %v1481 = vmul.f32 %v1463, %v1281
        %v1482 = vmul.f32 %v1478, %v1282
        %1485 = vrot.lane.b32.xlu0 %v1479, 32
        %v1486 = vpop.permute.xlu0 %1485
        %1487 = vrot.lane.b32.xlu0 %v1480, 32
        %v1488 = vpop.permute.xlu0 %1487
        %v1491 = vmul.f32 %v1463, %v1486
        %v1492 = vmul.f32 %v1478, %v1488
        %1495 = vrot.lane.b32.xlu0 %v1491, 32
        %v1496 = vpop.permute.xlu0 %1495
        %1497 = vrot.lane.b32.xlu0 %v1492, 32
        %v1498 = vpop.permute.xlu0 %1497
        %v1501 = vadd.f32 %v1481, %v1496
        %v1502 = vadd.f32 %v1482, %v1498
        %v1503 = vtanh.pop %v1501
        %v1504 = vtanh.pop %v1502
        %1507 = vrot.lane.b32.xlu0 %v1503, 32
        %v1508 = vpop.permute.xlu0 %1507
        %1509 = vrot.lane.b32.xlu0 %v1504, 32
        %v1510 = vpop.permute.xlu0 %1509
        %v1513 = vmul.f32 %v1463, %v1508
        %v1514 = vmul.f32 %v1478, %v1510
        %v1515 = vpack.c.bf16 %v1513, %v1513
        %v1516 = vpack.c.bf16 %v1514, %v1514
        %1517 = vrot.lane.b32.xlu0 %v1393, 64
        %v1518 = vpop.permute.xlu0 %1517
        %1519 = vrot.lane.b32.xlu0 %v1394, 64
        %v1520 = vpop.permute.xlu0 %1519
        %vm1523 = vcmask 257024
        %1524 = vst.msk [vmem:[#allocation2] sm:$0xf] %vm1523, %v1518
        %1525 = vst.msk [vmem:[#allocation2 + $0x4] sm:$0xf] %vm1523, %v1520
        %1528 = vrot.lane.b32.xlu0 %v1379, 96
        %v1529 = vpop.permute.xlu0 %1528
        %1530 = vrot.lane.b32.xlu0 %v1380, 96
        %v1531 = vpop.permute.xlu0 %1530
        %1534 = vst.msk [vmem:[#allocation3] sm:$0xff] %vm502, %v1529
        %1535 = vst.msk [vmem:[#allocation3 + $0x8] sm:$0xff] %vm502, %v1531
        %1538 = vrot.lane.b32.xlu0 %v1515, 64
        %v1539 = vpop.permute.xlu0 %1538
        %1540 = vrot.lane.b32.xlu0 %v1516, 64
        %v1541 = vpop.permute.xlu0 %1540
        %1544 = vst.msk [vmem:[%s562] sm:$0xf] %vm1523, %v1539
        %1545 = vst.msk [vmem:[%s562 + $0x4] sm:$0xf] %vm1523, %v1541
        %1548 = vrot.lane.b32.xlu0 %v1501, 96
        %v1549 = vpop.permute.xlu0 %1548
        %1550 = vrot.lane.b32.xlu0 %v1502, 96
        %v1551 = vpop.permute.xlu0 %1550
        %1554 = vst.msk [vmem:[%s567] sm:$0xff] %vm502, %v1549
        %1555 = vst.msk [vmem:[%s567 + $0x8] sm:$0xff] %vm502, %v1551
        %p1556 = scmp.eq.s32.totalorder %s32, 1
        // Predicated region
        $region81: #{tpu_custom_call.1} parent=55 // pred_check
          %p1557 = pneg %p1556
        $region82: #{tpu_custom_call.1} parent=55 // pred_check_branch
          %1559 = sbr.rel (%p1557) target = $region84
        $region83: #{tpu_custom_call.1} parent=55 // pred_region
          %v1560 = vunpack.c.l.bf16 %v1515
          %v1561 = vunpack.c.l.bf16 %v1516
          %v1562 = vld [vmem:[%s7] sm:$0x1]
          %v1564 = vperm.slane %v1562, 0
          %1565 = vrot.lane.b32.xlu0 %v1564, 64
          %v1566 = vpop.permute.xlu0 %1565
          %v1568 = vmul.f32 %v1560, %v1566
          %v1569 = vmul.f32 %v1561, %v1566
          %1572 = vrot.lane.b32.xlu0 %v1568, 64
          %v1573 = vpop.permute.xlu0 %1572
          %1574 = vrot.lane.b32.xlu0 %v1569, 64
          %v1575 = vpop.permute.xlu0 %1574
          %v1578 = vsel %vm502, %v1573, 0.0
          %1579 = vadd.xlane.f32.xlu0 %v1578
          %v1580 = vpop.xlane.xlu0 %1579
          %v1581 = vsel %vm502, %v1575, 0.0
          %1582 = vadd.xlane.f32.xlu0 %v1581
          %v1583 = vpop.xlane.xlu0 %1582
          %v1584 = vld [vmem:[#allocation5] sm:$0x1]
          %v1586 = vperm.slane %v1584, 0
          %v1588 = vadd.f32 %v1580, %v1586
          %v1589 = vadd.f32 %v1583, %v1586
          %v1590 = vxor.u32 %v1588, 2147483648
          %v1591 = vxor.u32 %v1589, 2147483648
          %v1592 = vmul.f32 %v1590, 1.442695
          %v1593 = vpow.pop %v1592
          %v1594 = vmul.f32 %v1591, 1.442695
          %v1595 = vpow.pop %v1594
          %v1596 = vadd.f32 %v1593, 1.0
          %v1597 = vadd.f32 %v1595, 1.0
          %v1598 = vrcp.pop %v1596
          %v1599 = vmul.f32 %v1596, %v1598
          %v1600 = vsub.f32 1.0, %v1599
          %v1601 = vmul.f32 %v1598, %v1600
          %v1602 = vadd.f32 %v1598, %v1601
          %vm1603 = vweird.f32 %v1596
          %vm1604 = vweird.f32 %v1598
          %vm1605 = vmor %vm1603, %vm1604
          %v1606 = vsel %vm1605, %v1598, %v1602
          %v1607 = vand.u32 2147483647, %v1596
          %vm1608 = vcmp.eq.f32.partialorder %v1607, 8.507059e+37
          %v1609 = vand.u32 %v1596, 2147483648
          %v1610 = vor.u32 1.1754944e-38, %v1609
          %v1611 = vsel %vm1608, %v1610, %v1606
          %v1612 = vmul.f32 1.0, %v1611
          %v1613 = vrcp.pop %v1597
          %v1614 = vmul.f32 %v1597, %v1613
          %v1615 = vsub.f32 1.0, %v1614
          %v1616 = vmul.f32 %v1613, %v1615
          %v1617 = vadd.f32 %v1613, %v1616
          %vm1618 = vweird.f32 %v1597
          %vm1619 = vweird.f32 %v1613
          %vm1620 = vmor %vm1618, %vm1619
          %v1621 = vsel %vm1620, %v1613, %v1617
          %v1622 = vand.u32 2147483647, %v1597
          %vm1623 = vcmp.eq.f32.partialorder %v1622, 8.507059e+37
          %v1624 = vand.u32 %v1597, 2147483648
          %v1625 = vor.u32 1.1754944e-38, %v1624
          %v1626 = vsel %vm1623, %v1625, %v1621
          %v1627 = vmul.f32 1.0, %v1626
          %vm1628 = vcmask 7168
          %1629 = vst.msk [vmem:[%s441] sm:$0xff] %vm1628, %v1612
          %1630 = vst.msk [vmem:[%s441 + $0x8] sm:$0xff] %vm1628, %v1627
        $region84: #{tpu_custom_call.1} parent=55 // pred_fallthru
          _
        %s1631 = smul.u32 2, %s31
        %p1632 = scmp.lt.s32.totalorder %s1631, 1
        %s1633 = scalar_select %p1632, %s1631, 1
        %s1634 = smul.addr %s1633, 8
        %s1635 = scalar_lea.vmem %s9, %s1634
        // Predicated region
        $region85: #{tpu_custom_call.1} parent=55 // pred_check
          %p1636 = pneg %p253
        $region86: #{tpu_custom_call.1} parent=55 // pred_check_branch
          %1638 = sbr.rel (%p1636) target = $region88
        $region87: #{tpu_custom_call.1} parent=55 // pred_region
          %s1639 = smul.u32 2, %s31
        $region88: #{tpu_custom_call.1} parent=55 // pred_fallthru
          _
        // Predicated region
        $region89: #{tpu_custom_call.1} parent=55 // pred_check
          %p1640 = pneg %p253
        $region90: #{tpu_custom_call.1} parent=55 // pred_check_branch
          %1642 = sbr.rel (%p1640) target = $region92
        $region91: #{tpu_custom_call.1} parent=55 // pred_region
          %s1643 = smul.u32 2, %s31
          %p1644 = scmp.lt.s32.totalorder %s1643, 1
          %s1645 = scalar_select %p1644, %s1643, 1
          %s1646 = smul.addr %s1645, 8
          %s1647 = scalar_lea.vmem %s9, %s1646
        $region92: #{tpu_custom_call.1} parent=55 // pred_fallthru
          _
      $region56: #{tpu_custom_call.1} parent=5 // pred_fallthru
        _
      %p1648 = scmp.le.s32.totalorder 2, %s22
      // Predicated region
      $region93: #{tpu_custom_call.1} parent=5 // pred_check
        %p1649 = pneg %p1648
      $region94: #{tpu_custom_call.1} parent=5 // pred_check_branch
        %1651 = sbr.rel (%p1649) target = $region96
      $region95: #{tpu_custom_call.1} parent=5 // pred_region
        %s1652 = ssub.s32 %s22, 2
      $region96: #{tpu_custom_call.1} parent=5 // pred_fallthru
        _
    $region6: #{tpu_custom_call.1} parent=1 // loop_footer
      %s26 = sadd.s32 1, %s22
    $region7: #{tpu_custom_call.1} parent=1 // loop_footer_branch
      %21 = sbr.rel target = $region3
    $region8: #{tpu_custom_call.1} parent=1 // loop_exit
      _
    %1653 = vsyncpa [#allocation7], 1
    %s1654 = scalar_lea.sflag [#allocation7], 1
    %1655 = vsyncpa %s1654, 1
    %1656 = vsyncpa [#allocation9], 1
    %1657 = vsyncpa [#allocation12], 1

// kernel: tpu_custom_call.1
$region0: #{tpu_custom_call.1}
  #allocation0 [shape = 'u32[]', space=smem, size = 0x4, offset = 0x4, fixed_abs, tag = 'smem constant byte address 0x4 - core index']
  #allocation1 [shape = 'u32[72,128]{1,0:T(1,128)}', space=vmem, size = 0x9000, scoped, tag = 'internal scratch']
  #allocation2 [shape = 'bf16[2,16,32]{2,1,0:T(8,128)(2,1)}', space=vmem, size = 0x2000, scoped, tag = 'scratch operand']
  #allocation3 [shape = 'f32[2,16,32]{2,1,0:T(8,128)}', space=vmem, size = 0x4000, scoped, tag = 'scratch operand']
  #allocation4 [shape = 'bf16[4,16,128]{2,1,0:T(8,128)(2,1)}', space=vmem, size = 0x4000, scoped, tag = 'scratch operand']
  #allocation5 [shape = 'f32[1,1]{1,0:T(1,128)S(1)}', space=vmem, size = 0x200, scoped, tag = 'scoped memory for tpu_custom_call.1']
  %s0 = inlined_call_operand.hbm [shape: bf16[8,16,32], index: 0, kind: input, shape index: {}]
  %s1 = inlined_call_operand.hbm [shape: bf16[32,128], index: 1, kind: input, shape index: {}]
  %s2 = inlined_call_operand.hbm [shape: bf16[32,128], index: 2, kind: input, shape index: {}]
  %s3 = inlined_call_operand.vmem [shape: f32[1,128], index: 3, kind: input, shape index: {}]
  %s4 = inlined_call_operand.hbm [shape: bf16[1,32,128], index: 4, kind: input, shape index: {}]
  %s5 = inlined_call_operand.hbm [shape: bf16[1,32,128], index: 5, kind: input, shape index: {}]
  %s6 = inlined_call_operand.vmem [shape: f32[1,1,128], index: 6, kind: input, shape index: {}]
  %s7 = inlined_call_operand.vmem [shape: f32[1,32], index: 7, kind: input, shape index: {}]
  %s8 = inlined_call_operand.<no memory space> [shape: f32[1,1], index: 8, kind: input, shape index: {}]
  %s9 = inlined_call_operand.vmem [shape: f32[16,1], index: 9, kind: output, shape index: {}]
  %s10 = sld [smem:[#allocation0]]
  $region97: #{tpu_custom_call.1} parent=0
    _
  %s12 = ssub.s32 1, %s10
  %s13 = scalar_select 0, %s12, %s10
  %v14 = vstv %s8
  %15 = vst [vmem:[#allocation5] sm:$0x1] %v14
  $region1: #{tpu_custom_call.1} parent=0
    #allocation6 [shape = 'u8[32768]{0}', space=vmem, size = 0x8000, scoped, tag = 'input window, operand 0']
    #allocation7 [shape = 's32[2]{0}', space=sflag, size = 0x8, scoped, tag = 'scoped memory for tpu_custom_call.1']
    #allocation8 [shape = 'u8[8192]{0}', space=vmem, size = 0x2000, scoped, tag = 'input window, operand 1, single buffered']
    #allocation9 [shape = 's32[1]{0}', space=sflag, size = 0x4, scoped, tag = 'scoped memory for tpu_custom_call.1']
    #allocation10 [shape = 'u8[8192]{0}', space=vmem, size = 0x2000, scoped, tag = 'input window, operand 2, single buffered']
    #allocation11 [shape = 'u8[8192]{0}', space=vmem, size = 0x2000, scoped, tag = 'input window, operand 4, single buffered']
    #allocation12 [shape = 's32[1]{0}', space=sflag, size = 0x4, scoped, tag = 'scoped memory for tpu_custom_call.1']
    #allocation13 [shape = 'u8[8192]{0}', space=vmem, size = 0x2000, scoped, tag = 'input window, operand 5, single buffered']
    %16 = vsyncpa [#allocation7], 0
    %s17 = scalar_lea.sflag [#allocation7], 1
    %18 = vsyncpa %s17, 0
    %19 = vsyncpa [#allocation9], 0
    %20 = vsyncpa [#allocation12], 0
    loop: start=0, step=1, limit=4
    $region2: #{tpu_custom_call.1} parent=1 // loop_pre_header
      _
    $region3: #{tpu_custom_call.1} parent=1 // loop_header
      %s22 = sphi 0, %s26
      %p23 = scmp.ge.s32.totalorder %s22, 4
      %s29 = sphi 0, %s41
      %s30 = sphi 0, %s37
      %s31 = sphi 0, %s29
      %s32 = sphi 0, %s30
      %s33 = sphi 0, %s31
      %s34 = sphi 0, %s32
      %s46 = sphi 0, %s48
      %s49 = sphi 0, %s46
      %s50 = sphi 0, %s49
      %s66 = sphi 0, %s50
      %s70 = sphi 0, %s70
      %s72 = sphi 0, %s70
      %s73 = sphi 0, %s72
      %s87 = sphi 0, %s73
      %s91 = sphi 0, %s91
      %s93 = sphi 0, %s91
      %s94 = sphi 0, %s93
      %s108 = sphi 0, %s94
      %s112 = sphi 0, %s112
      %s114 = sphi 0, %s112
      %s115 = sphi 0, %s114
      %s129 = sphi 0, %s115
      %s133 = sphi 0, %s133
      %s135 = sphi 0, %s133
      %s136 = sphi 0, %s135
      %s150 = sphi 0, %s136
      %s154 = sphi 0, %s154
      %s156 = sphi 0, %s154
      %s157 = sphi 0, %s156
      %s171 = sphi 0, %s157
      %s175 = sphi 0, %s175
      %s177 = sphi 0, %s175
      %s178 = sphi 0, %s177
      %s192 = sphi 0, %s178
      %s196 = sphi 0, %s196
      %s198 = sphi 0, %s196
      %s199 = sphi 0, %s198
      %s213 = sphi 0, %s199
      %s217 = sphi 0, %s217
      %s219 = sphi 0, %s217
      %s220 = sphi 0, %s219
      %s234 = sphi 0, %s220
      %s240 = sphi 0, %s242
      %s243 = sphi 0, %s240
      %s244 = sphi 0, %s243
      %s260 = sphi 0, %s244
    $region4: #{tpu_custom_call.1} parent=1 // loop_header_branch
      %25 = sbr.rel (%p23) target = $region8
    $region5: #{tpu_custom_call.1} parent=1 // loop_body
      %s27 = ssub.s32 %s22, 1
      %s28 = ssub.s32 %s22, 2
      %s35 = sadd.s32 1, %s30
      %p36 = scmp.ge.s32.totalorder %s35, 2
      %s37 = scalar_select %p36, 0, %s35
      %s38 = sadd.s32 1, %s29
      %s39 = scalar_select %p36, %s38, %s29
      %p40 = scmp.ge.s32.totalorder %s39, 1
      %s41 = scalar_select %p40, 0, %s39
      %s42 = ssub.s32 %s30, %s37
      %s43 = ssub.s32 %s29, %s41
      %s44 = sor.u32 %s42, %s43
      %p45 = scmp.eq.s32.totalorder %s44, 0
      %s47 = sadd.s32 %s46, 1
      %s48 = scalar_select %p45, %s46, %s47
      %p51 = pneg %p45
      %p52 = scmp.eq.s32.totalorder %s22, 1
      %p53 = por %p51, %p52
      %p54 = scmp.ne.s32.totalorder %s46, %s49
      %p55 = scmp.eq.s32.totalorder %s22, 0
      %p56 = por %p54, %p55
      %p57 = scmp.ne.s32.totalorder %s46, %s49
      %p58 = scmp.eq.s32.totalorder %s27, 1
      %p59 = por %p57, %p58
      %p60 = scmp.ne.s32.totalorder %s49, %s50
      %p61 = scmp.eq.s32.totalorder %s27, 0
      %p62 = por %p60, %p61
      %p63 = scmp.ne.s32.totalorder %s49, %s50
      %p64 = scmp.eq.s32.totalorder %s28, 1
      %p65 = por %p63, %p64
      %p67 = scmp.ne.s32.totalorder %s50, %s66
      %p68 = scmp.eq.s32.totalorder %s28, 0
      %p69 = por %p67, %p68
      %s71 = sadd.s32 %s70, 1
      %p74 = scmp.eq.s32.totalorder %s22, 1
      %p75 = scmp.ne.s32.totalorder %s70, %s72
      %p76 = scmp.eq.s32.totalorder %s22, 0
      %p77 = por %p75, %p76
      %p78 = scmp.ne.s32.totalorder %s70, %s72
      %p79 = scmp.eq.s32.totalorder %s27, 1
      %p80 = por %p78, %p79
      %p81 = scmp.ne.s32.totalorder %s72, %s73
      %p82 = scmp.eq.s32.totalorder %s27, 0
      %p83 = por %p81, %p82
      %p84 = scmp.ne.s32.totalorder %s72, %s73
      %p85 = scmp.eq.s32.totalorder %s28, 1
      %p86 = por %p84, %p85
      %p88 = scmp.ne.s32.totalorder %s73, %s87
      %p89 = scmp.eq.s32.totalorder %s28, 0
      %p90 = por %p88, %p89
      %s92 = sadd.s32 %s91, 1
      %p95 = scmp.eq.s32.totalorder %s22, 1
      %p96 = scmp.ne.s32.totalorder %s91, %s93
      %p97 = scmp.eq.s32.totalorder %s22, 0
      %p98 = por %p96, %p97
      %p99 = scmp.ne.s32.totalorder %s91, %s93
      %p100 = scmp.eq.s32.totalorder %s27, 1
      %p101 = por %p99, %p100
      %p102 = scmp.ne.s32.totalorder %s93, %s94
      %p103 = scmp.eq.s32.totalorder %s27, 0
      %p104 = por %p102, %p103
      %p105 = scmp.ne.s32.totalorder %s93, %s94
      %p106 = scmp.eq.s32.totalorder %s28, 1
      %p107 = por %p105, %p106
      %p109 = scmp.ne.s32.totalorder %s94, %s108
      %p110 = scmp.eq.s32.totalorder %s28, 0
      %p111 = por %p109, %p110
      %s113 = sadd.s32 %s112, 1
      %p116 = scmp.eq.s32.totalorder %s22, 1
      %p117 = scmp.ne.s32.totalorder %s112, %s114
      %p118 = scmp.eq.s32.totalorder %s22, 0
      %p119 = por %p117, %p118
      %p120 = scmp.ne.s32.totalorder %s112, %s114
      %p121 = scmp.eq.s32.totalorder %s27, 1
      %p122 = por %p120, %p121
      %p123 = scmp.ne.s32.totalorder %s114, %s115
      %p124 = scmp.eq.s32.totalorder %s27, 0
      %p125 = por %p123, %p124
      %p126 = scmp.ne.s32.totalorder %s114, %s115
      %p127 = scmp.eq.s32.totalorder %s28, 1
      %p128 = por %p126, %p127
      %p130 = scmp.ne.s32.totalorder %s115, %s129
      %p131 = scmp.eq.s32.totalorder %s28, 0
      %p132 = por %p130, %p131
      %s134 = sadd.s32 %s133, 1
      %p137 = scmp.eq.s32.totalorder %s22, 1
      %p138 = scmp.ne.s32.totalorder %s133, %s135
      %p139 = scmp.eq.s32.totalorder %s22, 0
      %p140 = por %p138, %p139
      %p141 = scmp.ne.s32.totalorder %s133, %s135
      %p142 = scmp.eq.s32.totalorder %s27, 1
      %p143 = por %p141, %p142
      %p144 = scmp.ne.s32.totalorder %s135, %s136
      %p145 = scmp.eq.s32.totalorder %s27, 0
      %p146 = por %p144, %p145
      %p147 = scmp.ne.s32.totalorder %s135, %s136
      %p148 = scmp.eq.s32.totalorder %s28, 1
      %p149 = por %p147, %p148
      %p151 = scmp.ne.s32.totalorder %s136, %s150
      %p152 = scmp.eq.s32.totalorder %s28, 0
      %p153 = por %p151, %p152
      %s155 = sadd.s32 %s154, 1
      %p158 = scmp.eq.s32.totalorder %s22, 1
      %p159 = scmp.ne.s32.totalorder %s154, %s156
      %p160 = scmp.eq.s32.totalorder %s22, 0
      %p161 = por %p159, %p160
      %p162 = scmp.ne.s32.totalorder %s154, %s156
      %p163 = scmp.eq.s32.totalorder %s27, 1
      %p164 = por %p162, %p163
      %p165 = scmp.ne.s32.totalorder %s156, %s157
      %p166 = scmp.eq.s32.totalorder %s27, 0
      %p167 = por %p165, %p166
      %p168 = scmp.ne.s32.totalorder %s156, %s157
      %p169 = scmp.eq.s32.totalorder %s28, 1
      %p170 = por %p168, %p169
      %p172 = scmp.ne.s32.totalorder %s157, %s171
      %p173 = scmp.eq.s32.totalorder %s28, 0
      %p174 = por %p172, %p173
      %s176 = sadd.s32 %s175, 1
      %p179 = scmp.eq.s32.totalorder %s22, 1
      %p180 = scmp.ne.s32.totalorder %s175, %s177
      %p181 = scmp.eq.s32.totalorder %s22, 0
      %p182 = por %p180, %p181
      %p183 = scmp.ne.s32.totalorder %s175, %s177
      %p184 = scmp.eq.s32.totalorder %s27, 1
      %p185 = por %p183, %p184
      %p186 = scmp.ne.s32.totalorder %s177, %s178
      %p187 = scmp.eq.s32.totalorder %s27, 0
      %p188 = por %p186, %p187
      %p189 = scmp.ne.s32.totalorder %s177, %s178
      %p190 = scmp.eq.s32.totalorder %s28, 1
      %p191 = por %p189, %p190
      %p193 = scmp.ne.s32.totalorder %s178, %s192
      %p194 = scmp.eq.s32.totalorder %s28, 0
      %p195 = por %p193, %p194
      %s197 = sadd.s32 %s196, 1
      %p200 = scmp.eq.s32.totalorder %s22, 1
      %p201 = scmp.ne.s32.totalorder %s196, %s198
      %p202 = scmp.eq.s32.totalorder %s22, 0
      %p203 = por %p201, %p202
      %p204 = scmp.ne.s32.totalorder %s196, %s198
      %p205 = scmp.eq.s32.totalorder %s27, 1
      %p206 = por %p204, %p205
      %p207 = scmp.ne.s32.totalorder %s198, %s199
      %p208 = scmp.eq.s32.totalorder %s27, 0
      %p209 = por %p207, %p208
      %p210 = scmp.ne.s32.totalorder %s198, %s199
      %p211 = scmp.eq.s32.totalorder %s28, 1
      %p212 = por %p210, %p211
      %p214 = scmp.ne.s32.totalorder %s199, %s213
      %p215 = scmp.eq.s32.totalorder %s28, 0
      %p216 = por %p214, %p215
      %s218 = sadd.s32 %s217, 1
      %p221 = scmp.eq.s32.totalorder %s22, 1
      %p222 = scmp.ne.s32.totalorder %s217, %s219
      %p223 = scmp.eq.s32.totalorder %s22, 0
      %p224 = por %p222, %p223
      %p225 = scmp.ne.s32.totalorder %s217, %s219
      %p226 = scmp.eq.s32.totalorder %s27, 1
      %p227 = por %p225, %p226
      %p228 = scmp.ne.s32.totalorder %s219, %s220
      %p229 = scmp.eq.s32.totalorder %s27, 0
      %p230 = por %p228, %p229
      %p231 = scmp.ne.s32.totalorder %s219, %s220
      %p232 = scmp.eq.s32.totalorder %s28, 1
      %p233 = por %p231, %p232
      %p235 = scmp.ne.s32.totalorder %s220, %s234
      %p236 = scmp.eq.s32.totalorder %s28, 0
      %p237 = por %p235, %p236
      %s238 = ssub.s32 %s29, %s41
      %p239 = scmp.eq.s32.totalorder %s238, 0
      %s241 = sadd.s32 %s240, 1
      %s242 = scalar_select %p239, %s240, %s241
      %p245 = pneg %p239
      %p246 = scmp.eq.s32.totalorder %s22, 1
      %p247 = por %p245, %p246
      %p248 = scmp.ne.s32.totalorder %s240, %s243
      %p249 = scmp.eq.s32.totalorder %s22, 0
      %p250 = por %p248, %p249
      %p251 = scmp.ne.s32.totalorder %s240, %s243
      %p252 = scmp.eq.s32.totalorder %s27, 1
      %p253 = por %p251, %p252
      %p254 = scmp.ne.s32.totalorder %s243, %s244
      %p255 = scmp.eq.s32.totalorder %s27, 0
      %p256 = por %p254, %p255
      %p257 = scmp.ne.s32.totalorder %s243, %s244
      %p258 = scmp.eq.s32.totalorder %s28, 1
      %p259 = por %p257, %p258
      %p261 = scmp.ne.s32.totalorder %s244, %s260
      %p262 = scmp.eq.s32.totalorder %s28, 0
      %p263 = por %p261, %p262
      %p264 = scmp.le.s32.totalorder 1, %s22
      %p265 = scmp.lt.s32.totalorder %s22, 3
      %p266 = pnand %p264, %p265
      %p267 = pneg %p266
      // Predicated region
      $region9: #{tpu_custom_call.1} parent=5 // pred_check
        _
      $region10: #{tpu_custom_call.1} parent=5 // pred_check_branch
        %269 = sbr.rel (%p266) target = $region12
      $region11: #{tpu_custom_call.1} parent=5 // pred_region
        %s270 = ssub.s32 %s22, 1
        // Predicated region
        $region13: #{tpu_custom_call.1} parent=11 // pred_check
          %p271 = pneg %p83
        $region14: #{tpu_custom_call.1} parent=11 // pred_check_branch
          %273 = sbr.rel (%p271) target = $region16
        $region15: #{tpu_custom_call.1} parent=11 // pred_region
          %275 = vsyncadd [#allocation9], 0
          %s276 = sshll.u32 %s1, 4
          %s277 = int_to_ptr.hbm [resolvable:$true] %s276
          %s278 = sshll.u32 [#allocation8], 4
          %s279 = int_to_ptr.vmem [resolvable:$true] %s278
          %284 = dma.hbm_to_vmem [thread:$0]  %s277, 256, %s279, [#allocation9], 64, 64, 4
        $region16: #{tpu_custom_call.1} parent=11 // pred_fallthru
          _
        // Predicated region
        $region17: #{tpu_custom_call.1} parent=11 // pred_check
          %p285 = pneg %p104
        $region18: #{tpu_custom_call.1} parent=11 // pred_check_branch
          %287 = sbr.rel (%p285) target = $region20
        $region19: #{tpu_custom_call.1} parent=11 // pred_region
          %289 = vsyncadd [#allocation9], 0
          %s290 = sshll.u32 %s2, 4
          %s291 = int_to_ptr.hbm [resolvable:$true] %s290
          %s292 = sshll.u32 [#allocation10], 4
          %s293 = int_to_ptr.vmem [resolvable:$true] %s292
          %298 = dma.hbm_to_vmem [thread:$0]  %s291, 256, %s293, [#allocation9], 64, 64, 4
        $region20: #{tpu_custom_call.1} parent=11 // pred_fallthru
          _
        // Predicated region
        $region21: #{tpu_custom_call.1} parent=11 // pred_check
          %p299 = pneg %p125
        $region22: #{tpu_custom_call.1} parent=11 // pred_check_branch
          %301 = sbr.rel (%p299) target = $region24
        $region23: #{tpu_custom_call.1} parent=11 // pred_region
          _
        $region24: #{tpu_custom_call.1} parent=11 // pred_fallthru
          _
        // Predicated region
        $region25: #{tpu_custom_call.1} parent=11 // pred_check
          %p302 = pneg %p146
        $region26: #{tpu_custom_call.1} parent=11 // pred_check_branch
          %304 = sbr.rel (%p302) target = $region28
        $region27: #{tpu_custom_call.1} parent=11 // pred_region
          %306 = vsyncadd [#allocation12], 0
          %s307 = sshll.u32 %s4, 4
          %s308 = int_to_ptr.hbm [resolvable:$true] %s307
          %s309 = sshll.u32 [#allocation11], 4
          %s310 = int_to_ptr.vmem [resolvable:$true] %s309
          %315 = dma.hbm_to_vmem [thread:$0]  %s308, 256, %s310, [#allocation12], 64, 64, 4
        $region28: #{tpu_custom_call.1} parent=11 // pred_fallthru
          _
        // Predicated region
        $region29: #{tpu_custom_call.1} parent=11 // pred_check
          %p316 = pneg %p167
        $region30: #{tpu_custom_call.1} parent=11 // pred_check_branch
          %318 = sbr.rel (%p316) target = $region32
        $region31: #{tpu_custom_call.1} parent=11 // pred_region
          %320 = vsyncadd [#allocation12], 0
          %s321 = sshll.u32 %s5, 4
          %s322 = int_to_ptr.hbm [resolvable:$true] %s321
          %s323 = sshll.u32 [#allocation13], 4
          %s324 = int_to_ptr.vmem [resolvable:$true] %s323
          %329 = dma.hbm_to_vmem [thread:$0]  %s322, 256, %s324, [#allocation12], 64, 64, 4
        $region32: #{tpu_custom_call.1} parent=11 // pred_fallthru
          _
        // Predicated region
        $region33: #{tpu_custom_call.1} parent=11 // pred_check
          %p330 = pneg %p188
        $region34: #{tpu_custom_call.1} parent=11 // pred_check_branch
          %332 = sbr.rel (%p330) target = $region36
        $region35: #{tpu_custom_call.1} parent=11 // pred_region
          _
        $region36: #{tpu_custom_call.1} parent=11 // pred_fallthru
          _
        // Predicated region
        $region37: #{tpu_custom_call.1} parent=11 // pred_check
          %p333 = pneg %p209
        $region38: #{tpu_custom_call.1} parent=11 // pred_check_branch
          %335 = sbr.rel (%p333) target = $region40
        $region39: #{tpu_custom_call.1} parent=11 // pred_region
          _
        $region40: #{tpu_custom_call.1} parent=11 // pred_fallthru
          _
        // Predicated region
        $region41: #{tpu_custom_call.1} parent=11 // pred_check
          %p336 = pneg %p230
        $region42: #{tpu_custom_call.1} parent=11 // pred_check_branch
          %338 = sbr.rel (%p336) target = $region44
        $region43: #{tpu_custom_call.1} parent=11 // pred_region
          _
        $region44: #{tpu_custom_call.1} parent=11 // pred_fallthru
          _
      $region12: #{tpu_custom_call.1} parent=5 // pred_fallthru
        _
      %p339 = scmp.lt.s32.totalorder %s22, 2
      // Predicated region
      $region45: #{tpu_custom_call.1} parent=5 // pred_check
        %p340 = pneg %p339
      $region46: #{tpu_custom_call.1} parent=5 // pred_check_branch
        %342 = sbr.rel (%p340) target = $region48
      $region47: #{tpu_custom_call.1} parent=5 // pred_region
        // Predicated region
        $region49: #{tpu_custom_call.1} parent=47 // pred_check
          %p343 = pneg %p56
        $region50: #{tpu_custom_call.1} parent=47 // pred_check_branch
          %345 = sbr.rel (%p343) target = $region52
        $region51: #{tpu_custom_call.1} parent=47 // pred_region
          %s346 = sand.u32 %s46, 1
          %s347 = scalar_lea.sflag [#allocation7], %s346
          %s348 = sand.u32 %s46, 1
          %s349 = smul.addr %s348, 32
          %s350 = scalar_lea.vmem [#allocation6], %s349
          %s351 = smul.u32 4, %s30
          %s352 = smul.u32 2, %s29
          %354 = vsyncadd %s347, 0
          %s355 = smul.addr %s351, 2
          %s356 = sadd.s32 %s352, %s355
          %s357 = smul.addr %s356, 4
          %s358 = scalar_lea.hbm %s0, %s357
          %s359 = sshll.u32 %s358, 4
          %s360 = int_to_ptr.hbm [resolvable:$true] %s359
          %s361 = sshll.u32 %s350, 4
          %s362 = int_to_ptr.vmem [resolvable:$true] %s361
          %367 = dma.hbm_to_vmem [thread:$0]  %s360, 512, %s362, %s347, 64, 64, 4
        $region52: #{tpu_custom_call.1} parent=47 // pred_fallthru
          _
      $region48: #{tpu_custom_call.1} parent=5 // pred_fallthru
        _
      %p368 = scmp.le.s32.totalorder 1, %s22
      %p369 = scmp.lt.s32.totalorder %s22, 3
      %p370 = pnand %p368, %p369
      %p371 = pneg %p370
      // Predicated region
      $region53: #{tpu_custom_call.1} parent=5 // pred_check
        _
      $region54: #{tpu_custom_call.1} parent=5 // pred_check_branch
        %373 = sbr.rel (%p370) target = $region56
      $region55: #{tpu_custom_call.1} parent=5 // pred_region
        %s374 = ssub.s32 %s22, 1
        %s375 = sand.u32 %s49, 1
        %s376 = scalar_lea.sflag [#allocation7], %s375
        %s377 = sand.u32 %s49, 1
        %s378 = smul.addr %s377, 32
        %s379 = scalar_lea.vmem [#allocation6], %s378
        // Predicated region
        $region57: #{tpu_custom_call.1} parent=55 // pred_check
          %p380 = pneg %p62
        $region58: #{tpu_custom_call.1} parent=55 // pred_check_branch
          %382 = sbr.rel (%p380) target = $region60
        $region59: #{tpu_custom_call.1} parent=55 // pred_region
          %384 = dma.done %s376, 512
        $region60: #{tpu_custom_call.1} parent=55 // pred_fallthru
          _
        // Predicated region
        $region61: #{tpu_custom_call.1} parent=55 // pred_check
          %p385 = pneg %p83
        $region62: #{tpu_custom_call.1} parent=55 // pred_check_branch
          %387 = sbr.rel (%p385) target = $region64
        $region63: #{tpu_custom_call.1} parent=55 // pred_region
          %389 = dma.done [#allocation9], 256
        $region64: #{tpu_custom_call.1} parent=55 // pred_fallthru
          _
        // Predicated region
        $region65: #{tpu_custom_call.1} parent=55 // pred_check
          %p390 = pneg %p104
        $region66: #{tpu_custom_call.1} parent=55 // pred_check_branch
          %392 = sbr.rel (%p390) target = $region68
        $region67: #{tpu_custom_call.1} parent=55 // pred_region
          %394 = dma.done [#allocation9], 256
        $region68: #{tpu_custom_call.1} parent=55 // pred_fallthru
          _
        // Predicated region
        $region69: #{tpu_custom_call.1} parent=55 // pred_check
          %p395 = pneg %p146
        $region70: #{tpu_custom_call.1} parent=55 // pred_check_branch
          %397 = sbr.rel (%p395) target = $region72
        $region71: #{tpu_custom_call.1} parent=55 // pred_region
          %399 = dma.done [#allocation12], 256
        $region72: #{tpu_custom_call.1} parent=55 // pred_fallthru
          _
        // Predicated region
        $region73: #{tpu_custom_call.1} parent=55 // pred_check
          %p400 = pneg %p167
        $region74: #{tpu_custom_call.1} parent=55 // pred_check_branch
          %402 = sbr.rel (%p400) target = $region76
        $region75: #{tpu_custom_call.1} parent=55 // pred_region
          %404 = dma.done [#allocation12], 256
        $region76: #{tpu_custom_call.1} parent=55 // pred_fallthru
          _
        %s405 = sand.u32 %s49, 1
        %s406 = scalar_lea.sflag [#allocation7], %s405
        %s407 = sand.u32 %s49, 1
        %s408 = smul.addr %s407, 32
        %s409 = scalar_lea.vmem [#allocation6], %s408
        %p410 = pneg %p62
        %p411 = pneg %p59
        %p412 = pneg %p83
        %p413 = pneg %p80
        %p414 = pneg %p104
        %p415 = pneg %p101
        %p416 = pneg %p125
        %p417 = pneg %p122
        %p418 = pneg %p146
        %p419 = pneg %p143
        %p420 = pneg %p167
        %p421 = pneg %p164
        %p422 = pneg %p188
        %p423 = pneg %p185
        %p424 = pneg %p209
        %p425 = pneg %p206
        %p426 = pneg %p230
        %p427 = pneg %p227
        %p428 = pneg %p256
        %p429 = pneg %p253
        %s430 = smul.u32 2, %s31
        %p431 = scmp.lt.s32.totalorder %s430, 1
        %s432 = scalar_select %p431, %s430, 1
        %s433 = smul.addr %s432, 8
        %s434 = scalar_lea.vmem %s9, %s433
        %s435 = smul.u32 4, %s32
        %s436 = smul.u32 2, %s31
        %s437 = smul.u32 2, %s31
        %p438 = scmp.lt.s32.totalorder %s437, 1
        %s439 = scalar_select %p438, %s437, 1
        %s440 = smul.addr %s439, 8
        %s441 = scalar_lea.vmem %s9, %s440
        %s442 = smul.u32 2, %s31
        %p444 = scmp.eq.s32.totalorder %s32, 0
        // Predicated region
        $region77: #{tpu_custom_call.1} parent=55 // pred_check
          %p445 = pneg %p444
        $region78: #{tpu_custom_call.1} parent=55 // pred_check_branch
          %447 = sbr.rel (%p445) target = $region80
        $region79: #{tpu_custom_call.1} parent=55 // pred_region
          %vm448 = vcmask 257024
          %449 = vst.msk [vmem:[#allocation2] sm:$0xf] %vm448, 0
          %450 = vst.msk [vmem:[#allocation2 + $0x4] sm:$0xf] %vm448, 0
          %451 = vst.msk [vmem:[#allocation2 + $0x8] sm:$0xf] %vm448, 0
          %452 = vst.msk [vmem:[#allocation2 + $0xc] sm:$0xf] %vm448, 0
          %vm453 = vcmask 261120
          %454 = vst.msk [vmem:[#allocation3] sm:$0xff] %vm453, 0.0
          %455 = vst.msk [vmem:[#allocation3 + $0x8] sm:$0xff] %vm453, 0.0
          %456 = vst.msk [vmem:[#allocation3 + $0x10] sm:$0xff] %vm453, 0.0
          %457 = vst.msk [vmem:[#allocation3 + $0x18] sm:$0xff] %vm453, 0.0
        $region80: #{tpu_custom_call.1} parent=55 // pred_fallthru
          _
        %v458 = vld [vmem:[%s379] sm:$0xf]
        %v459 = vld [vmem:[%s379 + $0x4] sm:$0xf]
        %v460 = vld [vmem:[%s379 + $0x8] sm:$0xf]
        %v461 = vld [vmem:[%s379 + $0xc] sm:$0xf]
        %v462 = vld [vmem:[%s379 + $0x10] sm:$0xf]
        %v463 = vld [vmem:[%s379 + $0x14] sm:$0xf]
        %v464 = vld [vmem:[%s379 + $0x18] sm:$0xf]
        %v465 = vld [vmem:[%s379 + $0x1c] sm:$0xf]
        %v466 = vld [vmem:[#allocation8] sm:$0xf]
        %v467 = vld [vmem:[#allocation8 + $0x4] sm:$0xf]
        %v468 = vld [vmem:[#allocation8 + $0x8] sm:$0xf]
        %v469 = vld [vmem:[#allocation8 + $0xc] sm:$0xf]
        %v478 = vunpack.c.l.b16 %v458
        %v479 = vunpack.c.l.b16 %v459
        %v480 = vunpack.c.l.b16 %v460
        %v481 = vunpack.c.l.b16 %v461
        %v482 = vunpack.c.l.b16 %v462
        %v483 = vunpack.c.l.b16 %v463
        %v484 = vunpack.c.l.b16 %v464
        %v485 = vunpack.c.l.b16 %v465
        %v486 = vpack.c.b16 %v479, %v478
        %v487 = vpack.c.b16 %v481, %v480
        %v488 = vpack.c.b16 %v483, %v482
        %v489 = vpack.c.b16 %v485, %v484
        %v494 = vunpack.c.l.b16 %v466
        %v495 = vunpack.c.l.b16 %v467
        %v496 = vunpack.c.l.b16 %v468
        %v497 = vunpack.c.l.b16 %v469
        %v498 = vpack.c.b16 %v495, %v494
        %v499 = vpack.c.b16 %v497, %v496
        %vm502 = vcmask 261120
        %v504 = vsel %vm502, %v486, 0
        %v507 = vsel %vm502, %v487, 0
        %v510 = vsel %vm502, %v488, 0
        %v513 = vsel %vm502, %v489, 0
        %515 = vmatpush.bf16.msra.mxu0 0
        %516 = vmatpush.bf16.msra.mxu0 0
        %517 = vmatpush.bf16.msra.mxu0 0
        %518 = vmatpush.bf16.msra.mxu0 0
        %519 = vmatpush.bf16.msra.mxu0 0
        %520 = vmatpush.bf16.msra.mxu0 0
        %521 = vmatpush.bf16.msra.mxu0 %v499
        %522 = vmatpush.bf16.msra.mxu0 %v498
        %523 = vmatmul.bf16.gmra.mxu0 %v504
        %v524 = vpop.f32.mrf.mxu0
        %v525 = vadd.f32 0.0, %v524
        %v526 = vpop.f32.mrf.mxu0
        %v527 = vadd.f32 0.0, %v526
        %528 = vmatmul.bf16.gmra.mxu0 %v507
        %v529 = vpop.f32.mrf.mxu0
        %v530 = vadd.f32 0.0, %v529
        %v531 = vpop.f32.mrf.mxu0
        %v532 = vadd.f32 0.0, %v531
        %533 = vmatmul.bf16.gmra.mxu0 %v510
        %v534 = vpop.f32.mrf.mxu0
        %v535 = vadd.f32 0.0, %v534
        %v536 = vpop.f32.mrf.mxu0
        %v537 = vadd.f32 0.0, %v536
        %538 = vmatmul.bf16.gmra.mxu0 %v513
        %v539 = vpop.f32.mrf.mxu0
        %v540 = vadd.f32 0.0, %v539
        %v541 = vpop.f32.mrf.mxu0
        %v542 = vadd.f32 0.0, %v541
        %543 = vdwg.mxu0
        %v544 = vpack.c.bf16 %v525, %v525
        %v545 = vpack.c.bf16 %v527, %v527
        %v546 = vpack.c.bf16 %v530, %v530
        %v547 = vpack.c.bf16 %v532, %v532
        %v548 = vpack.c.bf16 %v535, %v535
        %v549 = vpack.c.bf16 %v537, %v537
        %v550 = vpack.c.bf16 %v540, %v540
        %v551 = vpack.c.bf16 %v542, %v542
        %552 = vst [vmem:[#allocation4] sm:$0xf] %v544
        %553 = vst [vmem:[#allocation4 + $0x4] sm:$0xf] %v545
        %554 = vst [vmem:[#allocation4 + $0x8] sm:$0xf] %v546
        %555 = vst [vmem:[#allocation4 + $0xc] sm:$0xf] %v547
        %556 = vst [vmem:[#allocation4 + $0x10] sm:$0xf] %v548
        %557 = vst [vmem:[#allocation4 + $0x14] sm:$0xf] %v549
        %558 = vst [vmem:[#allocation4 + $0x18] sm:$0xf] %v550
        %559 = vst [vmem:[#allocation4 + $0x1c] sm:$0xf] %v551
        %v560 = vld [vmem:[#allocation2] sm:$0xf]
        %v561 = vld [vmem:[#allocation2 + $0x4] sm:$0xf]
        %s562 = scalar_lea.vmem [#allocation2], 8
        %v563 = vld [vmem:[%s562] sm:$0xf]
        %v564 = vld [vmem:[%s562 + $0x4] sm:$0xf]
        %v565 = vld [vmem:[#allocation3] sm:$0xff]
        %v566 = vld [vmem:[#allocation3 + $0x8] sm:$0xff]
        %s567 = scalar_lea.vmem [#allocation3], 16
        %v568 = vld [vmem:[%s567] sm:$0xff]
        %v569 = vld [vmem:[%s567 + $0x8] sm:$0xff]
        %v570 = vld [vmem:[#allocation4] sm:$0xf]
        %v571 = vld [vmem:[#allocation4 + $0x4] sm:$0xf]
        %v572 = vunpack.c.l.bf16 %v570
        %v573 = vunpack.c.l.bf16 %v571
        %v574 = vld [vmem:[%s3] sm:$0x1]
        %v576 = vperm.slane %v574, 0
        %v578 = vadd.f32 %v572, %v576
        %v579 = vadd.f32 %v573, %v576
        %v580 = vld [vmem:[#allocation10] sm:$0xf]
        %v581 = vld [vmem:[#allocation10 + $0x4] sm:$0xf]
        %v582 = vld [vmem:[#allocation10 + $0x8] sm:$0xf]
        %v583 = vld [vmem:[#allocation10 + $0xc] sm:$0xf]
        %v586 = vunpack.c.l.b16 %v560
        %v587 = vunpack.c.l.b16 %v561
        %v588 = vpack.c.b16 %v587, %v586
        %v593 = vunpack.c.l.b16 %v580
        %v594 = vunpack.c.l.b16 %v581
        %v595 = vunpack.c.l.b16 %v582
        %v596 = vunpack.c.l.b16 %v583
        %v597 = vpack.c.b16 %v594, %v593
        %v598 = vpack.c.b16 %v596, %v595
        %v602 = vsel %vm502, %v588, 0
        %604 = vmatpush.bf16.msra.mxu0 0
        %605 = vmatpush.bf16.msra.mxu0 0
        %606 = vmatpush.bf16.msra.mxu0 0
        %607 = vmatpush.bf16.msra.mxu0 0
        %608 = vmatpush.bf16.msra.mxu0 0
        %609 = vmatpush.bf16.msra.mxu0 0
        %610 = vmatpush.bf16.msra.mxu0 %v598
        %611 = vmatpush.bf16.msra.mxu0 %v597
        %612 = vmatmul.bf16.gmra.mxu0 %v602
        %v613 = vpop.f32.mrf.mxu0
        %v614 = vadd.f32 0.0, %v613
        %v615 = vpop.f32.mrf.mxu0
        %v616 = vadd.f32 0.0, %v615
        %617 = vdwg.mxu0
        %v618 = vadd.f32 %v578, %v614
        %v619 = vadd.f32 %v579, %v616
        %v620 = vxor.u32 %v618, 2147483648
        %v621 = vxor.u32 %v619, 2147483648
        %v622 = vmul.f32 %v620, 1.442695
        %v623 = vpow.pop %v622
        %v624 = vmul.f32 %v621, 1.442695
        %v625 = vpow.pop %v624
        %v626 = vadd.f32 %v623, 1.0
        %v627 = vadd.f32 %v625, 1.0
        %v628 = vrcp.pop %v626
        %v629 = vmul.f32 %v626, %v628
        %v630 = vsub.f32 1.0, %v629
        %v631 = vmul.f32 %v628, %v630
        %v632 = vadd.f32 %v628, %v631
        %vm633 = vweird.f32 %v626
        %vm634 = vweird.f32 %v628
        %vm635 = vmor %vm633, %vm634
        %v636 = vsel %vm635, %v628, %v632
        %v637 = vand.u32 2147483647, %v626
        %vm638 = vcmp.eq.f32.partialorder %v637, 8.507059e+37
        %v639 = vand.u32 %v626, 2147483648
        %v640 = vor.u32 1.1754944e-38, %v639
        %v641 = vsel %vm638, %v640, %v636
        %v642 = vmul.f32 1.0, %v641
        %v643 = vrcp.pop %v627
        %v644 = vmul.f32 %v627, %v643
        %v645 = vsub.f32 1.0, %v644
        %v646 = vmul.f32 %v643, %v645
        %v647 = vadd.f32 %v643, %v646
        %vm648 = vweird.f32 %v627
        %vm649 = vweird.f32 %v643
        %vm650 = vmor %vm648, %vm649
        %v651 = vsel %vm650, %v643, %v647
        %v652 = vand.u32 2147483647, %v627
        %vm653 = vcmp.eq.f32.partialorder %v652, 8.507059e+37
        %v654 = vand.u32 %v627, 2147483648
        %v655 = vor.u32 1.1754944e-38, %v654
        %v656 = vsel %vm653, %v655, %v651
        %v657 = vmul.f32 1.0, %v656
        %v658 = vtanh.pop %v618
        %v659 = vtanh.pop %v619
        %662 = vrot.lane.b32.xlu0 %v565, 32
        %v663 = vpop.permute.xlu0 %662
        %664 = vrot.lane.b32.xlu0 %v566, 32
        %v665 = vpop.permute.xlu0 %664
        %v668 = vmul.f32 %v642, %v663
        %v669 = vmul.f32 %v657, %v665
        %672 = vrot.lane.b32.xlu0 %v658, 32
        %v673 = vpop.permute.xlu0 %672
        %674 = vrot.lane.b32.xlu0 %v659, 32
        %v675 = vpop.permute.xlu0 %674
        %v678 = vmul.f32 %v642, %v673
        %v679 = vmul.f32 %v657, %v675
        %682 = vrot.lane.b32.xlu0 %v678, 32
        %v683 = vpop.permute.xlu0 %682
        %684 = vrot.lane.b32.xlu0 %v679, 32
        %v685 = vpop.permute.xlu0 %684
        %v688 = vadd.f32 %v668, %v683
        %v689 = vadd.f32 %v669, %v685
        %v690 = vtanh.pop %v688
        %v691 = vtanh.pop %v689
        %694 = vrot.lane.b32.xlu0 %v690, 32
        %v695 = vpop.permute.xlu0 %694
        %696 = vrot.lane.b32.xlu0 %v691, 32
        %v697 = vpop.permute.xlu0 %696
        %v700 = vmul.f32 %v642, %v695
        %v701 = vmul.f32 %v657, %v697
        %v702 = vpack.c.bf16 %v701, %v700
        %v703 = vld [vmem:[#allocation11] sm:$0xf]
        %v704 = vld [vmem:[#allocation11 + $0x4] sm:$0xf]
        %v705 = vld [vmem:[#allocation11 + $0x8] sm:$0xf]
        %v706 = vld [vmem:[#allocation11 + $0xc] sm:$0xf]
        %v707 = vld [vmem:[#allocation13] sm:$0xf]
        %v708 = vld [vmem:[#allocation13 + $0x4] sm:$0xf]
        %v709 = vld [vmem:[#allocation13 + $0x8] sm:$0xf]
        %v710 = vld [vmem:[#allocation13 + $0xc] sm:$0xf]
        %v713 = vunpack.c.l.b16 %v563
        %v714 = vunpack.c.l.b16 %v564
        %v715 = vpack.c.b16 %v714, %v713
        %v720 = vunpack.c.l.b16 %v707
        %v721 = vunpack.c.l.b16 %v708
        %v722 = vunpack.c.l.b16 %v709
        %v723 = vunpack.c.l.b16 %v710
        %v724 = vpack.c.b16 %v721, %v720
        %v725 = vpack.c.b16 %v723, %v722
        %v729 = vsel %vm502, %v715, 0
        %731 = vmatpush.bf16.msra.mxu0 0
        %732 = vmatpush.bf16.msra.mxu0 0
        %733 = vmatpush.bf16.msra.mxu0 0
        %734 = vmatpush.bf16.msra.mxu0 0
        %735 = vmatpush.bf16.msra.mxu0 0
        %736 = vmatpush.bf16.msra.mxu0 0
        %737 = vmatpush.bf16.msra.mxu0 %v725
        %738 = vmatpush.bf16.msra.mxu0 %v724
        %739 = vmatmul.bf16.gmra.mxu0 %v729
        %v740 = vpop.f32.mrf.mxu0
        %v741 = vadd.f32 0.0, %v740
        %v742 = vpop.f32.mrf.mxu0
        %v743 = vadd.f32 0.0, %v742
        %744 = vdwg.mxu0
        %746 = vrot.lane.b32.xlu0 %v702, 64
        %v747 = vpop.permute.xlu0 %746
        %v752 = vunpack.c.l.b16 %v703
        %v753 = vunpack.c.l.b16 %v704
        %v754 = vunpack.c.l.b16 %v705
        %v755 = vunpack.c.l.b16 %v706
        %v756 = vpack.c.b16 %v753, %v752
        %v757 = vpack.c.b16 %v755, %v754
        %v761 = vsel %vm502, %v747, 0
        %763 = vmatpush.bf16.msra.mxu0 0
        %764 = vmatpush.bf16.msra.mxu0 0
        %765 = vmatpush.bf16.msra.mxu0 0
        %766 = vmatpush.bf16.msra.mxu0 0
        %767 = vmatpush.bf16.msra.mxu0 0
        %768 = vmatpush.bf16.msra.mxu0 0
        %769 = vmatpush.bf16.msra.mxu0 %v757
        %770 = vmatpush.bf16.msra.mxu0 %v756
        %771 = vmatmul.bf16.gmra.mxu0 %v761
        %v772 = vpop.f32.mrf.mxu0
        %v773 = vadd.f32 %v741, %v772
        %v774 = vpop.f32.mrf.mxu0
        %v775 = vadd.f32 %v743, %v774
        %776 = vdwg.mxu0
        %v777 = vld [vmem:[%s6] sm:$0x1]
        %v779 = vperm.slane %v777, 0
        %v781 = vadd.f32 %v773, %v779
        %v782 = vadd.f32 %v775, %v779
        %v783 = vxor.u32 %v781, 2147483648
        %v784 = vxor.u32 %v782, 2147483648
        %v785 = vmul.f32 %v783, 1.442695
        %v786 = vpow.pop %v785
        %v787 = vmul.f32 %v784, 1.442695
        %v788 = vpow.pop %v787
        %v789 = vadd.f32 %v786, 1.0
        %v790 = vadd.f32 %v788, 1.0
        %v791 = vrcp.pop %v789
        %v792 = vmul.f32 %v789, %v791
        %v793 = vsub.f32 1.0, %v792
        %v794 = vmul.f32 %v791, %v793
        %v795 = vadd.f32 %v791, %v794
        %vm796 = vweird.f32 %v789
        %vm797 = vweird.f32 %v791
        %vm798 = vmor %vm796, %vm797
        %v799 = vsel %vm798, %v791, %v795
        %v800 = vand.u32 2147483647, %v789
        %vm801 = vcmp.eq.f32.partialorder %v800, 8.507059e+37
        %v802 = vand.u32 %v789, 2147483648
        %v803 = vor.u32 1.1754944e-38, %v802
        %v804 = vsel %vm801, %v803, %v799
        %v805 = vmul.f32 1.0, %v804
        %v806 = vrcp.pop %v790
        %v807 = vmul.f32 %v790, %v806
        %v808 = vsub.f32 1.0, %v807
        %v809 = vmul.f32 %v806, %v808
        %v810 = vadd.f32 %v806, %v809
        %vm811 = vweird.f32 %v790
        %vm812 = vweird.f32 %v806
        %vm813 = vmor %vm811, %vm812
        %v814 = vsel %vm813, %v806, %v810
        %v815 = vand.u32 2147483647, %v790
        %vm816 = vcmp.eq.f32.partialorder %v815, 8.507059e+37
        %v817 = vand.u32 %v790, 2147483648
        %v818 = vor.u32 1.1754944e-38, %v817
        %v819 = vsel %vm816, %v818, %v814
        %v820 = vmul.f32 1.0, %v819
        %v821 = vtanh.pop %v781
        %v822 = vtanh.pop %v782
        %825 = vrot.lane.b32.xlu0 %v568, 32
        %v826 = vpop.permute.xlu0 %825
        %827 = vrot.lane.b32.xlu0 %v569, 32
        %v828 = vpop.permute.xlu0 %827
        %v831 = vmul.f32 %v805, %v826
        %v832 = vmul.f32 %v820, %v828
        %835 = vrot.lane.b32.xlu0 %v821, 32
        %v836 = vpop.permute.xlu0 %835
        %837 = vrot.lane.b32.xlu0 %v822, 32
        %v838 = vpop.permute.xlu0 %837
        %v841 = vmul.f32 %v805, %v836
        %v842 = vmul.f32 %v820, %v838
        %845 = vrot.lane.b32.xlu0 %v841, 32
        %v846 = vpop.permute.xlu0 %845
        %847 = vrot.lane.b32.xlu0 %v842, 32
        %v848 = vpop.permute.xlu0 %847
        %v851 = vadd.f32 %v831, %v846
        %v852 = vadd.f32 %v832, %v848
        %v853 = vtanh.pop %v851
        %v854 = vtanh.pop %v852
        %857 = vrot.lane.b32.xlu0 %v853, 32
        %v858 = vpop.permute.xlu0 %857
        %859 = vrot.lane.b32.xlu0 %v854, 32
        %v860 = vpop.permute.xlu0 %859
        %v863 = vmul.f32 %v805, %v858
        %v864 = vmul.f32 %v820, %v860
        %v865 = vpack.c.bf16 %v864, %v863
        %s866 = scalar_lea.vmem [#allocation4], 8
        %v867 = vld [vmem:[%s866] sm:$0xf]
        %v868 = vld [vmem:[%s866 + $0x4] sm:$0xf]
        %v869 = vunpack.c.l.bf16 %v867
        %v870 = vunpack.c.l.bf16 %v868
        %v871 = vadd.f32 %v869, %v576
        %v872 = vadd.f32 %v870, %v576
        %873 = vmatpush.bf16.msra.mxu0 0
        %874 = vmatpush.bf16.msra.mxu0 0
        %875 = vmatpush.bf16.msra.mxu0 0
        %876 = vmatpush.bf16.msra.mxu0 0
        %877 = vmatpush.bf16.msra.mxu0 0
        %878 = vmatpush.bf16.msra.mxu0 0
        %879 = vmatpush.bf16.msra.mxu0 %v598
        %880 = vmatpush.bf16.msra.mxu0 %v597
        %881 = vmatmul.bf16.gmra.mxu0 %v761
        %v882 = vpop.f32.mrf.mxu0
        %v883 = vadd.f32 0.0, %v882
        %v884 = vpop.f32.mrf.mxu0
        %v885 = vadd.f32 0.0, %v884
        %886 = vdwg.mxu0
        %v887 = vadd.f32 %v871, %v883
        %v888 = vadd.f32 %v872, %v885
        %v889 = vxor.u32 %v887, 2147483648
        %v890 = vxor.u32 %v888, 2147483648
        %v891 = vmul.f32 %v889, 1.442695
        %v892 = vpow.pop %v891
        %v893 = vmul.f32 %v890, 1.442695
        %v894 = vpow.pop %v893
        %v895 = vadd.f32 %v892, 1.0
        %v896 = vadd.f32 %v894, 1.0
        %v897 = vrcp.pop %v895
        %v898 = vmul.f32 %v895, %v897
        %v899 = vsub.f32 1.0, %v898
        %v900 = vmul.f32 %v897, %v899
        %v901 = vadd.f32 %v897, %v900
        %vm902 = vweird.f32 %v895
        %vm903 = vweird.f32 %v897
        %vm904 = vmor %vm902, %vm903
        %v905 = vsel %vm904, %v897, %v901
        %v906 = vand.u32 2147483647, %v895
        %vm907 = vcmp.eq.f32.partialorder %v906, 8.507059e+37
        %v908 = vand.u32 %v895, 2147483648
        %v909 = vor.u32 1.1754944e-38, %v908
        %v910 = vsel %vm907, %v909, %v905
        %v911 = vmul.f32 1.0, %v910
        %v912 = vrcp.pop %v896
        %v913 = vmul.f32 %v896, %v912
        %v914 = vsub.f32 1.0, %v913
        %v915 = vmul.f32 %v912, %v914
        %v916 = vadd.f32 %v912, %v915
        %vm917 = vweird.f32 %v896
        %vm918 = vweird.f32 %v912
        %vm919 = vmor %vm917, %vm918
        %v920 = vsel %vm919, %v912, %v916
        %v921 = vand.u32 2147483647, %v896
        %vm922 = vcmp.eq.f32.partialorder %v921, 8.507059e+37
        %v923 = vand.u32 %v896, 2147483648
        %v924 = vor.u32 1.1754944e-38, %v923
        %v925 = vsel %vm922, %v924, %v920
        %v926 = vmul.f32 1.0, %v925
        %v927 = vtanh.pop %v887
        %v928 = vtanh.pop %v888
        %v929 = vmul.f32 %v911, %v688
        %v930 = vmul.f32 %v926, %v689
        %933 = vrot.lane.b32.xlu0 %v927, 32
        %v934 = vpop.permute.xlu0 %933
        %935 = vrot.lane.b32.xlu0 %v928, 32
        %v936 = vpop.permute.xlu0 %935
        %v939 = vmul.f32 %v911, %v934
        %v940 = vmul.f32 %v926, %v936
        %943 = vrot.lane.b32.xlu0 %v939, 32
        %v944 = vpop.permute.xlu0 %943
        %945 = vrot.lane.b32.xlu0 %v940, 32
        %v946 = vpop.permute.xlu0 %945
        %v949 = vadd.f32 %v929, %v944
        %v950 = vadd.f32 %v930, %v946
        %v951 = vtanh.pop %v949
        %v952 = vtanh.pop %v950
        %955 = vrot.lane.b32.xlu0 %v951, 32
        %v956 = vpop.permute.xlu0 %955
        %957 = vrot.lane.b32.xlu0 %v952, 32
        %v958 = vpop.permute.xlu0 %957
        %v961 = vmul.f32 %v911, %v956
        %v962 = vmul.f32 %v926, %v958
        %v963 = vpack.c.bf16 %v962, %v961
        %965 = vrot.lane.b32.xlu0 %v865, 64
        %v966 = vpop.permute.xlu0 %965
        %v968 = vsel %vm502, %v966, 0
        %970 = vmatpush.bf16.msra.mxu0 0
        %971 = vmatpush.bf16.msra.mxu0 0
        %972 = vmatpush.bf16.msra.mxu0 0
        %973 = vmatpush.bf16.msra.mxu0 0
        %974 = vmatpush.bf16.msra.mxu0 0
        %975 = vmatpush.bf16.msra.mxu0 0
        %976 = vmatpush.bf16.msra.mxu0 %v725
        %977 = vmatpush.bf16.msra.mxu0 %v724
        %978 = vmatmul.bf16.gmra.mxu0 %v968
        %v979 = vpop.f32.mrf.mxu0
        %v980 = vadd.f32 0.0, %v979
        %v981 = vpop.f32.mrf.mxu0
        %v982 = vadd.f32 0.0, %v981
        %983 = vdwg.mxu0
        %985 = vrot.lane.b32.xlu0 %v963, 64
        %v986 = vpop.permute.xlu0 %985
        %v988 = vsel %vm502, %v986, 0
        %990 = vmatpush.bf16.msra.mxu0 0
        %991 = vmatpush.bf16.msra.mxu0 0
        %992 = vmatpush.bf16.msra.mxu0 0
        %993 = vmatpush.bf16.msra.mxu0 0
        %994 = vmatpush.bf16.msra.mxu0 0
        %995 = vmatpush.bf16.msra.mxu0 0
        %996 = vmatpush.bf16.msra.mxu0 %v757
        %997 = vmatpush.bf16.msra.mxu0 %v756
        %998 = vmatmul.bf16.gmra.mxu0 %v988
        %v999 = vpop.f32.mrf.mxu0
        %v1000 = vadd.f32 %v980, %v999
        %v1001 = vpop.f32.mrf.mxu0
        %v1002 = vadd.f32 %v982, %v1001
        %1003 = vdwg.mxu0
        %v1004 = vadd.f32 %v1000, %v779
        %v1005 = vadd.f32 %v1002, %v779
        %v1006 = vxor.u32 %v1004, 2147483648
        %v1007 = vxor.u32 %v1005, 2147483648
        %v1008 = vmul.f32 %v1006, 1.442695
        %v1009 = vpow.pop %v1008
        %v1010 = vmul.f32 %v1007, 1.442695
        %v1011 = vpow.pop %v1010
        %v1012 = vadd.f32 %v1009, 1.0
        %v1013 = vadd.f32 %v1011, 1.0
        %v1014 = vrcp.pop %v1012
        %v1015 = vmul.f32 %v1012, %v1014
        %v1016 = vsub.f32 1.0, %v1015
        %v1017 = vmul.f32 %v1014, %v1016
        %v1018 = vadd.f32 %v1014, %v1017
        %vm1019 = vweird.f32 %v1012
        %vm1020 = vweird.f32 %v1014
        %vm1021 = vmor %vm1019, %vm1020
        %v1022 = vsel %vm1021, %v1014, %v1018
        %v1023 = vand.u32 2147483647, %v1012
        %vm1024 = vcmp.eq.f32.partialorder %v1023, 8.507059e+37
        %v1025 = vand.u32 %v1012, 2147483648
        %v1026 = vor.u32 1.1754944e-38, %v1025
        %v1027 = vsel %vm1024, %v1026, %v1022
        %v1028 = vmul.f32 1.0, %v1027
        %v1029 = vrcp.pop %v1013
        %v1030 = vmul.f32 %v1013, %v1029
        %v1031 = vsub.f32 1.0, %v1030
        %v1032 = vmul.f32 %v1029, %v1031
        %v1033 = vadd.f32 %v1029, %v1032
        %vm1034 = vweird.f32 %v1013
        %vm1035 = vweird.f32 %v1029
        %vm1036 = vmor %vm1034, %vm1035
        %v1037 = vsel %vm1036, %v1029, %v1033
        %v1038 = vand.u32 2147483647, %v1013
        %vm1039 = vcmp.eq.f32.partialorder %v1038, 8.507059e+37
        %v1040 = vand.u32 %v1013, 2147483648
        %v1041 = vor.u32 1.1754944e-38, %v1040
        %v1042 = vsel %vm1039, %v1041, %v1037
        %v1043 = vmul.f32 1.0, %v1042
        %v1044 = vtanh.pop %v1004
        %v1045 = vtanh.pop %v1005
        %v1046 = vmul.f32 %v1028, %v851
        %v1047 = vmul.f32 %v1043, %v852
        %1050 = vrot.lane.b32.xlu0 %v1044, 32
        %v1051 = vpop.permute.xlu0 %1050
        %1052 = vrot.lane.b32.xlu0 %v1045, 32
        %v1053 = vpop.permute.xlu0 %1052
        %v1056 = vmul.f32 %v1028, %v1051
        %v1057 = vmul.f32 %v1043, %v1053
        %1060 = vrot.lane.b32.xlu0 %v1056, 32
        %v1061 = vpop.permute.xlu0 %1060
        %1062 = vrot.lane.b32.xlu0 %v1057, 32
        %v1063 = vpop.permute.xlu0 %1062
        %v1066 = vadd.f32 %v1046, %v1061
        %v1067 = vadd.f32 %v1047, %v1063
        %v1068 = vtanh.pop %v1066
        %v1069 = vtanh.pop %v1067
        %1072 = vrot.lane.b32.xlu0 %v1068, 32
        %v1073 = vpop.permute.xlu0 %1072
        %1074 = vrot.lane.b32.xlu0 %v1069, 32
        %v1075 = vpop.permute.xlu0 %1074
        %v1078 = vmul.f32 %v1028, %v1073
        %v1079 = vmul.f32 %v1043, %v1075
        %v1080 = vpack.c.bf16 %v1079, %v1078
        %s1081 = scalar_lea.vmem [#allocation4], 16
        %v1082 = vld [vmem:[%s1081] sm:$0xf]
        %v1083 = vld [vmem:[%s1081 + $0x4] sm:$0xf]
        %v1084 = vunpack.c.l.bf16 %v1082
        %v1085 = vunpack.c.l.bf16 %v1083
        %v1086 = vadd.f32 %v1084, %v576
        %v1087 = vadd.f32 %v1085, %v576
        %1088 = vmatpush.bf16.msra.mxu0 0
        %1089 = vmatpush.bf16.msra.mxu0 0
        %1090 = vmatpush.bf16.msra.mxu0 0
        %1091 = vmatpush.bf16.msra.mxu0 0
        %1092 = vmatpush.bf16.msra.mxu0 0
        %1093 = vmatpush.bf16.msra.mxu0 0
        %1094 = vmatpush.bf16.msra.mxu0 %v598
        %1095 = vmatpush.bf16.msra.mxu0 %v597
        %1096 = vmatmul.bf16.gmra.mxu0 %v988
        %v1097 = vpop.f32.mrf.mxu0
        %v1098 = vadd.f32 0.0, %v1097
        %v1099 = vpop.f32.mrf.mxu0
        %v1100 = vadd.f32 0.0, %v1099
        %1101 = vdwg.mxu0
        %v1102 = vadd.f32 %v1086, %v1098
        %v1103 = vadd.f32 %v1087, %v1100
        %v1104 = vxor.u32 %v1102, 2147483648
        %v1105 = vxor.u32 %v1103, 2147483648
        %v1106 = vmul.f32 %v1104, 1.442695
        %v1107 = vpow.pop %v1106
        %v1108 = vmul.f32 %v1105, 1.442695
        %v1109 = vpow.pop %v1108
        %v1110 = vadd.f32 %v1107, 1.0
        %v1111 = vadd.f32 %v1109, 1.0
        %v1112 = vrcp.pop %v1110
        %v1113 = vmul.f32 %v1110, %v1112
        %v1114 = vsub.f32 1.0, %v1113
        %v1115 = vmul.f32 %v1112, %v1114
        %v1116 = vadd.f32 %v1112, %v1115
        %vm1117 = vweird.f32 %v1110
        %vm1118 = vweird.f32 %v1112
        %vm1119 = vmor %vm1117, %vm1118
        %v1120 = vsel %vm1119, %v1112, %v1116
        %v1121 = vand.u32 2147483647, %v1110
        %vm1122 = vcmp.eq.f32.partialorder %v1121, 8.507059e+37
        %v1123 = vand.u32 %v1110, 2147483648
        %v1124 = vor.u32 1.1754944e-38, %v1123
        %v1125 = vsel %vm1122, %v1124, %v1120
        %v1126 = vmul.f32 1.0, %v1125
        %v1127 = vrcp.pop %v1111
        %v1128 = vmul.f32 %v1111, %v1127
        %v1129 = vsub.f32 1.0, %v1128
        %v1130 = vmul.f32 %v1127, %v1129
        %v1131 = vadd.f32 %v1127, %v1130
        %vm1132 = vweird.f32 %v1111
        %vm1133 = vweird.f32 %v1127
        %vm1134 = vmor %vm1132, %vm1133
        %v1135 = vsel %vm1134, %v1127, %v1131
        %v1136 = vand.u32 2147483647, %v1111
        %vm1137 = vcmp.eq.f32.partialorder %v1136, 8.507059e+37
        %v1138 = vand.u32 %v1111, 2147483648
        %v1139 = vor.u32 1.1754944e-38, %v1138
        %v1140 = vsel %vm1137, %v1139, %v1135
        %v1141 = vmul.f32 1.0, %v1140
        %v1142 = vtanh.pop %v1102
        %v1143 = vtanh.pop %v1103
        %v1144 = vmul.f32 %v1126, %v949
        %v1145 = vmul.f32 %v1141, %v950
        %1148 = vrot.lane.b32.xlu0 %v1142, 32
        %v1149 = vpop.permute.xlu0 %1148
        %1150 = vrot.lane.b32.xlu0 %v1143, 32
        %v1151 = vpop.permute.xlu0 %1150
        %v1154 = vmul.f32 %v1126, %v1149
        %v1155 = vmul.f32 %v1141, %v1151
        %1158 = vrot.lane.b32.xlu0 %v1154, 32
        %v1159 = vpop.permute.xlu0 %1158
        %1160 = vrot.lane.b32.xlu0 %v1155, 32
        %v1161 = vpop.permute.xlu0 %1160
        %v1164 = vadd.f32 %v1144, %v1159
        %v1165 = vadd.f32 %v1145, %v1161
        %v1166 = vtanh.pop %v1164
        %v1167 = vtanh.pop %v1165
        %1170 = vrot.lane.b32.xlu0 %v1166, 32
        %v1171 = vpop.permute.xlu0 %1170
        %1172 = vrot.lane.b32.xlu0 %v1167, 32
        %v1173 = vpop.permute.xlu0 %1172
        %v1176 = vmul.f32 %v1126, %v1171
        %v1177 = vmul.f32 %v1141, %v1173
        %v1178 = vpack.c.bf16 %v1177, %v1176
        %1180 = vrot.lane.b32.xlu0 %v1080, 64
        %v1181 = vpop.permute.xlu0 %1180
        %v1183 = vsel %vm502, %v1181, 0
        %1185 = vmatpush.bf16.msra.mxu0 0
        %1186 = vmatpush.bf16.msra.mxu0 0
        %1187 = vmatpush.bf16.msra.mxu0 0
        %1188 = vmatpush.bf16.msra.mxu0 0
        %1189 = vmatpush.bf16.msra.mxu0 0
        %1190 = vmatpush.bf16.msra.mxu0 0
        %1191 = vmatpush.bf16.msra.mxu0 %v725
        %1192 = vmatpush.bf16.msra.mxu0 %v724
        %1193 = vmatmul.bf16.gmra.mxu0 %v1183
        %v1194 = vpop.f32.mrf.mxu0
        %v1195 = vadd.f32 0.0, %v1194
        %v1196 = vpop.f32.mrf.mxu0
        %v1197 = vadd.f32 0.0, %v1196
        %1198 = vdwg.mxu0
        %1200 = vrot.lane.b32.xlu0 %v1178, 64
        %v1201 = vpop.permute.xlu0 %1200
        %v1203 = vsel %vm502, %v1201, 0
        %1205 = vmatpush.bf16.msra.mxu0 0
        %1206 = vmatpush.bf16.msra.mxu0 0
        %1207 = vmatpush.bf16.msra.mxu0 0
        %1208 = vmatpush.bf16.msra.mxu0 0
        %1209 = vmatpush.bf16.msra.mxu0 0
        %1210 = vmatpush.bf16.msra.mxu0 0
        %1211 = vmatpush.bf16.msra.mxu0 %v757
        %1212 = vmatpush.bf16.msra.mxu0 %v756
        %1213 = vmatmul.bf16.gmra.mxu0 %v1203
        %v1214 = vpop.f32.mrf.mxu0
        %v1215 = vadd.f32 %v1195, %v1214
        %v1216 = vpop.f32.mrf.mxu0
        %v1217 = vadd.f32 %v1197, %v1216
        %1218 = vdwg.mxu0
        %v1219 = vadd.f32 %v1215, %v779
        %v1220 = vadd.f32 %v1217, %v779
        %v1221 = vxor.u32 %v1219, 2147483648
        %v1222 = vxor.u32 %v1220, 2147483648
        %v1223 = vmul.f32 %v1221, 1.442695
        %v1224 = vpow.pop %v1223
        %v1225 = vmul.f32 %v1222, 1.442695
        %v1226 = vpow.pop %v1225
        %v1227 = vadd.f32 %v1224, 1.0
        %v1228 = vadd.f32 %v1226, 1.0
        %v1229 = vrcp.pop %v1227
        %v1230 = vmul.f32 %v1227, %v1229
        %v1231 = vsub.f32 1.0, %v1230
        %v1232 = vmul.f32 %v1229, %v1231
        %v1233 = vadd.f32 %v1229, %v1232
        %vm1234 = vweird.f32 %v1227
        %vm1235 = vweird.f32 %v1229
        %vm1236 = vmor %vm1234, %vm1235
        %v1237 = vsel %vm1236, %v1229, %v1233
        %v1238 = vand.u32 2147483647, %v1227
        %vm1239 = vcmp.eq.f32.partialorder %v1238, 8.507059e+37
        %v1240 = vand.u32 %v1227, 2147483648
        %v1241 = vor.u32 1.1754944e-38, %v1240
        %v1242 = vsel %vm1239, %v1241, %v1237
        %v1243 = vmul.f32 1.0, %v1242
        %v1244 = vrcp.pop %v1228
        %v1245 = vmul.f32 %v1228, %v1244
        %v1246 = vsub.f32 1.0, %v1245
        %v1247 = vmul.f32 %v1244, %v1246
        %v1248 = vadd.f32 %v1244, %v1247
        %vm1249 = vweird.f32 %v1228
        %vm1250 = vweird.f32 %v1244
        %vm1251 = vmor %vm1249, %vm1250
        %v1252 = vsel %vm1251, %v1244, %v1248
        %v1253 = vand.u32 2147483647, %v1228
        %vm1254 = vcmp.eq.f32.partialorder %v1253, 8.507059e+37
        %v1255 = vand.u32 %v1228, 2147483648
        %v1256 = vor.u32 1.1754944e-38, %v1255
        %v1257 = vsel %vm1254, %v1256, %v1252
        %v1258 = vmul.f32 1.0, %v1257
        %v1259 = vtanh.pop %v1219
        %v1260 = vtanh.pop %v1220
        %v1261 = vmul.f32 %v1243, %v1066
        %v1262 = vmul.f32 %v1258, %v1067
        %1265 = vrot.lane.b32.xlu0 %v1259, 32
        %v1266 = vpop.permute.xlu0 %1265
        %1267 = vrot.lane.b32.xlu0 %v1260, 32
        %v1268 = vpop.permute.xlu0 %1267
        %v1271 = vmul.f32 %v1243, %v1266
        %v1272 = vmul.f32 %v1258, %v1268
        %1275 = vrot.lane.b32.xlu0 %v1271, 32
        %v1276 = vpop.permute.xlu0 %1275
        %1277 = vrot.lane.b32.xlu0 %v1272, 32
        %v1278 = vpop.permute.xlu0 %1277
        %v1281 = vadd.f32 %v1261, %v1276
        %v1282 = vadd.f32 %v1262, %v1278
        %v1283 = vtanh.pop %v1281
        %v1284 = vtanh.pop %v1282
        %1287 = vrot.lane.b32.xlu0 %v1283, 32
        %v1288 = vpop.permute.xlu0 %1287
        %1289 = vrot.lane.b32.xlu0 %v1284, 32
        %v1290 = vpop.permute.xlu0 %1289
        %v1293 = vmul.f32 %v1243, %v1288
        %v1294 = vmul.f32 %v1258, %v1290
        %v1295 = vpack.c.bf16 %v1294, %v1293
        %s1296 = scalar_lea.vmem [#allocation4], 24
        %v1297 = vld [vmem:[%s1296] sm:$0xf]
        %v1298 = vld [vmem:[%s1296 + $0x4] sm:$0xf]
        %v1299 = vunpack.c.l.bf16 %v1297
        %v1300 = vunpack.c.l.bf16 %v1298
        %v1301 = vadd.f32 %v1299, %v576
        %v1302 = vadd.f32 %v1300, %v576
        %1303 = vmatpush.bf16.msra.mxu0 0
        %1304 = vmatpush.bf16.msra.mxu0 0
        %1305 = vmatpush.bf16.msra.mxu0 0
        %1306 = vmatpush.bf16.msra.mxu0 0
        %1307 = vmatpush.bf16.msra.mxu0 0
        %1308 = vmatpush.bf16.msra.mxu0 0
        %1309 = vmatpush.bf16.msra.mxu0 %v598
        %1310 = vmatpush.bf16.msra.mxu0 %v597
        %1311 = vmatmul.bf16.gmra.mxu0 %v1203
        %v1312 = vpop.f32.mrf.mxu0
        %v1313 = vadd.f32 0.0, %v1312
        %v1314 = vpop.f32.mrf.mxu0
        %v1315 = vadd.f32 0.0, %v1314
        %1316 = vdwg.mxu0
        %v1317 = vadd.f32 %v1301, %v1313
        %v1318 = vadd.f32 %v1302, %v1315
        %v1319 = vxor.u32 %v1317, 2147483648
        %v1320 = vxor.u32 %v1318, 2147483648
        %v1321 = vmul.f32 %v1319, 1.442695
        %v1322 = vpow.pop %v1321
        %v1323 = vmul.f32 %v1320, 1.442695
        %v1324 = vpow.pop %v1323
        %v1325 = vadd.f32 %v1322, 1.0
        %v1326 = vadd.f32 %v1324, 1.0
        %v1327 = vrcp.pop %v1325
        %v1328 = vmul.f32 %v1325, %v1327
        %v1329 = vsub.f32 1.0, %v1328
        %v1330 = vmul.f32 %v1327, %v1329
        %v1331 = vadd.f32 %v1327, %v1330
        %vm1332 = vweird.f32 %v1325
        %vm1333 = vweird.f32 %v1327
        %vm1334 = vmor %vm1332, %vm1333
        %v1335 = vsel %vm1334, %v1327, %v1331
        %v1336 = vand.u32 2147483647, %v1325
        %vm1337 = vcmp.eq.f32.partialorder %v1336, 8.507059e+37
        %v1338 = vand.u32 %v1325, 2147483648
        %v1339 = vor.u32 1.1754944e-38, %v1338
        %v1340 = vsel %vm1337, %v1339, %v1335
        %v1341 = vmul.f32 1.0, %v1340
        %v1342 = vrcp.pop %v1326
        %v1343 = vmul.f32 %v1326, %v1342
        %v1344 = vsub.f32 1.0, %v1343
        %v1345 = vmul.f32 %v1342, %v1344
        %v1346 = vadd.f32 %v1342, %v1345
        %vm1347 = vweird.f32 %v1326
        %vm1348 = vweird.f32 %v1342
        %vm1349 = vmor %vm1347, %vm1348
        %v1350 = vsel %vm1349, %v1342, %v1346
        %v1351 = vand.u32 2147483647, %v1326
        %vm1352 = vcmp.eq.f32.partialorder %v1351, 8.507059e+37
        %v1353 = vand.u32 %v1326, 2147483648
        %v1354 = vor.u32 1.1754944e-38, %v1353
        %v1355 = vsel %vm1352, %v1354, %v1350
        %v1356 = vmul.f32 1.0, %v1355
        %v1357 = vtanh.pop %v1317
        %v1358 = vtanh.pop %v1318
        %v1359 = vmul.f32 %v1341, %v1164
        %v1360 = vmul.f32 %v1356, %v1165
        %1363 = vrot.lane.b32.xlu0 %v1357, 32
        %v1364 = vpop.permute.xlu0 %1363
        %1365 = vrot.lane.b32.xlu0 %v1358, 32
        %v1366 = vpop.permute.xlu0 %1365
        %v1369 = vmul.f32 %v1341, %v1364
        %v1370 = vmul.f32 %v1356, %v1366
        %1373 = vrot.lane.b32.xlu0 %v1369, 32
        %v1374 = vpop.permute.xlu0 %1373
        %1375 = vrot.lane.b32.xlu0 %v1370, 32
        %v1376 = vpop.permute.xlu0 %1375
        %v1379 = vadd.f32 %v1359, %v1374
        %v1380 = vadd.f32 %v1360, %v1376
        %v1381 = vtanh.pop %v1379
        %v1382 = vtanh.pop %v1380
        %1385 = vrot.lane.b32.xlu0 %v1381, 32
        %v1386 = vpop.permute.xlu0 %1385
        %1387 = vrot.lane.b32.xlu0 %v1382, 32
        %v1388 = vpop.permute.xlu0 %1387
        %v1391 = vmul.f32 %v1341, %v1386
        %v1392 = vmul.f32 %v1356, %v1388
        %v1393 = vpack.c.bf16 %v1391, %v1391
        %v1394 = vpack.c.bf16 %v1392, %v1392
        %1396 = vrot.lane.b32.xlu0 %v1295, 64
        %v1397 = vpop.permute.xlu0 %1396
        %v1399 = vsel %vm502, %v1397, 0
        %1401 = vmatpush.bf16.msra.mxu0 0
        %1402 = vmatpush.bf16.msra.mxu0 0
        %1403 = vmatpush.bf16.msra.mxu0 0
        %1404 = vmatpush.bf16.msra.mxu0 0
        %1405 = vmatpush.bf16.msra.mxu0 0
        %1406 = vmatpush.bf16.msra.mxu0 0
        %1407 = vmatpush.bf16.msra.mxu0 %v725
        %1408 = vmatpush.bf16.msra.mxu0 %v724
        %1409 = vmatmul.bf16.gmra.mxu0 %v1399
        %v1410 = vpop.f32.mrf.mxu0
        %v1411 = vadd.f32 0.0, %v1410
        %v1412 = vpop.f32.mrf.mxu0
        %v1413 = vadd.f32 0.0, %v1412
        %1414 = vdwg.mxu0
        %v1417 = vunpack.c.l.b16 %v1393
        %v1418 = vunpack.c.l.b16 %v1394
        %v1419 = vpack.c.b16 %v1418, %v1417
        %1420 = vrot.lane.b32.xlu0 %v1419, 64
        %v1421 = vpop.permute.xlu0 %1420
        %v1423 = vsel %vm502, %v1421, 0
        %1425 = vmatpush.bf16.msra.mxu0 0
        %1426 = vmatpush.bf16.msra.mxu0 0
        %1427 = vmatpush.bf16.msra.mxu0 0
        %1428 = vmatpush.bf16.msra.mxu0 0
        %1429 = vmatpush.bf16.msra.mxu0 0
        %1430 = vmatpush.bf16.msra.mxu0 0
        %1431 = vmatpush.bf16.msra.mxu0 %v757
        %1432 = vmatpush.bf16.msra.mxu0 %v756
        %1433 = vmatmul.bf16.gmra.mxu0 %v1423
        %v1434 = vpop.f32.mrf.mxu0
        %v1435 = vadd.f32 %v1411, %v1434
        %v1436 = vpop.f32.mrf.mxu0
        %v1437 = vadd.f32 %v1413, %v1436
        %1438 = vdwg.mxu0
        %v1439 = vadd.f32 %v1435, %v779
        %v1440 = vadd.f32 %v1437, %v779
        %v1441 = vxor.u32 %v1439, 2147483648
        %v1442 = vxor.u32 %v1440, 2147483648
        %v1443 = vmul.f32 %v1441, 1.442695
        %v1444 = vpow.pop %v1443
        %v1445 = vmul.f32 %v1442, 1.442695
        %v1446 = vpow.pop %v1445
        %v1447 = vadd.f32 %v1444, 1.0
        %v1448 = vadd.f32 %v1446, 1.0
        %v1449 = vrcp.pop %v1447
        %v1450 = vmul.f32 %v1447, %v1449
        %v1451 = vsub.f32 1.0, %v1450
        %v1452 = vmul.f32 %v1449, %v1451
        %v1453 = vadd.f32 %v1449, %v1452
        %vm1454 = vweird.f32 %v1447
        %vm1455 = vweird.f32 %v1449
        %vm1456 = vmor %vm1454, %vm1455
        %v1457 = vsel %vm1456, %v1449, %v1453
        %v1458 = vand.u32 2147483647, %v1447
        %vm1459 = vcmp.eq.f32.partialorder %v1458, 8.507059e+37
        %v1460 = vand.u32 %v1447, 2147483648
        %v1461 = vor.u32 1.1754944e-38, %v1460
        %v1462 = vsel %vm1459, %v1461, %v1457
        %v1463 = vmul.f32 1.0, %v1462
        %v1464 = vrcp.pop %v1448
        %v1465 = vmul.f32 %v1448, %v1464
        %v1466 = vsub.f32 1.0, %v1465
        %v1467 = vmul.f32 %v1464, %v1466
        %v1468 = vadd.f32 %v1464, %v1467
        %vm1469 = vweird.f32 %v1448
        %vm1470 = vweird.f32 %v1464
        %vm1471 = vmor %vm1469, %vm1470
        %v1472 = vsel %vm1471, %v1464, %v1468
        %v1473 = vand.u32 2147483647, %v1448
        %vm1474 = vcmp.eq.f32.partialorder %v1473, 8.507059e+37
        %v1475 = vand.u32 %v1448, 2147483648
        %v1476 = vor.u32 1.1754944e-38, %v1475
        %v1477 = vsel %vm1474, %v1476, %v1472
        %v1478 = vmul.f32 1.0, %v1477
        %v1479 = vtanh.pop %v1439
        %v1480 = vtanh.pop %v1440
        %v1481 = vmul.f32 %v1463, %v1281
        %v1482 = vmul.f32 %v1478, %v1282
        %1485 = vrot.lane.b32.xlu0 %v1479, 32
        %v1486 = vpop.permute.xlu0 %1485
        %1487 = vrot.lane.b32.xlu0 %v1480, 32
        %v1488 = vpop.permute.xlu0 %1487
        %v1491 = vmul.f32 %v1463, %v1486
        %v1492 = vmul.f32 %v1478, %v1488
        %1495 = vrot.lane.b32.xlu0 %v1491, 32
        %v1496 = vpop.permute.xlu0 %1495
        %1497 = vrot.lane.b32.xlu0 %v1492, 32
        %v1498 = vpop.permute.xlu0 %1497
        %v1501 = vadd.f32 %v1481, %v1496
        %v1502 = vadd.f32 %v1482, %v1498
        %v1503 = vtanh.pop %v1501
        %v1504 = vtanh.pop %v1502
        %1507 = vrot.lane.b32.xlu0 %v1503, 32
        %v1508 = vpop.permute.xlu0 %1507
        %1509 = vrot.lane.b32.xlu0 %v1504, 32
        %v1510 = vpop.permute.xlu0 %1509
        %v1513 = vmul.f32 %v1463, %v1508
        %v1514 = vmul.f32 %v1478, %v1510
        %v1515 = vpack.c.bf16 %v1513, %v1513
        %v1516 = vpack.c.bf16 %v1514, %v1514
        %1517 = vrot.lane.b32.xlu0 %v1393, 64
        %v1518 = vpop.permute.xlu0 %1517
        %1519 = vrot.lane.b32.xlu0 %v1394, 64
        %v1520 = vpop.permute.xlu0 %1519
        %vm1523 = vcmask 257024
        %1524 = vst.msk [vmem:[#allocation2] sm:$0xf] %vm1523, %v1518
        %1525 = vst.msk [vmem:[#allocation2 + $0x4] sm:$0xf] %vm1523, %v1520
        %1528 = vrot.lane.b32.xlu0 %v1379, 96
        %v1529 = vpop.permute.xlu0 %1528
        %1530 = vrot.lane.b32.xlu0 %v1380, 96
        %v1531 = vpop.permute.xlu0 %1530
        %1534 = vst.msk [vmem:[#allocation3] sm:$0xff] %vm502, %v1529
        %1535 = vst.msk [vmem:[#allocation3 + $0x8] sm:$0xff] %vm502, %v1531
        %1538 = vrot.lane.b32.xlu0 %v1515, 64
        %v1539 = vpop.permute.xlu0 %1538
        %1540 = vrot.lane.b32.xlu0 %v1516, 64
        %v1541 = vpop.permute.xlu0 %1540
        %1544 = vst.msk [vmem:[%s562] sm:$0xf] %vm1523, %v1539
        %1545 = vst.msk [vmem:[%s562 + $0x4] sm:$0xf] %vm1523, %v1541
        %1548 = vrot.lane.b32.xlu0 %v1501, 96
        %v1549 = vpop.permute.xlu0 %1548
        %1550 = vrot.lane.b32.xlu0 %v1502, 96
        %v1551 = vpop.permute.xlu0 %1550
        %1554 = vst.msk [vmem:[%s567] sm:$0xff] %vm502, %v1549
        %1555 = vst.msk [vmem:[%s567 + $0x8] sm:$0xff] %vm502, %v1551
        %p1556 = scmp.eq.s32.totalorder %s32, 1
        // Predicated region
        $region81: #{tpu_custom_call.1} parent=55 // pred_check
          %p1557 = pneg %p1556
        $region82: #{tpu_custom_call.1} parent=55 // pred_check_branch
          %1559 = sbr.rel (%p1557) target = $region84
        $region83: #{tpu_custom_call.1} parent=55 // pred_region
          %v1560 = vunpack.c.l.bf16 %v1515
          %v1561 = vunpack.c.l.bf16 %v1516
          %v1562 = vld [vmem:[%s7] sm:$0x1]
          %v1564 = vperm.slane %v1562, 0
          %1565 = vrot.lane.b32.xlu0 %v1564, 64
          %v1566 = vpop.permute.xlu0 %1565
          %v1568 = vmul.f32 %v1560, %v1566
          %v1569 = vmul.f32 %v1561, %v1566
          %1572 = vrot.lane.b32.xlu0 %v1568, 64
          %v1573 = vpop.permute.xlu0 %1572
          %1574 = vrot.lane.b32.xlu0 %v1569, 64
          %v1575 = vpop.permute.xlu0 %1574
          %v1578 = vsel %vm502, %v1573, 0.0
          %1579 = vadd.xlane.f32.xlu0 %v1578
          %v1580 = vpop.xlane.xlu0 %1579
          %v1581 = vsel %vm502, %v1575, 0.0
          %1582 = vadd.xlane.f32.xlu0 %v1581
          %v1583 = vpop.xlane.xlu0 %1582
          %v1584 = vld [vmem:[#allocation5] sm:$0x1]
          %v1586 = vperm.slane %v1584, 0
          %v1588 = vadd.f32 %v1580, %v1586
          %v1589 = vadd.f32 %v1583, %v1586
          %v1590 = vxor.u32 %v1588, 2147483648
          %v1591 = vxor.u32 %v1589, 2147483648
          %v1592 = vmul.f32 %v1590, 1.442695
          %v1593 = vpow.pop %v1592
          %v1594 = vmul.f32 %v1591, 1.442695
          %v1595 = vpow.pop %v1594
          %v1596 = vadd.f32 %v1593, 1.0
          %v1597 = vadd.f32 %v1595, 1.0
          %v1598 = vrcp.pop %v1596
          %v1599 = vmul.f32 %v1596, %v1598
          %v1600 = vsub.f32 1.0, %v1599
          %v1601 = vmul.f32 %v1598, %v1600
          %v1602 = vadd.f32 %v1598, %v1601
          %vm1603 = vweird.f32 %v1596
          %vm1604 = vweird.f32 %v1598
          %vm1605 = vmor %vm1603, %vm1604
          %v1606 = vsel %vm1605, %v1598, %v1602
          %v1607 = vand.u32 2147483647, %v1596
          %vm1608 = vcmp.eq.f32.partialorder %v1607, 8.507059e+37
          %v1609 = vand.u32 %v1596, 2147483648
          %v1610 = vor.u32 1.1754944e-38, %v1609
          %v1611 = vsel %vm1608, %v1610, %v1606
          %v1612 = vmul.f32 1.0, %v1611
          %v1613 = vrcp.pop %v1597
          %v1614 = vmul.f32 %v1597, %v1613
          %v1615 = vsub.f32 1.0, %v1614
          %v1616 = vmul.f32 %v1613, %v1615
          %v1617 = vadd.f32 %v1613, %v1616
          %vm1618 = vweird.f32 %v1597
          %vm1619 = vweird.f32 %v1613
          %vm1620 = vmor %vm1618, %vm1619
          %v1621 = vsel %vm1620, %v1613, %v1617
          %v1622 = vand.u32 2147483647, %v1597
          %vm1623 = vcmp.eq.f32.partialorder %v1622, 8.507059e+37
          %v1624 = vand.u32 %v1597, 2147483648
          %v1625 = vor.u32 1.1754944e-38, %v1624
          %v1626 = vsel %vm1623, %v1625, %v1621
          %v1627 = vmul.f32 1.0, %v1626
          %vm1628 = vcmask 7168
          %1629 = vst.msk [vmem:[%s441] sm:$0xff] %vm1628, %v1612
          %1630 = vst.msk [vmem:[%s441 + $0x8] sm:$0xff] %vm1628, %v1627
        $region84: #{tpu_custom_call.1} parent=55 // pred_fallthru
          _
        %s1631 = smul.u32 2, %s31
        %p1632 = scmp.lt.s32.totalorder %s1631, 1
        %s1633 = scalar_select %p1632, %s1631, 1
        %s1634 = smul.addr %s1633, 8
        %s1635 = scalar_lea.vmem %s9, %s1634
        // Predicated region
        $region85: #{tpu_custom_call.1} parent=55 // pred_check
          %p1636 = pneg %p253
        $region86: #{tpu_custom_call.1} parent=55 // pred_check_branch
          %1638 = sbr.rel (%p1636) target = $region88
        $region87: #{tpu_custom_call.1} parent=55 // pred_region
          %s1639 = smul.u32 2, %s31
        $region88: #{tpu_custom_call.1} parent=55 // pred_fallthru
          _
        // Predicated region
        $region89: #{tpu_custom_call.1} parent=55 // pred_check
          %p1640 = pneg %p253
        $region90: #{tpu_custom_call.1} parent=55 // pred_check_branch
          %1642 = sbr.rel (%p1640) target = $region92
        $region91: #{tpu_custom_call.1} parent=55 // pred_region
          %s1643 = smul.u32 2, %s31
          %p1644 = scmp.lt.s32.totalorder %s1643, 1
          %s1645 = scalar_select %p1644, %s1643, 1
          %s1646 = smul.addr %s1645, 8
          %s1647 = scalar_lea.vmem %s9, %s1646
        $region92: #{tpu_custom_call.1} parent=55 // pred_fallthru
          _
      $region56: #{tpu_custom_call.1} parent=5 // pred_fallthru
        _
      %p1648 = scmp.le.s32.totalorder 2, %s22
      // Predicated region
      $region93: #{tpu_custom_call.1} parent=5 // pred_check
        %p1649 = pneg %p1648
      $region94: #{tpu_custom_call.1} parent=5 // pred_check_branch
        %1651 = sbr.rel (%p1649) target = $region96
      $region95: #{tpu_custom_call.1} parent=5 // pred_region
        %s1652 = ssub.s32 %s22, 2
      $region96: #{tpu_custom_call.1} parent=5 // pred_fallthru
        _
    $region6: #{tpu_custom_call.1} parent=1 // loop_footer
      %s26 = sadd.s32 1, %s22
    $region7: #{tpu_custom_call.1} parent=1 // loop_footer_branch
      %21 = sbr.rel target = $region3
    $region8: #{tpu_custom_call.1} parent=1 // loop_exit
      _
    %1653 = vsyncpa [#allocation7], 1
    %s1654 = scalar_lea.sflag [#allocation7], 1
    %1655 = vsyncpa %s1654, 1
    %1656 = vsyncpa [#allocation9], 1
    %1657 = vsyncpa [#allocation12], 1

</llo_original>
